<compile_context>
chip_gen: v6e
topology: v6e:2x2x1
jax: 0.10.0
libtpu: 0.0.40
codegen_flags: <defaults>
</compile_context>

<pallas_src>
import jax
import jax.numpy as jnp
from jax.experimental import pallas as pl
from jax.experimental.pallas import tpu as pltpu

EPS = 1e-5
LANE = 128


def _cdiv(a, b):
    return -(-a // b)


def _round_up(a, b):
    return _cdiv(a, b) * b


# ----------------------------- Pallas kernels ------------------------------ #

def _make_conv_kernel(tap_offs, r, wq, wo, n_valid, sc_off):
    """3x3 conv as 9 shifted MXU matmuls over a flattened wide-row phase layout,
    plus single-pass per-channel sum / sum-of-squares BatchNorm statistics.
    Optionally fuses the 1x1 projection-shortcut matmul (the (1,1) tap)."""

    def kernel(*refs):
        if sc_off is not None:
            ph_ref, w_ref, ws_ref, y_ref, ysc_ref, st_ref = refs
        else:
            ph_ref, w_ref, y_ref, st_ref = refs

        acc = None
        for t, off in enumerate(tap_offs):
            xt = ph_ref[0, off:off + r, :]                        # (r, cin) bf16
            d = jnp.dot(xt, w_ref[t], preferred_element_type=jnp.float32)
            acc = d if acc is None else acc + d
        y_ref[...] = acc

        # Mask wide-row garbage columns / padding rows out of the statistics.
        ridx = jax.lax.broadcasted_iota(jnp.int32, acc.shape, 0)
        valid = jnp.logical_and(ridx % wq < wo, ridx < n_valid)
        am = jnp.where(valid, acc, 0.0)
        stats = [jnp.sum(am, axis=0, keepdims=True),
                 jnp.sum(am * am, axis=0, keepdims=True)]

        if sc_off is not None:
            xs = ph_ref[0, sc_off:sc_off + r, :]
            acc_s = jnp.dot(xs, ws_ref[...], preferred_element_type=jnp.float32)
            ysc_ref[...] = acc_s
            sm = jnp.where(valid, acc_s, 0.0)
            stats += [jnp.sum(sm, axis=0, keepdims=True),
                      jnp.sum(sm * sm, axis=0, keepdims=True)]

        st = jnp.concatenate(stats, axis=0)                       # (2|4, cp)
        st_ref[...] = st.reshape((1,) + st.shape)

    return kernel


def _finalize_kernel(y2_ref, sc_ref, prm_ref, o_ref):
    """BN2-apply + (shortcut BN-apply or identity) + add + ReLU, elementwise."""
    p = prm_ref[...]                                              # (4, cp) f32
    y = (y2_ref[...] * p[0:1, :] + p[1:2, :]
         + sc_ref[...] * p[2:3, :] + p[3:4, :])
    o_ref[...] = jnp.maximum(y, 0.0)


# --------------------------- pallas_call wrappers --------------------------- #

def _conv_stage(phases, w, ws, *, n, r, wq, wo, n_valid, tap_offs, sc_off, cp):
    length, cin = phases.shape[1], phases.shape[2]
    with_sc = ws is not None
    n_stats = 4 if with_sc else 2

    in_specs = [pl.BlockSpec((1, length, cin), lambda i: (i, 0, 0)),
                pl.BlockSpec(w.shape, lambda i: (0, 0, 0))]
    args = [phases, w]
    if with_sc:
        in_specs.append(pl.BlockSpec(ws.shape, lambda i: (0, 0)))
        args.append(ws)

    out_shape = [jax.ShapeDtypeStruct((n * r, cp), jnp.float32)]
    out_specs = [pl.BlockSpec((r, cp), lambda i: (i, 0))]
    if with_sc:
        out_shape.append(jax.ShapeDtypeStruct((n * r, cp), jnp.float32))
        out_specs.append(pl.BlockSpec((r, cp), lambda i: (i, 0)))
    out_shape.append(jax.ShapeDtypeStruct((n, n_stats, cp), jnp.float32))
    out_specs.append(pl.BlockSpec((1, n_stats, cp), lambda i: (i, 0, 0)))

    n_mm = len(tap_offs) + (1 if with_sc else 0)
    flops = 2 * n * r * cin * cp * n_mm
    bytes_accessed = (phases.size * 2 + w.size * 2
                      + (ws.size * 2 if with_sc else 0)
                      + n * r * cp * 4 * (2 if with_sc else 1)
                      + n * n_stats * cp * 4)

    return pl.pallas_call(
        _make_conv_kernel(tap_offs, r, wq, wo, n_valid,
                          sc_off if with_sc else None),
        grid=(n,),
        in_specs=in_specs,
        out_specs=tuple(out_specs),
        out_shape=tuple(out_shape),
        compiler_params=pltpu.CompilerParams(
            dimension_semantics=("parallel",),
            vmem_limit_bytes=32 * 1024 * 1024),
        cost_estimate=pl.CostEstimate(flops=int(flops), transcendentals=0,
                                      bytes_accessed=int(bytes_accessed)),
    )(*args)


def _finalize_stage(y2_pre, sc, prm, *, n, r, cp):
    return pl.pallas_call(
        _finalize_kernel,
        grid=(n,),
        in_specs=[pl.BlockSpec((r, cp), lambda i: (i, 0)),
                  pl.BlockSpec((r, cp), lambda i: (i, 0)),
                  pl.BlockSpec((4, cp), lambda i: (0, 0))],
        out_specs=pl.BlockSpec((r, cp), lambda i: (i, 0)),
        out_shape=jax.ShapeDtypeStruct((n * r, cp), jnp.float32),
        compiler_params=pltpu.CompilerParams(
            dimension_semantics=("parallel",),
            vmem_limit_bytes=32 * 1024 * 1024),
    )(y2_pre, sc, prm)


# ----------------------------- layout helpers ------------------------------ #

def _build_phases(x_nhwc, stride, hph, wq):
    """Zero-pad spatially by 1, split into stride*stride phases, pad each phase
    to (hph, wq) and flatten -> (N, stride*stride*hph*wq, C).  A 3x3/stride-s
    conv tap (dy, dx) then becomes a *contiguous* row-slice of this array."""
    n, _, _, c = x_nhwc.shape
    xp = jnp.pad(x_nhwc, ((0, 0), (1, 1), (1, 1), (0, 0)))
    cols = []
    for py in range(stride):
        for px in range(stride):
            ph = xp[:, py::stride, px::stride, :][:, :hph, :wq, :]
            ph = jnp.pad(ph, ((0, 0), (0, hph - ph.shape[1]),
                              (0, wq - ph.shape[2]), (0, 0)))
            cols.append(ph.reshape(n, hph * wq, c))
    return jnp.concatenate(cols, axis=1)


def _tap_offsets(stride, hph, wq):
    offs = []
    for dy in range(3):
        for dx in range(3):
            p = (dy % stride) * stride + (dx % stride)
            offs.append(p * hph * wq + (dy // stride) * wq + (dx // stride))
    return offs


def _sc_offset(stride, hph, wq):
    p = (1 % stride) * stride + (1 % stride)
    return p * hph * wq + (1 // stride) * wq + (1 // stride)


def _w3x3(w_oihw, ci_pad, co_pad):
    co, ci, kh, kw = w_oihw.shape
    w = jnp.transpose(w_oihw, (2, 3, 1, 0)).reshape(kh * kw, ci, co)
    w = jnp.pad(w, ((0, 0), (0, ci_pad - ci), (0, co_pad - co)))
    return w.astype(jnp.bfloat16)


def _w1x1(w_oihw, co_pad):
    co, ci = w_oihw.shape[:2]
    w = jnp.transpose(w_oihw.reshape(co, ci), (1, 0))
    return jnp.pad(w, ((0, 0), (0, co_pad - co))).astype(jnp.bfloat16)


def _bn_scale_shift(s, ss, count, gamma, beta, cp):
    """Training-mode BN (biased variance) folded into per-channel scale/shift."""
    mean = s / count
    var = jnp.maximum(ss / count - mean * mean, 0.0)
    inv = jax.lax.rsqrt(var + EPS)
    g = jnp.pad(gamma.reshape(-1), (0, cp - gamma.size))
    b = jnp.pad(beta.reshape(-1), (0, cp - beta.size))
    scale = g * inv
    shift = b - mean * scale
    return scale, shift


# ------------------------------- forward pass ------------------------------- #

def _residual_block(x_nchw, params, stride):
    n, cin, h, wimg = x_nchw.shape
    cout = params["w1"].shape[0]
    cp = _round_up(cout, LANE)
    x = jnp.transpose(x_nchw, (0, 2, 3, 1)).astype(jnp.float32)      # NHWC

    ho = (h + 2 - 3) // stride + 1
    wo = (wimg + 2 - 3) // stride + 1
    wq = wo + 2                        # wide-row width (cols >= wo are garbage)
    n_valid = ho * wq
    r = _round_up(n_valid, 8)          # rows per image in the wide-row layout
    count = n * ho * wo
    use_conv_sc = (stride != 1) or (cin != cout)

    # ---- pass 1: conv1 (+ fused 1x1 projection shortcut) + BN statistics ----
    amax1 = (3 - 1) // stride
    hph1 = _cdiv(r + amax1 * wq + amax1, wq)
    ph1 = _build_phases(x, stride, hph1, wq).astype(jnp.bfloat16)
    taps1 = _tap_offsets(stride, hph1, wq)
    w1m = _w3x3(params["w1"], cin, cp)
    if use_conv_sc:
        wsm = _w1x1(params["ws"], cp)
        y1_pre, ysc_pre, st1 = _conv_stage(
            ph1, w1m, wsm, n=n, r=r, wq=wq, wo=wo, n_valid=n_valid,
            tap_offs=taps1, sc_off=_sc_offset(stride, hph1, wq), cp=cp)
    else:
        y1_pre, st1 = _conv_stage(
            ph1, w1m, None, n=n, r=r, wq=wq, wo=wo, n_valid=n_valid,
            tap_offs=taps1, sc_off=None, cp=cp)
    st1 = jnp.sum(st1, axis=0)                                      # (2|4, cp)
    scale1, shift1 = _bn_scale_shift(st1[0], st1[1], count,
                                     params["g1"], params["b1"], cp)

    # BN1 + ReLU fused (by XLA) into the re-layout that feeds conv2.
    y1 = y1_pre.reshape(n, r, cp)[:, :n_valid, :]
    y1 = y1.reshape(n, ho, wq, cp)[:, :, :wo, :]
    y1 = jnp.maximum(y1 * scale1 + shift1, 0.0)

    # ---- pass 2: conv2 + BN statistics ---------------------------------------
    hph2 = _cdiv(r + 2 * wq + 2, wq)
    ph2 = _build_phases(y1, 1, hph2, wq).astype(jnp.bfloat16)
    w2m = _w3x3(params["w2"], cp, cp)
    y2_pre, st2 = _conv_stage(
        ph2, w2m, None, n=n, r=r, wq=wq, wo=wo, n_valid=n_valid,
        tap_offs=_tap_offsets(1, hph2, wq), sc_off=None, cp=cp)
    st2 = jnp.sum(st2, axis=0)
    scale2, shift2 = _bn_scale_shift(st2[0], st2[1], count,
                                     params["g2"], params["b2"], cp)

    # ---- pass 3: BN2 + shortcut + add + ReLU ---------------------------------
    if use_conv_sc:
        scale_s, shift_s = _bn_scale_shift(st1[2], st1[3], count,
                                           params["gs"], params["bs"], cp)
        sc_operand = ysc_pre
    else:
        xi = jnp.pad(x, ((0, 0), (0, 0), (0, wq - wo), (0, cp - cin)))
        xi = xi.reshape(n, ho * wq, cp)
        xi = jnp.pad(xi, ((0, 0), (0, r - n_valid), (0, 0))).reshape(n * r, cp)
        sc_operand = xi
        scale_s = jnp.ones((cp,), jnp.float32)
        shift_s = jnp.zeros((cp,), jnp.float32)
    prm = jnp.stack([scale2, shift2, scale_s, shift_s], axis=0)     # (4, cp)
    out_wide = _finalize_stage(y2_pre, sc_operand, prm, n=n, r=r, cp=cp)

    out = out_wide.reshape(n, r, cp)[:, :n_valid, :]
    out = out.reshape(n, ho, wq, cp)[:, :, :wo, :cout]
    return jnp.transpose(out, (0, 3, 1, 2))                         # NCHW


residual_block = jax.jit(_residual_block, static_argnames=("stride",))


# --------------------------- pure-JAX references ---------------------------- #

def residual_block_ref(x_nchw, params, stride, matmul_bf16=False):
    """Reference forward.  With matmul_bf16=True it mirrors the kernels'
    precision policy (bf16 conv operands, f32 accumulation, f32 BN/ReLU)."""
    x = jnp.transpose(x_nchw, (0, 2, 3, 1)).astype(jnp.float32)

    def conv(inp, w_oihw, s, p):
        lhs = inp.astype(jnp.bfloat16) if matmul_bf16 else inp
        rhs = jnp.transpose(w_oihw, (2, 3, 1, 0))
        rhs = rhs.astype(jnp.bfloat16) if matmul_bf16 else rhs
        return jax.lax.conv_general_dilated(
            lhs, rhs, (s, s), [(p, p), (p, p)],
            dimension_numbers=("NHWC", "HWIO", "NHWC"),
            preferred_element_type=jnp.float32)

    def bn(t, g, b):
        m = jnp.mean(t, axis=(0, 1, 2), keepdims=True)
        v = jnp.mean((t - m) ** 2, axis=(0, 1, 2), keepdims=True)
        return ((t - m) * jax.lax.rsqrt(v + EPS) * g.reshape(1, 1, 1, -1)
                + b.reshape(1, 1, 1, -1))

    y = jnp.maximum(bn(conv(x, params["w1"], stride, 1),
                       params["g1"], params["b1"]), 0.0)
    y = bn(conv(y, params["w2"], 1, 1), params["g2"], params["b2"])
    cin, cout = x_nchw.shape[1], params["w1"].shape[0]
    if stride != 1 or cin != cout:
        s = bn(conv(x, params["ws"], stride, 0), params["gs"], params["bs"])
    else:
        s = x
    return jnp.transpose(jnp.maximum(y + s, 0.0), (0, 3, 1, 2))


def make_params(key, in_c, out_c):
    ks = jax.random.split(key, 8)
    return {
        "w1": 0.1 * jax.random.normal(ks[0], (out_c, in_c, 3, 3), jnp.float32),
        "g1": 1.0 + 0.1 * jax.random.normal(ks[1], (1, out_c), jnp.float32),
        "b1": 0.1 * jax.random.normal(ks[2], (1, out_c), jnp.float32),
        "w2": 0.1 * jax.random.normal(ks[3], (out_c, out_c, 3, 3), jnp.float32),
        "g2": 1.0 + 0.1 * jax.random.normal(ks[4], (1, out_c), jnp.float32),
        "b2": 0.1 * jax.random.normal(ks[5], (1, out_c), jnp.float32),
        "ws": 0.1 * jax.random.normal(ks[6], (out_c, in_c, 1, 1), jnp.float32),
        "gs": 1.0 + 0.1 * jax.random.normal(ks[7], (1, out_c), jnp.float32),
        "bs": jnp.zeros((1, out_c), jnp.float32),
    }


# --------------------------------- main ------------------------------------ #

if __name__ == "__main__":
    key = jax.random.PRNGKey(0)
    configs = [
        dict(in_c=4, out_c=8, stride=2),   # projection (1x1 conv + BN) shortcut
        dict(in_c=8, out_c=8, stride=1),   # identity shortcut
    ]
    for cfg in configs:
        key, kx, kp = jax.random.split(key, 3)
        x = jax.random.normal(kx, (2, cfg["in_c"], 16, 16), jnp.float32)
        params = make_params(kp, cfg["in_c"], cfg["out_c"])

        out = jax.block_until_ready(
            residual_block(x, params, stride=cfg["stride"]))

        ho = (16 + 2 - 3) // cfg["stride"] + 1
        assert out.shape == (2, cfg["out_c"], ho, ho), out.shape

        # strict check against a reference using the same matmul precision policy
        ref_p = residual_block_ref(x, params, cfg["stride"], matmul_bf16=True)
        assert bool(jnp.allclose(out, ref_p, atol=5e-3, rtol=5e-3)), \
            "mismatch vs precision-matched reference"
        # looser sanity check against the full-f32 reference
        ref_f = residual_block_ref(x, params, cfg["stride"], matmul_bf16=False)
        assert bool(jnp.allclose(out, ref_f, atol=1e-1, rtol=1e-1)), \
            "mismatch vs f32 reference"

    print("KERNEL_OK")
</pallas_src>

<mosaic_0001>
module attributes {stable_mosaic.version = 11 : i64} {
  func.func @kernel(%arg0: i32, %arg1: memref<1x400x4xbf16, #tpu.memory_space<vmem>>, %arg2: memref<9x4x128xbf16, #tpu.memory_space<vmem>>, %arg3: memref<4x128xbf16, #tpu.memory_space<vmem>>, %arg4: memref<80x128xf32, #tpu.memory_space<vmem>>, %arg5: memref<80x128xf32, #tpu.memory_space<vmem>>, %arg6: memref<1x4x128xf32, #tpu.memory_space<vmem>>) attributes {dimension_semantics = [#tpu.dimension_semantics<parallel>], iteration_bounds = array<i64: 2>, scalar_prefetch = 0 : i64, scratch_operands = 0 : i64, tpu.core_type = #tpu.core_type<tc>, window_params = [{transform_indices = @transform_0, window_bounds = array<i64: 1, 400, 4>}, {pipeline_mode = #tpu.pipeline_mode<synchronous>, transform_indices = @transform_1, window_bounds = array<i64: 9, 4, 128>}, {pipeline_mode = #tpu.pipeline_mode<synchronous>, transform_indices = @transform_2, window_bounds = array<i64: 4, 128>}, {transform_indices = @transform_3, window_bounds = array<i64: 80, 128>}, {transform_indices = @transform_4, window_bounds = array<i64: 80, 128>}, {transform_indices = @transform_5, window_bounds = array<i64: 1, 4, 128>}]} {
    %c0 = arith.constant 0 : index
    %c0_0 = arith.constant 0 : index
    %c0_1 = arith.constant 0 : index
    %0 = vector.load %arg1[%c0, %c0_0, %c0_1] : memref<1x400x4xbf16, #tpu.memory_space<vmem>>, vector<1x80x4xbf16>
    %1 = vector.shape_cast %0 : vector<1x80x4xbf16> to vector<80x4xbf16>
    %c0_2 = arith.constant 0 : index
    %c0_3 = arith.constant 0 : index
    %c0_4 = arith.constant 0 : index
    %2 = vector.load %arg2[%c0_2, %c0_3, %c0_4] : memref<9x4x128xbf16, #tpu.memory_space<vmem>>, vector<1x4x128xbf16>
    %3 = vector.shape_cast %2 : vector<1x4x128xbf16> to vector<4x128xbf16>
    %cst = arith.constant dense<0.000000e+00> : vector<80x128xf32>
    %4 = tpu.matmul %1, %3, %cst {dimension_numbers = #tpu.dot_dimension_numbers<[1], [0], [0], [1], [0, 0, 1, 1], [], []>} : vector<80x4xbf16>, vector<4x128xbf16>, vector<80x128xf32> -> vector<80x128xf32>
    %c0_5 = arith.constant 0 : index
    %c100 = arith.constant 100 : index
    %c0_6 = arith.constant 0 : index
    %5 = vector.load %arg1[%c0_5, %c100, %c0_6] : memref<1x400x4xbf16, #tpu.memory_space<vmem>>, vector<1x80x4xbf16>
    %6 = vector.shape_cast %5 : vector<1x80x4xbf16> to vector<80x4xbf16>
    %c1 = arith.constant 1 : index
    %c0_7 = arith.constant 0 : index
    %c0_8 = arith.constant 0 : index
    %7 = vector.load %arg2[%c1, %c0_7, %c0_8] : memref<9x4x128xbf16, #tpu.memory_space<vmem>>, vector<1x4x128xbf16>
    %8 = vector.shape_cast %7 : vector<1x4x128xbf16> to vector<4x128xbf16>
    %cst_9 = arith.constant dense<0.000000e+00> : vector<80x128xf32>
    %9 = tpu.matmul %6, %8, %cst_9 {dimension_numbers = #tpu.dot_dimension_numbers<[1], [0], [0], [1], [0, 0, 1, 1], [], []>} : vector<80x4xbf16>, vector<4x128xbf16>, vector<80x128xf32> -> vector<80x128xf32>
    %10 = arith.addf %4, %9 : vector<80x128xf32>
    %c0_10 = arith.constant 0 : index
    %c1_11 = arith.constant 1 : index
    %c0_12 = arith.constant 0 : index
    %11 = vector.load %arg1[%c0_10, %c1_11, %c0_12] : memref<1x400x4xbf16, #tpu.memory_space<vmem>>, vector<1x80x4xbf16>
    %12 = vector.shape_cast %11 : vector<1x80x4xbf16> to vector<80x4xbf16>
    %c2 = arith.constant 2 : index
    %c0_13 = arith.constant 0 : index
    %c0_14 = arith.constant 0 : index
    %13 = vector.load %arg2[%c2, %c0_13, %c0_14] : memref<9x4x128xbf16, #tpu.memory_space<vmem>>, vector<1x4x128xbf16>
    %14 = vector.shape_cast %13 : vector<1x4x128xbf16> to vector<4x128xbf16>
    %cst_15 = arith.constant dense<0.000000e+00> : vector<80x128xf32>
    %15 = tpu.matmul %12, %14, %cst_15 {dimension_numbers = #tpu.dot_dimension_numbers<[1], [0], [0], [1], [0, 0, 1, 1], [], []>} : vector<80x4xbf16>, vector<4x128xbf16>, vector<80x128xf32> -> vector<80x128xf32>
    %16 = arith.addf %10, %15 : vector<80x128xf32>
    %c0_16 = arith.constant 0 : index
    %c200 = arith.constant 200 : index
    %c0_17 = arith.constant 0 : index
    %17 = vector.load %arg1[%c0_16, %c200, %c0_17] : memref<1x400x4xbf16, #tpu.memory_space<vmem>>, vector<1x80x4xbf16>
    %18 = vector.shape_cast %17 : vector<1x80x4xbf16> to vector<80x4xbf16>
    %c3 = arith.constant 3 : index
    %c0_18 = arith.constant 0 : index
    %c0_19 = arith.constant 0 : index
    %19 = vector.load %arg2[%c3, %c0_18, %c0_19] : memref<9x4x128xbf16, #tpu.memory_space<vmem>>, vector<1x4x128xbf16>
    %20 = vector.shape_cast %19 : vector<1x4x128xbf16> to vector<4x128xbf16>
    %cst_20 = arith.constant dense<0.000000e+00> : vector<80x128xf32>
    %21 = tpu.matmul %18, %20, %cst_20 {dimension_numbers = #tpu.dot_dimension_numbers<[1], [0], [0], [1], [0, 0, 1, 1], [], []>} : vector<80x4xbf16>, vector<4x128xbf16>, vector<80x128xf32> -> vector<80x128xf32>
    %22 = arith.addf %16, %21 : vector<80x128xf32>
    %c0_21 = arith.constant 0 : index
    %c300 = arith.constant 300 : index
    %c0_22 = arith.constant 0 : index
    %23 = vector.load %arg1[%c0_21, %c300, %c0_22] : memref<1x400x4xbf16, #tpu.memory_space<vmem>>, vector<1x80x4xbf16>
    %24 = vector.shape_cast %23 : vector<1x80x4xbf16> to vector<80x4xbf16>
    %c4 = arith.constant 4 : index
    %c0_23 = arith.constant 0 : index
    %c0_24 = arith.constant 0 : index
    %25 = vector.load %arg2[%c4, %c0_23, %c0_24] : memref<9x4x128xbf16, #tpu.memory_space<vmem>>, vector<1x4x128xbf16>
    %26 = vector.shape_cast %25 : vector<1x4x128xbf16> to vector<4x128xbf16>
    %cst_25 = arith.constant dense<0.000000e+00> : vector<80x128xf32>
    %27 = tpu.matmul %24, %26, %cst_25 {dimension_numbers = #tpu.dot_dimension_numbers<[1], [0], [0], [1], [0, 0, 1, 1], [], []>} : vector<80x4xbf16>, vector<4x128xbf16>, vector<80x128xf32> -> vector<80x128xf32>
    %28 = arith.addf %22, %27 : vector<80x128xf32>
    %c0_26 = arith.constant 0 : index
    %c201 = arith.constant 201 : index
    %c0_27 = arith.constant 0 : index
    %29 = vector.load %arg1[%c0_26, %c201, %c0_27] : memref<1x400x4xbf16, #tpu.memory_space<vmem>>, vector<1x80x4xbf16>
    %30 = vector.shape_cast %29 : vector<1x80x4xbf16> to vector<80x4xbf16>
    %c5 = arith.constant 5 : index
    %c0_28 = arith.constant 0 : index
    %c0_29 = arith.constant 0 : index
    %31 = vector.load %arg2[%c5, %c0_28, %c0_29] : memref<9x4x128xbf16, #tpu.memory_space<vmem>>, vector<1x4x128xbf16>
    %32 = vector.shape_cast %31 : vector<1x4x128xbf16> to vector<4x128xbf16>
    %cst_30 = arith.constant dense<0.000000e+00> : vector<80x128xf32>
    %33 = tpu.matmul %30, %32, %cst_30 {dimension_numbers = #tpu.dot_dimension_numbers<[1], [0], [0], [1], [0, 0, 1, 1], [], []>} : vector<80x4xbf16>, vector<4x128xbf16>, vector<80x128xf32> -> vector<80x128xf32>
    %34 = arith.addf %28, %33 : vector<80x128xf32>
    %c0_31 = arith.constant 0 : index
    %c10 = arith.constant 10 : index
    %c0_32 = arith.constant 0 : index
    %35 = vector.load %arg1[%c0_31, %c10, %c0_32] : memref<1x400x4xbf16, #tpu.memory_space<vmem>>, vector<1x80x4xbf16>
    %36 = vector.shape_cast %35 : vector<1x80x4xbf16> to vector<80x4xbf16>
    %c6 = arith.constant 6 : index
    %c0_33 = arith.constant 0 : index
    %c0_34 = arith.constant 0 : index
    %37 = vector.load %arg2[%c6, %c0_33, %c0_34] : memref<9x4x128xbf16, #tpu.memory_space<vmem>>, vector<1x4x128xbf16>
    %38 = vector.shape_cast %37 : vector<1x4x128xbf16> to vector<4x128xbf16>
    %cst_35 = arith.constant dense<0.000000e+00> : vector<80x128xf32>
    %39 = tpu.matmul %36, %38, %cst_35 {dimension_numbers = #tpu.dot_dimension_numbers<[1], [0], [0], [1], [0, 0, 1, 1], [], []>} : vector<80x4xbf16>, vector<4x128xbf16>, vector<80x128xf32> -> vector<80x128xf32>
    %40 = arith.addf %34, %39 : vector<80x128xf32>
    %c0_36 = arith.constant 0 : index
    %c110 = arith.constant 110 : index
    %c0_37 = arith.constant 0 : index
    %41 = vector.load %arg1[%c0_36, %c110, %c0_37] : memref<1x400x4xbf16, #tpu.memory_space<vmem>>, vector<1x80x4xbf16>
    %42 = vector.shape_cast %41 : vector<1x80x4xbf16> to vector<80x4xbf16>
    %c7 = arith.constant 7 : index
    %c0_38 = arith.constant 0 : index
    %c0_39 = arith.constant 0 : index
    %43 = vector.load %arg2[%c7, %c0_38, %c0_39] : memref<9x4x128xbf16, #tpu.memory_space<vmem>>, vector<1x4x128xbf16>
    %44 = vector.shape_cast %43 : vector<1x4x128xbf16> to vector<4x128xbf16>
    %cst_40 = arith.constant dense<0.000000e+00> : vector<80x128xf32>
    %45 = tpu.matmul %42, %44, %cst_40 {dimension_numbers = #tpu.dot_dimension_numbers<[1], [0], [0], [1], [0, 0, 1, 1], [], []>} : vector<80x4xbf16>, vector<4x128xbf16>, vector<80x128xf32> -> vector<80x128xf32>
    %46 = arith.addf %40, %45 : vector<80x128xf32>
    %c0_41 = arith.constant 0 : index
    %c11 = arith.constant 11 : index
    %c0_42 = arith.constant 0 : index
    %47 = vector.load %arg1[%c0_41, %c11, %c0_42] : memref<1x400x4xbf16, #tpu.memory_space<vmem>>, vector<1x80x4xbf16>
    %48 = vector.shape_cast %47 : vector<1x80x4xbf16> to vector<80x4xbf16>
    %c8 = arith.constant 8 : index
    %c0_43 = arith.constant 0 : index
    %c0_44 = arith.constant 0 : index
    %49 = vector.load %arg2[%c8, %c0_43, %c0_44] : memref<9x4x128xbf16, #tpu.memory_space<vmem>>, vector<1x4x128xbf16>
    %50 = vector.shape_cast %49 : vector<1x4x128xbf16> to vector<4x128xbf16>
    %cst_45 = arith.constant dense<0.000000e+00> : vector<80x128xf32>
    %51 = tpu.matmul %48, %50, %cst_45 {dimension_numbers = #tpu.dot_dimension_numbers<[1], [0], [0], [1], [0, 0, 1, 1], [], []>} : vector<80x4xbf16>, vector<4x128xbf16>, vector<80x128xf32> -> vector<80x128xf32>
    %52 = arith.addf %46, %51 : vector<80x128xf32>
    %c0_46 = arith.constant 0 : index
    %c0_47 = arith.constant 0 : index
    %53 = vector.load %arg4[%c0_46, %c0_47] : memref<80x128xf32, #tpu.memory_space<vmem>>, vector<80x128xf32>
    tpu.vector_store %arg4[%c0_46, %c0_47], %52 {strides = array<i32>} : memref<80x128xf32, #tpu.memory_space<vmem>>, vector<80x128xf32>,
    %54 = tpu.iota {dimensions = array<i32: 0>} : vector<80x128xi32>
    %c10_i32 = arith.constant 10 : i32
    %c0_i32 = arith.constant 0 : i32
    %55 = arith.cmpi eq, %c10_i32, %c0_i32 : i32
    %c1_i32 = arith.constant 1 : i32
    %56 = arith.select %55, %c1_i32, %c10_i32 : i32
    %57 = vector.broadcast %56 : i32 to vector<80x128xi32>
    %58 = arith.remsi %54, %57 : vector<80x128xi32>
    %c0_i32_48 = arith.constant 0 : i32
    %59 = vector.broadcast %c0_i32_48 : i32 to vector<80x128xi32>
    %60 = arith.cmpi ne, %58, %59 : vector<80x128xi32>
    %c0_i32_49 = arith.constant 0 : i32
    %61 = vector.broadcast %c0_i32_49 : i32 to vector<80x128xi32>
    %62 = arith.cmpi slt, %58, %61 : vector<80x128xi32>
    %c0_i32_50 = arith.constant 0 : i32
    %63 = arith.cmpi slt, %56, %c0_i32_50 : i32
    %64 = vector.broadcast %63 : i1 to vector<80x128xi1>
    %65 = vector.broadcast %64 : vector<80x128xi1> to vector<80x128xi1>
    %66 = arith.xori %62, %65 : vector<80x128xi1>
    %67 = arith.andi %66, %60 : vector<80x128xi1>
    %68 = vector.broadcast %56 : i32 to vector<80x128xi32>
    %69 = arith.addi %58, %68 : vector<80x128xi32>
    %70 = arith.select %67, %69, %58 : vector<80x128xi1>, vector<80x128xi32>
    %c8_i32 = arith.constant 8 : i32
    %71 = vector.broadcast %c8_i32 : i32 to vector<80x128xi32>
    %72 = arith.cmpi slt, %70, %71 : vector<80x128xi32>
    %c80_i32 = arith.constant 80 : i32
    %73 = vector.broadcast %c80_i32 : i32 to vector<80x128xi32>
    %74 = arith.cmpi slt, %54, %73 : vector<80x128xi32>
    %75 = arith.andi %72, %74 : vector<80x128xi1>
    %cst_51 = arith.constant 0.000000e+00 : f32
    %76 = vector.broadcast %cst_51 : f32 to vector<80x128xf32>
    %77 = arith.select %75, %52, %76 : vector<80x128xi1>, vector<80x128xf32>
    %cst_52 = arith.constant dense<0.000000e+00> : vector<128xf32>
    %78 = vector.multi_reduction <add>, %77, %cst_52 [0] : vector<80x128xf32> to vector<128xf32>
    %79 = vector.shape_cast %78 : vector<128xf32> to vector<1x128xf32>
    %80 = arith.mulf %77, %77 : vector<80x128xf32>
    %cst_53 = arith.constant dense<0.000000e+00> : vector<128xf32>
    %81 = vector.multi_reduction <add>, %80, %cst_53 [0] : vector<80x128xf32> to vector<128xf32>
    %82 = vector.shape_cast %81 : vector<128xf32> to vector<1x128xf32>
    %c0_54 = arith.constant 0 : index
    %c300_55 = arith.constant 300 : index
    %c0_56 = arith.constant 0 : index
    %83 = vector.load %arg1[%c0_54, %c300_55, %c0_56] : memref<1x400x4xbf16, #tpu.memory_space<vmem>>, vector<1x80x4xbf16>
    %84 = vector.shape_cast %83 : vector<1x80x4xbf16> to vector<80x4xbf16>
    %c0_57 = arith.constant 0 : index
    %c0_58 = arith.constant 0 : index
    %85 = vector.load %arg3[%c0_57, %c0_58] : memref<4x128xbf16, #tpu.memory_space<vmem>>, vector<4x128xbf16>
    %cst_59 = arith.constant dense<0.000000e+00> : vector<80x128xf32>
    %86 = tpu.matmul %84, %85, %cst_59 {dimension_numbers = #tpu.dot_dimension_numbers<[1], [0], [0], [1], [0, 0, 1, 1], [], []>} : vector<80x4xbf16>, vector<4x128xbf16>, vector<80x128xf32> -> vector<80x128xf32>
    %c0_60 = arith.constant 0 : index
    %c0_61 = arith.constant 0 : index
    %87 = vector.load %arg5[%c0_60, %c0_61] : memref<80x128xf32, #tpu.memory_space<vmem>>, vector<80x128xf32>
    tpu.vector_store %arg5[%c0_60, %c0_61], %86 {strides = array<i32>} : memref<80x128xf32, #tpu.memory_space<vmem>>, vector<80x128xf32>,
    %cst_62 = arith.constant 0.000000e+00 : f32
    %88 = vector.broadcast %cst_62 : f32 to vector<80x128xf32>
    %89 = arith.select %75, %86, %88 : vector<80x128xi1>, vector<80x128xf32>
    %cst_63 = arith.constant dense<0.000000e+00> : vector<128xf32>
    %90 = vector.multi_reduction <add>, %89, %cst_63 [0] : vector<80x128xf32> to vector<128xf32>
    %91 = vector.shape_cast %90 : vector<128xf32> to vector<1x128xf32>
    %92 = arith.mulf %89, %89 : vector<80x128xf32>
    %cst_64 = arith.constant dense<0.000000e+00> : vector<128xf32>
    %93 = vector.multi_reduction <add>, %92, %cst_64 [0] : vector<80x128xf32> to vector<128xf32>
    %94 = vector.shape_cast %93 : vector<128xf32> to vector<1x128xf32>
    %95 = tpu.concatenate %79, %82, %91, %94 in 0 : vector<1x128xf32>, vector<1x128xf32>, vector<1x128xf32>, vector<1x128xf32> -> vector<4x128xf32>
    %96 = vector.shape_cast %95 : vector<4x128xf32> to vector<1x4x128xf32>
    %c0_65 = arith.constant 0 : index
    %c0_66 = arith.constant 0 : index
    %c0_67 = arith.constant 0 : index
    %97 = vector.load %arg6[%c0_65, %c0_66, %c0_67] : memref<1x4x128xf32, #tpu.memory_space<vmem>>, vector<1x4x128xf32>
    tpu.vector_store %arg6[%c0_65, %c0_66, %c0_67], %96 {strides = array<i32>} : memref<1x4x128xf32, #tpu.memory_space<vmem>>, vector<1x4x128xf32>,
    return
  }
  func.func @transform_0(%arg0: i32) -> (i32, i32, i32) {
    %c0_i32 = arith.constant 0 : i32
    %c0_i32_0 = arith.constant 0 : i32
    %c0_i32_1 = arith.constant 0 : i32
    return %arg0, %c0_i32, %c0_i32_0 : i32, i32, i32
  }
  func.func @transform_1(%arg0: i32) -> (i32, i32, i32) {
    %c0_i32 = arith.constant 0 : i32
    %c0_i32_0 = arith.constant 0 : i32
    %c0_i32_1 = arith.constant 0 : i32
    %c0_i32_2 = arith.constant 0 : i32
    return %c0_i32, %c0_i32_0, %c0_i32_1 : i32, i32, i32
  }
  func.func @transform_2(%arg0: i32) -> (i32, i32) {
    %c0_i32 = arith.constant 0 : i32
    %c0_i32_0 = arith.constant 0 : i32
    %c0_i32_1 = arith.constant 0 : i32
    return %c0_i32, %c0_i32_0 : i32, i32
  }
  func.func @transform_3(%arg0: i32) -> (i32, i32) {
    %c0_i32 = arith.constant 0 : i32
    %c0_i32_0 = arith.constant 0 : i32
    return %arg0, %c0_i32 : i32, i32
  }
  func.func @transform_4(%arg0: i32) -> (i32, i32) {
    %c0_i32 = arith.constant 0 : i32
    %c0_i32_0 = arith.constant 0 : i32
    return %arg0, %c0_i32 : i32, i32
  }
  func.func @transform_5(%arg0: i32) -> (i32, i32, i32) {
    %c0_i32 = arith.constant 0 : i32
    %c0_i32_0 = arith.constant 0 : i32
    %c0_i32_1 = arith.constant 0 : i32
    return %arg0, %c0_i32, %c0_i32_0 : i32, i32, i32
  }
}

module attributes {stable_mosaic.version = 11 : i64} {
  func.func @kernel(%arg0: i32, %arg1: memref<1x110x128xbf16, #tpu.memory_space<vmem>>, %arg2: memref<9x128x128xbf16, #tpu.memory_space<vmem>>, %arg3: memref<80x128xf32, #tpu.memory_space<vmem>>, %arg4: memref<1x2x128xf32, #tpu.memory_space<vmem>>) attributes {dimension_semantics = [#tpu.dimension_semantics<parallel>], iteration_bounds = array<i64: 2>, scalar_prefetch = 0 : i64, scratch_operands = 0 : i64, tpu.core_type = #tpu.core_type<tc>, window_params = [{transform_indices = @transform_0, window_bounds = array<i64: 1, 110, 128>}, {pipeline_mode = #tpu.pipeline_mode<synchronous>, transform_indices = @transform_1, window_bounds = array<i64: 9, 128, 128>}, {transform_indices = @transform_2, window_bounds = array<i64: 80, 128>}, {transform_indices = @transform_3, window_bounds = array<i64: 1, 2, 128>}]} {
    %c0 = arith.constant 0 : index
    %c0_0 = arith.constant 0 : index
    %c0_1 = arith.constant 0 : index
    %0 = vector.load %arg1[%c0, %c0_0, %c0_1] : memref<1x110x128xbf16, #tpu.memory_space<vmem>>, vector<1x80x128xbf16>
    %1 = vector.shape_cast %0 : vector<1x80x128xbf16> to vector<80x128xbf16>
    %c0_2 = arith.constant 0 : index
    %c0_3 = arith.constant 0 : index
    %c0_4 = arith.constant 0 : index
    %2 = vector.load %arg2[%c0_2, %c0_3, %c0_4] : memref<9x128x128xbf16, #tpu.memory_space<vmem>>, vector<1x128x128xbf16>
    %3 = vector.shape_cast %2 : vector<1x128x128xbf16> to vector<128x128xbf16>
    %cst = arith.constant dense<0.000000e+00> : vector<80x128xf32>
    %4 = tpu.matmul %1, %3, %cst {dimension_numbers = #tpu.dot_dimension_numbers<[1], [0], [0], [1], [0, 0, 1, 1], [], []>} : vector<80x128xbf16>, vector<128x128xbf16>, vector<80x128xf32> -> vector<80x128xf32>
    %c0_5 = arith.constant 0 : index
    %c1 = arith.constant 1 : index
    %c0_6 = arith.constant 0 : index
    %5 = vector.load %arg1[%c0_5, %c1, %c0_6] : memref<1x110x128xbf16, #tpu.memory_space<vmem>>, vector<1x80x128xbf16>
    %6 = vector.shape_cast %5 : vector<1x80x128xbf16> to vector<80x128xbf16>
    %c1_7 = arith.constant 1 : index
    %c0_8 = arith.constant 0 : index
    %c0_9 = arith.constant 0 : index
    %7 = vector.load %arg2[%c1_7, %c0_8, %c0_9] : memref<9x128x128xbf16, #tpu.memory_space<vmem>>, vector<1x128x128xbf16>
    %8 = vector.shape_cast %7 : vector<1x128x128xbf16> to vector<128x128xbf16>
    %cst_10 = arith.constant dense<0.000000e+00> : vector<80x128xf32>
    %9 = tpu.matmul %6, %8, %cst_10 {dimension_numbers = #tpu.dot_dimension_numbers<[1], [0], [0], [1], [0, 0, 1, 1], [], []>} : vector<80x128xbf16>, vector<128x128xbf16>, vector<80x128xf32> -> vector<80x128xf32>
    %10 = arith.addf %4, %9 : vector<80x128xf32>
    %c0_11 = arith.constant 0 : index
    %c2 = arith.constant 2 : index
    %c0_12 = arith.constant 0 : index
    %11 = vector.load %arg1[%c0_11, %c2, %c0_12] : memref<1x110x128xbf16, #tpu.memory_space<vmem>>, vector<1x80x128xbf16>
    %12 = vector.shape_cast %11 : vector<1x80x128xbf16> to vector<80x128xbf16>
    %c2_13 = arith.constant 2 : index
    %c0_14 = arith.constant 0 : index
    %c0_15 = arith.constant 0 : index
    %13 = vector.load %arg2[%c2_13, %c0_14, %c0_15] : memref<9x128x128xbf16, #tpu.memory_space<vmem>>, vector<1x128x128xbf16>
    %14 = vector.shape_cast %13 : vector<1x128x128xbf16> to vector<128x128xbf16>
    %cst_16 = arith.constant dense<0.000000e+00> : vector<80x128xf32>
    %15 = tpu.matmul %12, %14, %cst_16 {dimension_numbers = #tpu.dot_dimension_numbers<[1], [0], [0], [1], [0, 0, 1, 1], [], []>} : vector<80x128xbf16>, vector<128x128xbf16>, vector<80x128xf32> -> vector<80x128xf32>
    %16 = arith.addf %10, %15 : vector<80x128xf32>
    %c0_17 = arith.constant 0 : index
    %c10 = arith.constant 10 : index
    %c0_18 = arith.constant 0 : index
    %17 = vector.load %arg1[%c0_17, %c10, %c0_18] : memref<1x110x128xbf16, #tpu.memory_space<vmem>>, vector<1x80x128xbf16>
    %18 = vector.shape_cast %17 : vector<1x80x128xbf16> to vector<80x128xbf16>
    %c3 = arith.constant 3 : index
    %c0_19 = arith.constant 0 : index
    %c0_20 = arith.constant 0 : index
    %19 = vector.load %arg2[%c3, %c0_19, %c0_20] : memref<9x128x128xbf16, #tpu.memory_space<vmem>>, vector<1x128x128xbf16>
    %20 = vector.shape_cast %19 : vector<1x128x128xbf16> to vector<128x128xbf16>
    %cst_21 = arith.constant dense<0.000000e+00> : vector<80x128xf32>
    %21 = tpu.matmul %18, %20, %cst_21 {dimension_numbers = #tpu.dot_dimension_numbers<[1], [0], [0], [1], [0, 0, 1, 1], [], []>} : vector<80x128xbf16>, vector<128x128xbf16>, vector<80x128xf32> -> vector<80x128xf32>
    %22 = arith.addf %16, %21 : vector<80x128xf32>
    %c0_22 = arith.constant 0 : index
    %c11 = arith.constant 11 : index
    %c0_23 = arith.constant 0 : index
    %23 = vector.load %arg1[%c0_22, %c11, %c0_23] : memref<1x110x128xbf16, #tpu.memory_space<vmem>>, vector<1x80x128xbf16>
    %24 = vector.shape_cast %23 : vector<1x80x128xbf16> to vector<80x128xbf16>
    %c4 = arith.constant 4 : index
    %c0_24 = arith.constant 0 : index
    %c0_25 = arith.constant 0 : index
    %25 = vector.load %arg2[%c4, %c0_24, %c0_25] : memref<9x128x128xbf16, #tpu.memory_space<vmem>>, vector<1x128x128xbf16>
    %26 = vector.shape_cast %25 : vector<1x128x128xbf16> to vector<128x128xbf16>
    %cst_26 = arith.constant dense<0.000000e+00> : vector<80x128xf32>
    %27 = tpu.matmul %24, %26, %cst_26 {dimension_numbers = #tpu.dot_dimension_numbers<[1], [0], [0], [1], [0, 0, 1, 1], [], []>} : vector<80x128xbf16>, vector<128x128xbf16>, vector<80x128xf32> -> vector<80x128xf32>
    %28 = arith.addf %22, %27 : vector<80x128xf32>
    %c0_27 = arith.constant 0 : index
    %c12 = arith.constant 12 : index
    %c0_28 = arith.constant 0 : index
    %29 = vector.load %arg1[%c0_27, %c12, %c0_28] : memref<1x110x128xbf16, #tpu.memory_space<vmem>>, vector<1x80x128xbf16>
    %30 = vector.shape_cast %29 : vector<1x80x128xbf16> to vector<80x128xbf16>
    %c5 = arith.constant 5 : index
    %c0_29 = arith.constant 0 : index
    %c0_30 = arith.constant 0 : index
    %31 = vector.load %arg2[%c5, %c0_29, %c0_30] : memref<9x128x128xbf16, #tpu.memory_space<vmem>>, vector<1x128x128xbf16>
    %32 = vector.shape_cast %31 : vector<1x128x128xbf16> to vector<128x128xbf16>
    %cst_31 = arith.constant dense<0.000000e+00> : vector<80x128xf32>
    %33 = tpu.matmul %30, %32, %cst_31 {dimension_numbers = #tpu.dot_dimension_numbers<[1], [0], [0], [1], [0, 0, 1, 1], [], []>} : vector<80x128xbf16>, vector<128x128xbf16>, vector<80x128xf32> -> vector<80x128xf32>
    %34 = arith.addf %28, %33 : vector<80x128xf32>
    %c0_32 = arith.constant 0 : index
    %c20 = arith.constant 20 : index
    %c0_33 = arith.constant 0 : index
    %35 = vector.load %arg1[%c0_32, %c20, %c0_33] : memref<1x110x128xbf16, #tpu.memory_space<vmem>>, vector<1x80x128xbf16>
    %36 = vector.shape_cast %35 : vector<1x80x128xbf16> to vector<80x128xbf16>
    %c6 = arith.constant 6 : index
    %c0_34 = arith.constant 0 : index
    %c0_35 = arith.constant 0 : index
    %37 = vector.load %arg2[%c6, %c0_34, %c0_35] : memref<9x128x128xbf16, #tpu.memory_space<vmem>>, vector<1x128x128xbf16>
    %38 = vector.shape_cast %37 : vector<1x128x128xbf16> to vector<128x128xbf16>
    %cst_36 = arith.constant dense<0.000000e+00> : vector<80x128xf32>
    %39 = tpu.matmul %36, %38, %cst_36 {dimension_numbers = #tpu.dot_dimension_numbers<[1], [0], [0], [1], [0, 0, 1, 1], [], []>} : vector<80x128xbf16>, vector<128x128xbf16>, vector<80x128xf32> -> vector<80x128xf32>
    %40 = arith.addf %34, %39 : vector<80x128xf32>
    %c0_37 = arith.constant 0 : index
    %c21 = arith.constant 21 : index
    %c0_38 = arith.constant 0 : index
    %41 = vector.load %arg1[%c0_37, %c21, %c0_38] : memref<1x110x128xbf16, #tpu.memory_space<vmem>>, vector<1x80x128xbf16>
    %42 = vector.shape_cast %41 : vector<1x80x128xbf16> to vector<80x128xbf16>
    %c7 = arith.constant 7 : index
    %c0_39 = arith.constant 0 : index
    %c0_40 = arith.constant 0 : index
    %43 = vector.load %arg2[%c7, %c0_39, %c0_40] : memref<9x128x128xbf16, #tpu.memory_space<vmem>>, vector<1x128x128xbf16>
    %44 = vector.shape_cast %43 : vector<1x128x128xbf16> to vector<128x128xbf16>
    %cst_41 = arith.constant dense<0.000000e+00> : vector<80x128xf32>
    %45 = tpu.matmul %42, %44, %cst_41 {dimension_numbers = #tpu.dot_dimension_numbers<[1], [0], [0], [1], [0, 0, 1, 1], [], []>} : vector<80x128xbf16>, vector<128x128xbf16>, vector<80x128xf32> -> vector<80x128xf32>
    %46 = arith.addf %40, %45 : vector<80x128xf32>
    %c0_42 = arith.constant 0 : index
    %c22 = arith.constant 22 : index
    %c0_43 = arith.constant 0 : index
    %47 = vector.load %arg1[%c0_42, %c22, %c0_43] : memref<1x110x128xbf16, #tpu.memory_space<vmem>>, vector<1x80x128xbf16>
    %48 = vector.shape_cast %47 : vector<1x80x128xbf16> to vector<80x128xbf16>
    %c8 = arith.constant 8 : index
    %c0_44 = arith.constant 0 : index
    %c0_45 = arith.constant 0 : index
    %49 = vector.load %arg2[%c8, %c0_44, %c0_45] : memref<9x128x128xbf16, #tpu.memory_space<vmem>>, vector<1x128x128xbf16>
    %50 = vector.shape_cast %49 : vector<1x128x128xbf16> to vector<128x128xbf16>
    %cst_46 = arith.constant dense<0.000000e+00> : vector<80x128xf32>
    %51 = tpu.matmul %48, %50, %cst_46 {dimension_numbers = #tpu.dot_dimension_numbers<[1], [0], [0], [1], [0, 0, 1, 1], [], []>} : vector<80x128xbf16>, vector<128x128xbf16>, vector<80x128xf32> -> vector<80x128xf32>
    %52 = arith.addf %46, %51 : vector<80x128xf32>
    %c0_47 = arith.constant 0 : index
    %c0_48 = arith.constant 0 : index
    %53 = vector.load %arg3[%c0_47, %c0_48] : memref<80x128xf32, #tpu.memory_space<vmem>>, vector<80x128xf32>
    tpu.vector_store %arg3[%c0_47, %c0_48], %52 {strides = array<i32>} : memref<80x128xf32, #tpu.memory_space<vmem>>, vector<80x128xf32>,
    %54 = tpu.iota {dimensions = array<i32: 0>} : vector<80x128xi32>
    %c10_i32 = arith.constant 10 : i32
    %c0_i32 = arith.constant 0 : i32
    %55 = arith.cmpi eq, %c10_i32, %c0_i32 : i32
    %c1_i32 = arith.constant 1 : i32
    %56 = arith.select %55, %c1_i32, %c10_i32 : i32
    %57 = vector.broadcast %56 : i32 to vector<80x128xi32>
    %58 = arith.remsi %54, %57 : vector<80x128xi32>
    %c0_i32_49 = arith.constant 0 : i32
    %59 = vector.broadcast %c0_i32_49 : i32 to vector<80x128xi32>
    %60 = arith.cmpi ne, %58, %59 : vector<80x128xi32>
    %c0_i32_50 = arith.constant 0 : i32
    %61 = vector.broadcast %c0_i32_50 : i32 to vector<80x128xi32>
    %62 = arith.cmpi slt, %58, %61 : vector<80x128xi32>
    %c0_i32_51 = arith.constant 0 : i32
    %63 = arith.cmpi slt, %56, %c0_i32_51 : i32
    %64 = vector.broadcast %63 : i1 to vector<80x128xi1>
    %65 = vector.broadcast %64 : vector<80x128xi1> to vector<80x128xi1>
    %66 = arith.xori %62, %65 : vector<80x128xi1>
    %67 = arith.andi %66, %60 : vector<80x128xi1>
    %68 = vector.broadcast %56 : i32 to vector<80x128xi32>
    %69 = arith.addi %58, %68 : vector<80x128xi32>
    %70 = arith.select %67, %69, %58 : vector<80x128xi1>, vector<80x128xi32>
    %c8_i32 = arith.constant 8 : i32
    %71 = vector.broadcast %c8_i32 : i32 to vector<80x128xi32>
    %72 = arith.cmpi slt, %70, %71 : vector<80x128xi32>
    %c80_i32 = arith.constant 80 : i32
    %73 = vector.broadcast %c80_i32 : i32 to vector<80x128xi32>
    %74 = arith.cmpi slt, %54, %73 : vector<80x128xi32>
    %75 = arith.andi %72, %74 : vector<80x128xi1>
    %cst_52 = arith.constant 0.000000e+00 : f32
    %76 = vector.broadcast %cst_52 : f32 to vector<80x128xf32>
    %77 = arith.select %75, %52, %76 : vector<80x128xi1>, vector<80x128xf32>
    %cst_53 = arith.constant dense<0.000000e+00> : vector<128xf32>
    %78 = vector.multi_reduction <add>, %77, %cst_53 [0] : vector<80x128xf32> to vector<128xf32>
    %79 = vector.shape_cast %78 : vector<128xf32> to vector<1x128xf32>
    %80 = arith.mulf %77, %77 : vector<80x128xf32>
    %cst_54 = arith.constant dense<0.000000e+00> : vector<128xf32>
    %81 = vector.multi_reduction <add>, %80, %cst_54 [0] : vector<80x128xf32> to vector<128xf32>
    %82 = vector.shape_cast %81 : vector<128xf32> to vector<1x128xf32>
    %83 = tpu.concatenate %79, %82 in 0 : vector<1x128xf32>, vector<1x128xf32> -> vector<2x128xf32>
    %84 = vector.shape_cast %83 : vector<2x128xf32> to vector<1x2x128xf32>
    %c0_55 = arith.constant 0 : index
    %c0_56 = arith.constant 0 : index
    %c0_57 = arith.constant 0 : index
    %85 = vector.load %arg4[%c0_55, %c0_56, %c0_57] : memref<1x2x128xf32, #tpu.memory_space<vmem>>, vector<1x2x128xf32>
    tpu.vector_store %arg4[%c0_55, %c0_56, %c0_57], %84 {strides = array<i32>} : memref<1x2x128xf32, #tpu.memory_space<vmem>>, vector<1x2x128xf32>,
    return
  }
  func.func @transform_0(%arg0: i32) -> (i32, i32, i32) {
    %c0_i32 = arith.constant 0 : i32
    %c0_i32_0 = arith.constant 0 : i32
    %c0_i32_1 = arith.constant 0 : i32
    return %arg0, %c0_i32, %c0_i32_0 : i32, i32, i32
  }
  func.func @transform_1(%arg0: i32) -> (i32, i32, i32) {
    %c0_i32 = arith.constant 0 : i32
    %c0_i32_0 = arith.constant 0 : i32
    %c0_i32_1 = arith.constant 0 : i32
    %c0_i32_2 = arith.constant 0 : i32
    return %c0_i32, %c0_i32_0, %c0_i32_1 : i32, i32, i32
  }
  func.func @transform_2(%arg0: i32) -> (i32, i32) {
    %c0_i32 = arith.constant 0 : i32
    %c0_i32_0 = arith.constant 0 : i32
    return %arg0, %c0_i32 : i32, i32
  }
  func.func @transform_3(%arg0: i32) -> (i32, i32, i32) {
    %c0_i32 = arith.constant 0 : i32
    %c0_i32_0 = arith.constant 0 : i32
    %c0_i32_1 = arith.constant 0 : i32
    return %arg0, %c0_i32, %c0_i32_0 : i32, i32, i32
  }
}

module attributes {stable_mosaic.version = 11 : i64} {
  func.func @_finalize_kernel(%arg0: i32, %arg1: memref<80x128xf32, #tpu.memory_space<vmem>>, %arg2: memref<80x128xf32, #tpu.memory_space<vmem>>, %arg3: memref<4x128xf32, #tpu.memory_space<vmem>>, %arg4: memref<80x128xf32, #tpu.memory_space<vmem>>) attributes {dimension_semantics = [#tpu.dimension_semantics<parallel>], iteration_bounds = array<i64: 2>, scalar_prefetch = 0 : i64, scratch_operands = 0 : i64, tpu.core_type = #tpu.core_type<tc>, window_params = [{transform_indices = @transform_0, window_bounds = array<i64: 80, 128>}, {transform_indices = @transform_1, window_bounds = array<i64: 80, 128>}, {pipeline_mode = #tpu.pipeline_mode<synchronous>, transform_indices = @transform_2, window_bounds = array<i64: 4, 128>}, {transform_indices = @transform_3, window_bounds = array<i64: 80, 128>}]} {
    %c0 = arith.constant 0 : index
    %c0_0 = arith.constant 0 : index
    %0 = vector.load %arg3[%c0, %c0_0] : memref<4x128xf32, #tpu.memory_space<vmem>>, vector<4x128xf32>
    %c0_1 = arith.constant 0 : index
    %c0_2 = arith.constant 0 : index
    %1 = vector.load %arg1[%c0_1, %c0_2] : memref<80x128xf32, #tpu.memory_space<vmem>>, vector<80x128xf32>
    %2 = vector.extract_strided_slice %0 {offsets = [0, 0], sizes = [1, 128], strides = [1, 1]} : vector<4x128xf32> to vector<1x128xf32>
    %3 = vector.broadcast %2 : vector<1x128xf32> to vector<80x128xf32>
    %4 = arith.mulf %1, %3 : vector<80x128xf32>
    %5 = vector.extract_strided_slice %0 {offsets = [1, 0], sizes = [1, 128], strides = [1, 1]} : vector<4x128xf32> to vector<1x128xf32>
    %6 = vector.broadcast %5 : vector<1x128xf32> to vector<80x128xf32>
    %7 = arith.addf %4, %6 : vector<80x128xf32>
    %c0_3 = arith.constant 0 : index
    %c0_4 = arith.constant 0 : index
    %8 = vector.load %arg2[%c0_3, %c0_4] : memref<80x128xf32, #tpu.memory_space<vmem>>, vector<80x128xf32>
    %9 = vector.extract_strided_slice %0 {offsets = [2, 0], sizes = [1, 128], strides = [1, 1]} : vector<4x128xf32> to vector<1x128xf32>
    %10 = vector.broadcast %9 : vector<1x128xf32> to vector<80x128xf32>
    %11 = arith.mulf %8, %10 : vector<80x128xf32>
    %12 = arith.addf %7, %11 : vector<80x128xf32>
    %13 = vector.extract_strided_slice %0 {offsets = [3, 0], sizes = [1, 128], strides = [1, 1]} : vector<4x128xf32> to vector<1x128xf32>
    %14 = vector.broadcast %13 : vector<1x128xf32> to vector<80x128xf32>
    %15 = arith.addf %12, %14 : vector<80x128xf32>
    %cst = arith.constant 0.000000e+00 : f32
    %16 = vector.broadcast %cst : f32 to vector<80x128xf32>
    %17 = arith.maximumf %15, %16 : vector<80x128xf32>
    %c0_5 = arith.constant 0 : index
    %c0_6 = arith.constant 0 : index
    %18 = vector.load %arg4[%c0_5, %c0_6] : memref<80x128xf32, #tpu.memory_space<vmem>>, vector<80x128xf32>
    tpu.vector_store %arg4[%c0_5, %c0_6], %17 {strides = array<i32>} : memref<80x128xf32, #tpu.memory_space<vmem>>, vector<80x128xf32>,
    return
  }
  func.func @transform_0(%arg0: i32) -> (i32, i32) {
    %c0_i32 = arith.constant 0 : i32
    %c0_i32_0 = arith.constant 0 : i32
    return %arg0, %c0_i32 : i32, i32
  }
  func.func @transform_1(%arg0: i32) -> (i32, i32) {
    %c0_i32 = arith.constant 0 : i32
    %c0_i32_0 = arith.constant 0 : i32
    return %arg0, %c0_i32 : i32, i32
  }
  func.func @transform_2(%arg0: i32) -> (i32, i32) {
    %c0_i32 = arith.constant 0 : i32
    %c0_i32_0 = arith.constant 0 : i32
    %c0_i32_1 = arith.constant 0 : i32
    return %c0_i32, %c0_i32_0 : i32, i32
  }
  func.func @transform_3(%arg0: i32) -> (i32, i32) {
    %c0_i32 = arith.constant 0 : i32
    %c0_i32_0 = arith.constant 0 : i32
    return %arg0, %c0_i32 : i32, i32
  }
}

</mosaic_0001>

<llo_original>
// kernel: _residual_block.5
$region0: #{_residual_block.5}
  #allocation0 [shape = 'u32[]', space=smem, size = 0x4, offset = 0x4, fixed_abs, tag = 'smem constant byte address 0x4 - core index']
  #allocation1 [shape = 'u32[144,128]{1,0:T(1,128)}', space=vmem, size = 0x12000, scoped, tag = 'internal scratch']
  %s0 = inlined_call_operand.vmem [shape: f32[160,128], index: 0, kind: input, shape index: {}]
  %s1 = inlined_call_operand.vmem [shape: f32[160,128], index: 1, kind: input, shape index: {}]
  %s2 = inlined_call_operand.vmem [shape: f32[4,128], index: 2, kind: input, shape index: {}]
  %s3 = inlined_call_operand.vmem [shape: f32[160,128], index: 3, kind: output, shape index: {}]
  %s4 = sld [smem:[#allocation0]]
  $region45: #{_residual_block.5} parent=0
    _
  %s6 = ssub.s32 1, %s4
  %s7 = scalar_select 0, %s6, %s4
  loop: start=0, step=1, limit=4
  $region2: #{_residual_block.5} parent=0 // loop_pre_header
    _
  $region3: #{_residual_block.5} parent=0 // loop_header
    %s9 = sphi 0, %s13
    %p10 = scmp.ge.s32.totalorder %s9, 4
    %s19 = sphi 0, %s21
    %s22 = sphi 0, %s19
    %s23 = sphi 0, %s22
    %s39 = sphi 0, %s23
    %s45 = sphi 0, %s47
    %s48 = sphi 0, %s45
    %s49 = sphi 0, %s48
    %s65 = sphi 0, %s49
    %s69 = sphi 0, %s69
    %s71 = sphi 0, %s69
    %s72 = sphi 0, %s71
    %s86 = sphi 0, %s72
    %s92 = sphi 0, %s94
    %s95 = sphi 0, %s92
    %s96 = sphi 0, %s95
    %s112 = sphi 0, %s96
  $region4: #{_residual_block.5} parent=0 // loop_header_branch
    %12 = sbr.rel (%p10) target = $region8
  $region5: #{_residual_block.5} parent=0 // loop_body
    %s14 = ssub.s32 %s9, 1
    %s15 = ssub.s32 %s9, 2
    %s16 = sadd.s32 %s9, 1
    %s17 = ssub.s32 %s9, %s16
    %p18 = scmp.eq.s32.totalorder %s17, 0
    %s20 = sadd.s32 %s19, 1
    %s21 = scalar_select %p18, %s19, %s20
    %p24 = pneg %p18
    %p25 = scmp.eq.s32.totalorder %s9, 1
    %p26 = por %p24, %p25
    %p27 = scmp.ne.s32.totalorder %s19, %s22
    %p28 = scmp.eq.s32.totalorder %s9, 0
    %p29 = por %p27, %p28
    %p30 = scmp.ne.s32.totalorder %s19, %s22
    %p31 = scmp.eq.s32.totalorder %s14, 1
    %p32 = por %p30, %p31
    %p33 = scmp.ne.s32.totalorder %s22, %s23
    %p34 = scmp.eq.s32.totalorder %s14, 0
    %p35 = por %p33, %p34
    %p36 = scmp.ne.s32.totalorder %s22, %s23
    %p37 = scmp.eq.s32.totalorder %s15, 1
    %p38 = por %p36, %p37
    %p40 = scmp.ne.s32.totalorder %s23, %s39
    %p41 = scmp.eq.s32.totalorder %s15, 0
    %p42 = por %p40, %p41
    %s43 = ssub.s32 %s9, %s16
    %p44 = scmp.eq.s32.totalorder %s43, 0
    %s46 = sadd.s32 %s45, 1
    %s47 = scalar_select %p44, %s45, %s46
    %p50 = pneg %p44
    %p51 = scmp.eq.s32.totalorder %s9, 1
    %p52 = por %p50, %p51
    %p53 = scmp.ne.s32.totalorder %s45, %s48
    %p54 = scmp.eq.s32.totalorder %s9, 0
    %p55 = por %p53, %p54
    %p56 = scmp.ne.s32.totalorder %s45, %s48
    %p57 = scmp.eq.s32.totalorder %s14, 1
    %p58 = por %p56, %p57
    %p59 = scmp.ne.s32.totalorder %s48, %s49
    %p60 = scmp.eq.s32.totalorder %s14, 0
    %p61 = por %p59, %p60
    %p62 = scmp.ne.s32.totalorder %s48, %s49
    %p63 = scmp.eq.s32.totalorder %s15, 1
    %p64 = por %p62, %p63
    %p66 = scmp.ne.s32.totalorder %s49, %s65
    %p67 = scmp.eq.s32.totalorder %s15, 0
    %p68 = por %p66, %p67
    %s70 = sadd.s32 %s69, 1
    %p73 = scmp.eq.s32.totalorder %s9, 1
    %p74 = scmp.ne.s32.totalorder %s69, %s71
    %p75 = scmp.eq.s32.totalorder %s9, 0
    %p76 = por %p74, %p75
    %p77 = scmp.ne.s32.totalorder %s69, %s71
    %p78 = scmp.eq.s32.totalorder %s14, 1
    %p79 = por %p77, %p78
    %p80 = scmp.ne.s32.totalorder %s71, %s72
    %p81 = scmp.eq.s32.totalorder %s14, 0
    %p82 = por %p80, %p81
    %p83 = scmp.ne.s32.totalorder %s71, %s72
    %p84 = scmp.eq.s32.totalorder %s15, 1
    %p85 = por %p83, %p84
    %p87 = scmp.ne.s32.totalorder %s72, %s86
    %p88 = scmp.eq.s32.totalorder %s15, 0
    %p89 = por %p87, %p88
    %s90 = ssub.s32 %s9, %s16
    %p91 = scmp.eq.s32.totalorder %s90, 0
    %s93 = sadd.s32 %s92, 1
    %s94 = scalar_select %p91, %s92, %s93
    %p97 = pneg %p91
    %p98 = scmp.eq.s32.totalorder %s9, 1
    %p99 = por %p97, %p98
    %p100 = scmp.ne.s32.totalorder %s92, %s95
    %p101 = scmp.eq.s32.totalorder %s9, 0
    %p102 = por %p100, %p101
    %p103 = scmp.ne.s32.totalorder %s92, %s95
    %p104 = scmp.eq.s32.totalorder %s14, 1
    %p105 = por %p103, %p104
    %p106 = scmp.ne.s32.totalorder %s95, %s96
    %p107 = scmp.eq.s32.totalorder %s14, 0
    %p108 = por %p106, %p107
    %p109 = scmp.ne.s32.totalorder %s95, %s96
    %p110 = scmp.eq.s32.totalorder %s15, 1
    %p111 = por %p109, %p110
    %p113 = scmp.ne.s32.totalorder %s96, %s112
    %p114 = scmp.eq.s32.totalorder %s15, 0
    %p115 = por %p113, %p114
    %p116 = scmp.le.s32.totalorder 1, %s9
    %p117 = scmp.lt.s32.totalorder %s9, 3
    %p118 = pnand %p116, %p117
    %p119 = pneg %p118
    // Predicated region
    $region9: #{_residual_block.5} parent=5 // pred_check
      _
    $region10: #{_residual_block.5} parent=5 // pred_check_branch
      %121 = sbr.rel (%p118) target = $region12
    $region11: #{_residual_block.5} parent=5 // pred_region
      %s122 = ssub.s32 %s9, 1
      // Predicated region
      $region13: #{_residual_block.5} parent=11 // pred_check
        %p123 = pneg %p82
      $region14: #{_residual_block.5} parent=11 // pred_check_branch
        %125 = sbr.rel (%p123) target = $region16
      $region15: #{_residual_block.5} parent=11 // pred_region
        _
      $region16: #{_residual_block.5} parent=11 // pred_fallthru
        _
    $region12: #{_residual_block.5} parent=5 // pred_fallthru
      _
    %p126 = scmp.lt.s32.totalorder %s9, 2
    // Predicated region
    $region17: #{_residual_block.5} parent=5 // pred_check
      %p127 = pneg %p126
    $region18: #{_residual_block.5} parent=5 // pred_check_branch
      %129 = sbr.rel (%p127) target = $region20
    $region19: #{_residual_block.5} parent=5 // pred_region
      // Predicated region
      $region21: #{_residual_block.5} parent=19 // pred_check
        %p130 = pneg %p29
      $region22: #{_residual_block.5} parent=19 // pred_check_branch
        %132 = sbr.rel (%p130) target = $region24
      $region23: #{_residual_block.5} parent=19 // pred_region
        %s133 = smul.u32 10, %s9
        %p134 = scmp.lt.s32.totalorder %s133, 19
        %s135 = scalar_select %p134, %s133, 19
        %s136 = smul.addr %s135, 8
        %s137 = scalar_lea.vmem %s0, %s136
        %s138 = smul.u32 10, %s9
      $region24: #{_residual_block.5} parent=19 // pred_fallthru
        _
      // Predicated region
      $region25: #{_residual_block.5} parent=19 // pred_check
        %p139 = pneg %p55
      $region26: #{_residual_block.5} parent=19 // pred_check_branch
        %141 = sbr.rel (%p139) target = $region28
      $region27: #{_residual_block.5} parent=19 // pred_region
        %s142 = smul.u32 10, %s9
        %p143 = scmp.lt.s32.totalorder %s142, 19
        %s144 = scalar_select %p143, %s142, 19
        %s145 = smul.addr %s144, 8
        %s146 = scalar_lea.vmem %s1, %s145
        %s147 = smul.u32 10, %s9
      $region28: #{_residual_block.5} parent=19 // pred_fallthru
        _
    $region20: #{_residual_block.5} parent=5 // pred_fallthru
      _
    %p148 = scmp.le.s32.totalorder 1, %s9
    %p149 = scmp.lt.s32.totalorder %s9, 3
    %p150 = pnand %p148, %p149
    %p151 = pneg %p150
    // Predicated region
    $region29: #{_residual_block.5} parent=5 // pred_check
      _
    $region30: #{_residual_block.5} parent=5 // pred_check_branch
      %153 = sbr.rel (%p150) target = $region32
    $region31: #{_residual_block.5} parent=5 // pred_region
      %s154 = ssub.s32 %s9, 1
      %s155 = smul.u32 10, %s14
      %p156 = scmp.lt.s32.totalorder %s155, 19
      %s157 = scalar_select %p156, %s155, 19
      %s158 = smul.addr %s157, 8
      %s159 = scalar_lea.vmem %s0, %s158
      %p160 = pneg %p35
      %p161 = pneg %p32
      %s162 = smul.u32 10, %s14
      %p163 = scmp.lt.s32.totalorder %s162, 19
      %s164 = scalar_select %p163, %s162, 19
      %s165 = smul.addr %s164, 8
      %s166 = scalar_lea.vmem %s1, %s165
      %p167 = pneg %p61
      %p168 = pneg %p58
      %p169 = pneg %p82
      %p170 = pneg %p79
      %p171 = pneg %p108
      %p172 = pneg %p105
      %s173 = smul.u32 10, %s14
      %p174 = scmp.lt.s32.totalorder %s173, 19
      %s175 = scalar_select %p174, %s173, 19
      %s176 = smul.addr %s175, 8
      %s177 = scalar_lea.vmem %s3, %s176
      %s178 = smul.u32 10, %s14
      %p179 = scmp.lt.s32.totalorder %s178, 19
      %s180 = scalar_select %p179, %s178, 19
      %s181 = smul.addr %s180, 8
      %s182 = scalar_lea.vmem %s0, %s181
      %s183 = smul.u32 10, %s14
      %s184 = smul.u32 10, %s14
      %p185 = scmp.lt.s32.totalorder %s184, 19
      %s186 = scalar_select %p185, %s184, 19
      %s187 = smul.addr %s186, 8
      %s188 = scalar_lea.vmem %s1, %s187
      %s189 = smul.u32 10, %s14
      %s190 = smul.u32 10, %s14
      %p191 = scmp.lt.s32.totalorder %s190, 19
      %s192 = scalar_select %p191, %s190, 19
      %s193 = smul.addr %s192, 8
      %s194 = scalar_lea.vmem %s3, %s193
      %s195 = smul.u32 10, %s14
      %v196 = vld [vmem:[%s2] sm:$0xf]
      %v197 = vld [vmem:[%s182] sm:$0xff]
      %v198 = vld [vmem:[%s182 + $0x8] sm:$0xff]
      %v199 = vld [vmem:[%s182 + $0x10] sm:$0xff]
      %v200 = vld [vmem:[%s182 + $0x18] sm:$0xff]
      %v201 = vld [vmem:[%s182 + $0x20] sm:$0xff]
      %v202 = vld [vmem:[%s182 + $0x28] sm:$0xff]
      %v203 = vld [vmem:[%s182 + $0x30] sm:$0xff]
      %v204 = vld [vmem:[%s182 + $0x38] sm:$0xff]
      %v205 = vld [vmem:[%s182 + $0x40] sm:$0xff]
      %v206 = vld [vmem:[%s182 + $0x48] sm:$0xff]
      %v207 = vlaneseq
      %v208 = vshrl.u32 %v207, 7
      %v209 = vsub.s32 0, %v208
      %v210 = vrot.slane %v196, %v209
      %v211 = vmul.f32 %v197, %v210
      %v212 = vmul.f32 %v198, %v210
      %v213 = vmul.f32 %v199, %v210
      %v214 = vmul.f32 %v200, %v210
      %v215 = vmul.f32 %v201, %v210
      %v216 = vmul.f32 %v202, %v210
      %v217 = vmul.f32 %v203, %v210
      %v218 = vmul.f32 %v204, %v210
      %v219 = vmul.f32 %v205, %v210
      %v220 = vmul.f32 %v206, %v210
      %v221 = vlaneseq
      %v222 = vshrl.u32 %v221, 7
      %v223 = vsub.s32 1, %v222
      %v224 = vrot.slane %v196, %v223
      %v225 = vadd.f32 %v211, %v224
      %v226 = vadd.f32 %v212, %v224
      %v227 = vadd.f32 %v213, %v224
      %v228 = vadd.f32 %v214, %v224
      %v229 = vadd.f32 %v215, %v224
      %v230 = vadd.f32 %v216, %v224
      %v231 = vadd.f32 %v217, %v224
      %v232 = vadd.f32 %v218, %v224
      %v233 = vadd.f32 %v219, %v224
      %v234 = vadd.f32 %v220, %v224
      %v235 = vld [vmem:[%s188] sm:$0xff]
      %v236 = vld [vmem:[%s188 + $0x8] sm:$0xff]
      %v237 = vld [vmem:[%s188 + $0x10] sm:$0xff]
      %v238 = vld [vmem:[%s188 + $0x18] sm:$0xff]
      %v239 = vld [vmem:[%s188 + $0x20] sm:$0xff]
      %v240 = vld [vmem:[%s188 + $0x28] sm:$0xff]
      %v241 = vld [vmem:[%s188 + $0x30] sm:$0xff]
      %v242 = vld [vmem:[%s188 + $0x38] sm:$0xff]
      %v243 = vld [vmem:[%s188 + $0x40] sm:$0xff]
      %v244 = vld [vmem:[%s188 + $0x48] sm:$0xff]
      %v245 = vlaneseq
      %v246 = vshrl.u32 %v245, 7
      %v247 = vsub.s32 2, %v246
      %v248 = vrot.slane %v196, %v247
      %v249 = vmul.f32 %v235, %v248
      %v250 = vmul.f32 %v236, %v248
      %v251 = vmul.f32 %v237, %v248
      %v252 = vmul.f32 %v238, %v248
      %v253 = vmul.f32 %v239, %v248
      %v254 = vmul.f32 %v240, %v248
      %v255 = vmul.f32 %v241, %v248
      %v256 = vmul.f32 %v242, %v248
      %v257 = vmul.f32 %v243, %v248
      %v258 = vmul.f32 %v244, %v248
      %v259 = vadd.f32 %v225, %v249
      %v260 = vadd.f32 %v226, %v250
      %v261 = vadd.f32 %v227, %v251
      %v262 = vadd.f32 %v228, %v252
      %v263 = vadd.f32 %v229, %v253
      %v264 = vadd.f32 %v230, %v254
      %v265 = vadd.f32 %v231, %v255
      %v266 = vadd.f32 %v232, %v256
      %v267 = vadd.f32 %v233, %v257
      %v268 = vadd.f32 %v234, %v258
      %v269 = vlaneseq
      %v270 = vshrl.u32 %v269, 7
      %v271 = vsub.s32 3, %v270
      %v272 = vrot.slane %v196, %v271
      %v273 = vadd.f32 %v259, %v272
      %v274 = vadd.f32 %v260, %v272
      %v275 = vadd.f32 %v261, %v272
      %v276 = vadd.f32 %v262, %v272
      %v277 = vadd.f32 %v263, %v272
      %v278 = vadd.f32 %v264, %v272
      %v279 = vadd.f32 %v265, %v272
      %v280 = vadd.f32 %v266, %v272
      %v281 = vadd.f32 %v267, %v272
      %v282 = vadd.f32 %v268, %v272
      %v283 = vmax.f32 %v273, 0.0
      %v284 = vmax.f32 %v274, 0.0
      %v285 = vmax.f32 %v275, 0.0
      %v286 = vmax.f32 %v276, 0.0
      %v287 = vmax.f32 %v277, 0.0
      %v288 = vmax.f32 %v278, 0.0
      %v289 = vmax.f32 %v279, 0.0
      %v290 = vmax.f32 %v280, 0.0
      %v291 = vmax.f32 %v281, 0.0
      %v292 = vmax.f32 %v282, 0.0
      %293 = vst [vmem:[%s194] sm:$0xff] %v283
      %294 = vst [vmem:[%s194 + $0x8] sm:$0xff] %v284
      %295 = vst [vmem:[%s194 + $0x10] sm:$0xff] %v285
      %296 = vst [vmem:[%s194 + $0x18] sm:$0xff] %v286
      %297 = vst [vmem:[%s194 + $0x20] sm:$0xff] %v287
      %298 = vst [vmem:[%s194 + $0x28] sm:$0xff] %v288
      %299 = vst [vmem:[%s194 + $0x30] sm:$0xff] %v289
      %300 = vst [vmem:[%s194 + $0x38] sm:$0xff] %v290
      %301 = vst [vmem:[%s194 + $0x40] sm:$0xff] %v291
      %302 = vst [vmem:[%s194 + $0x48] sm:$0xff] %v292
      %s303 = smul.u32 10, %s14
      %p304 = scmp.lt.s32.totalorder %s303, 19
      %s305 = scalar_select %p304, %s303, 19
      %s306 = smul.addr %s305, 8
      %s307 = scalar_lea.vmem %s3, %s306
      // Predicated region
      $region33: #{_residual_block.5} parent=31 // pred_check
        %p308 = pneg %p105
      $region34: #{_residual_block.5} parent=31 // pred_check_branch
        %310 = sbr.rel (%p308) target = $region36
      $region35: #{_residual_block.5} parent=31 // pred_region
        %s311 = smul.u32 10, %s14
      $region36: #{_residual_block.5} parent=31 // pred_fallthru
        _
    $region32: #{_residual_block.5} parent=5 // pred_fallthru
      _
    %p312 = scmp.le.s32.totalorder 2, %s9
    // Predicated region
    $region37: #{_residual_block.5} parent=5 // pred_check
      %p313 = pneg %p312
    $region38: #{_residual_block.5} parent=5 // pred_check_branch
      %315 = sbr.rel (%p313) target = $region40
    $region39: #{_residual_block.5} parent=5 // pred_region
      %s316 = ssub.s32 %s9, 2
      // Predicated region
      $region41: #{_residual_block.5} parent=39 // pred_check
        %p317 = pneg %p111
      $region42: #{_residual_block.5} parent=39 // pred_check_branch
        %319 = sbr.rel (%p317) target = $region44
      $region43: #{_residual_block.5} parent=39 // pred_region
        %s320 = smul.u32 10, %s15
        %p321 = scmp.lt.s32.totalorder %s320, 19
        %s322 = scalar_select %p321, %s320, 19
        %s323 = smul.addr %s322, 8
        %s324 = scalar_lea.vmem %s3, %s323
      $region44: #{_residual_block.5} parent=39 // pred_fallthru
        _
    $region40: #{_residual_block.5} parent=5 // pred_fallthru
      _
  $region6: #{_residual_block.5} parent=0 // loop_footer
    %s13 = sadd.s32 1, %s9
  $region7: #{_residual_block.5} parent=0 // loop_footer_branch
    %8 = sbr.rel target = $region3
  $region8: #{_residual_block.5} parent=0 // loop_exit
    _

// kernel: _residual_block.3
$region0: #{_residual_block.3}
  #allocation0 [shape = 'u32[]', space=smem, size = 0x4, offset = 0x4, fixed_abs, tag = 'smem constant byte address 0x4 - core index']
  #allocation1 [shape = 'u32[144,128]{1,0:T(1,128)}', space=vmem, size = 0x12000, scoped, tag = 'internal scratch']
  %s0 = inlined_call_operand.vmem [shape: bf16[2,400,4], index: 0, kind: input, shape index: {}]
  %s1 = inlined_call_operand.vmem [shape: bf16[9,4,128], index: 1, kind: input, shape index: {}]
  %s2 = inlined_call_operand.vmem [shape: bf16[4,128], index: 2, kind: input, shape index: {}]
  %s3 = inlined_call_operand.vmem [shape: f32[160,128], index: 3, kind: output, shape index: {0}]
  %s4 = inlined_call_operand.vmem [shape: f32[160,128], index: 4, kind: output, shape index: {1}]
  %s5 = inlined_call_operand.vmem [shape: f32[2,4,128], index: 5, kind: output, shape index: {2}]
  %6 = xla_tuple %s3, %s4, %s5
  %s7 = sld [smem:[#allocation0]]
  $region61: #{_residual_block.3} parent=0
    _
  %s9 = ssub.s32 1, %s7
  %s10 = scalar_select 0, %s9, %s7
  loop: start=0, step=1, limit=4
  $region2: #{_residual_block.3} parent=0 // loop_pre_header
    _
  $region3: #{_residual_block.3} parent=0 // loop_header
    %s12 = sphi 0, %s16
    %p13 = scmp.ge.s32.totalorder %s12, 4
    %s22 = sphi 0, %s24
    %s25 = sphi 0, %s22
    %s26 = sphi 0, %s25
    %s42 = sphi 0, %s26
    %s46 = sphi 0, %s46
    %s48 = sphi 0, %s46
    %s49 = sphi 0, %s48
    %s63 = sphi 0, %s49
    %s67 = sphi 0, %s67
    %s69 = sphi 0, %s67
    %s70 = sphi 0, %s69
    %s84 = sphi 0, %s70
    %s90 = sphi 0, %s92
    %s93 = sphi 0, %s90
    %s94 = sphi 0, %s93
    %s110 = sphi 0, %s94
    %s116 = sphi 0, %s118
    %s119 = sphi 0, %s116
    %s120 = sphi 0, %s119
    %s136 = sphi 0, %s120
    %s142 = sphi 0, %s144
    %s145 = sphi 0, %s142
    %s146 = sphi 0, %s145
    %s162 = sphi 0, %s146
  $region4: #{_residual_block.3} parent=0 // loop_header_branch
    %15 = sbr.rel (%p13) target = $region8
  $region5: #{_residual_block.3} parent=0 // loop_body
    %s17 = ssub.s32 %s12, 1
    %s18 = ssub.s32 %s12, 2
    %s19 = sadd.s32 %s12, 1
    %s20 = ssub.s32 %s12, %s19
    %p21 = scmp.eq.s32.totalorder %s20, 0
    %s23 = sadd.s32 %s22, 1
    %s24 = scalar_select %p21, %s22, %s23
    %p27 = pneg %p21
    %p28 = scmp.eq.s32.totalorder %s12, 1
    %p29 = por %p27, %p28
    %p30 = scmp.ne.s32.totalorder %s22, %s25
    %p31 = scmp.eq.s32.totalorder %s12, 0
    %p32 = por %p30, %p31
    %p33 = scmp.ne.s32.totalorder %s22, %s25
    %p34 = scmp.eq.s32.totalorder %s17, 1
    %p35 = por %p33, %p34
    %p36 = scmp.ne.s32.totalorder %s25, %s26
    %p37 = scmp.eq.s32.totalorder %s17, 0
    %p38 = por %p36, %p37
    %p39 = scmp.ne.s32.totalorder %s25, %s26
    %p40 = scmp.eq.s32.totalorder %s18, 1
    %p41 = por %p39, %p40
    %p43 = scmp.ne.s32.totalorder %s26, %s42
    %p44 = scmp.eq.s32.totalorder %s18, 0
    %p45 = por %p43, %p44
    %s47 = sadd.s32 %s46, 1
    %p50 = scmp.eq.s32.totalorder %s12, 1
    %p51 = scmp.ne.s32.totalorder %s46, %s48
    %p52 = scmp.eq.s32.totalorder %s12, 0
    %p53 = por %p51, %p52
    %p54 = scmp.ne.s32.totalorder %s46, %s48
    %p55 = scmp.eq.s32.totalorder %s17, 1
    %p56 = por %p54, %p55
    %p57 = scmp.ne.s32.totalorder %s48, %s49
    %p58 = scmp.eq.s32.totalorder %s17, 0
    %p59 = por %p57, %p58
    %p60 = scmp.ne.s32.totalorder %s48, %s49
    %p61 = scmp.eq.s32.totalorder %s18, 1
    %p62 = por %p60, %p61
    %p64 = scmp.ne.s32.totalorder %s49, %s63
    %p65 = scmp.eq.s32.totalorder %s18, 0
    %p66 = por %p64, %p65
    %s68 = sadd.s32 %s67, 1
    %p71 = scmp.eq.s32.totalorder %s12, 1
    %p72 = scmp.ne.s32.totalorder %s67, %s69
    %p73 = scmp.eq.s32.totalorder %s12, 0
    %p74 = por %p72, %p73
    %p75 = scmp.ne.s32.totalorder %s67, %s69
    %p76 = scmp.eq.s32.totalorder %s17, 1
    %p77 = por %p75, %p76
    %p78 = scmp.ne.s32.totalorder %s69, %s70
    %p79 = scmp.eq.s32.totalorder %s17, 0
    %p80 = por %p78, %p79
    %p81 = scmp.ne.s32.totalorder %s69, %s70
    %p82 = scmp.eq.s32.totalorder %s18, 1
    %p83 = por %p81, %p82
    %p85 = scmp.ne.s32.totalorder %s70, %s84
    %p86 = scmp.eq.s32.totalorder %s18, 0
    %p87 = por %p85, %p86
    %s88 = ssub.s32 %s12, %s19
    %p89 = scmp.eq.s32.totalorder %s88, 0
    %s91 = sadd.s32 %s90, 1
    %s92 = scalar_select %p89, %s90, %s91
    %p95 = pneg %p89
    %p96 = scmp.eq.s32.totalorder %s12, 1
    %p97 = por %p95, %p96
    %p98 = scmp.ne.s32.totalorder %s90, %s93
    %p99 = scmp.eq.s32.totalorder %s12, 0
    %p100 = por %p98, %p99
    %p101 = scmp.ne.s32.totalorder %s90, %s93
    %p102 = scmp.eq.s32.totalorder %s17, 1
    %p103 = por %p101, %p102
    %p104 = scmp.ne.s32.totalorder %s93, %s94
    %p105 = scmp.eq.s32.totalorder %s17, 0
    %p106 = por %p104, %p105
    %p107 = scmp.ne.s32.totalorder %s93, %s94
    %p108 = scmp.eq.s32.totalorder %s18, 1
    %p109 = por %p107, %p108
    %p111 = scmp.ne.s32.totalorder %s94, %s110
    %p112 = scmp.eq.s32.totalorder %s18, 0
    %p113 = por %p111, %p112
    %s114 = ssub.s32 %s12, %s19
    %p115 = scmp.eq.s32.totalorder %s114, 0
    %s117 = sadd.s32 %s116, 1
    %s118 = scalar_select %p115, %s116, %s117
    %p121 = pneg %p115
    %p122 = scmp.eq.s32.totalorder %s12, 1
    %p123 = por %p121, %p122
    %p124 = scmp.ne.s32.totalorder %s116, %s119
    %p125 = scmp.eq.s32.totalorder %s12, 0
    %p126 = por %p124, %p125
    %p127 = scmp.ne.s32.totalorder %s116, %s119
    %p128 = scmp.eq.s32.totalorder %s17, 1
    %p129 = por %p127, %p128
    %p130 = scmp.ne.s32.totalorder %s119, %s120
    %p131 = scmp.eq.s32.totalorder %s17, 0
    %p132 = por %p130, %p131
    %p133 = scmp.ne.s32.totalorder %s119, %s120
    %p134 = scmp.eq.s32.totalorder %s18, 1
    %p135 = por %p133, %p134
    %p137 = scmp.ne.s32.totalorder %s120, %s136
    %p138 = scmp.eq.s32.totalorder %s18, 0
    %p139 = por %p137, %p138
    %s140 = ssub.s32 %s12, %s19
    %p141 = scmp.eq.s32.totalorder %s140, 0
    %s143 = sadd.s32 %s142, 1
    %s144 = scalar_select %p141, %s142, %s143
    %p147 = pneg %p141
    %p148 = scmp.eq.s32.totalorder %s12, 1
    %p149 = por %p147, %p148
    %p150 = scmp.ne.s32.totalorder %s142, %s145
    %p151 = scmp.eq.s32.totalorder %s12, 0
    %p152 = por %p150, %p151
    %p153 = scmp.ne.s32.totalorder %s142, %s145
    %p154 = scmp.eq.s32.totalorder %s17, 1
    %p155 = por %p153, %p154
    %p156 = scmp.ne.s32.totalorder %s145, %s146
    %p157 = scmp.eq.s32.totalorder %s17, 0
    %p158 = por %p156, %p157
    %p159 = scmp.ne.s32.totalorder %s145, %s146
    %p160 = scmp.eq.s32.totalorder %s18, 1
    %p161 = por %p159, %p160
    %p163 = scmp.ne.s32.totalorder %s146, %s162
    %p164 = scmp.eq.s32.totalorder %s18, 0
    %p165 = por %p163, %p164
    %p166 = scmp.le.s32.totalorder 1, %s12
    %p167 = scmp.lt.s32.totalorder %s12, 3
    %p168 = pnand %p166, %p167
    %p169 = pneg %p168
    // Predicated region
    $region9: #{_residual_block.3} parent=5 // pred_check
      _
    $region10: #{_residual_block.3} parent=5 // pred_check_branch
      %171 = sbr.rel (%p168) target = $region12
    $region11: #{_residual_block.3} parent=5 // pred_region
      %s172 = ssub.s32 %s12, 1
      // Predicated region
      $region13: #{_residual_block.3} parent=11 // pred_check
        %p173 = pneg %p59
      $region14: #{_residual_block.3} parent=11 // pred_check_branch
        %175 = sbr.rel (%p173) target = $region16
      $region15: #{_residual_block.3} parent=11 // pred_region
        _
      $region16: #{_residual_block.3} parent=11 // pred_fallthru
        _
      // Predicated region
      $region17: #{_residual_block.3} parent=11 // pred_check
        %p176 = pneg %p80
      $region18: #{_residual_block.3} parent=11 // pred_check_branch
        %178 = sbr.rel (%p176) target = $region20
      $region19: #{_residual_block.3} parent=11 // pred_region
        _
      $region20: #{_residual_block.3} parent=11 // pred_fallthru
        _
    $region12: #{_residual_block.3} parent=5 // pred_fallthru
      _
    %p179 = scmp.lt.s32.totalorder %s12, 2
    // Predicated region
    $region21: #{_residual_block.3} parent=5 // pred_check
      %p180 = pneg %p179
    $region22: #{_residual_block.3} parent=5 // pred_check_branch
      %182 = sbr.rel (%p180) target = $region24
    $region23: #{_residual_block.3} parent=5 // pred_region
      // Predicated region
      $region25: #{_residual_block.3} parent=23 // pred_check
        %p183 = pneg %p32
      $region26: #{_residual_block.3} parent=23 // pred_check_branch
        %185 = sbr.rel (%p183) target = $region28
      $region27: #{_residual_block.3} parent=23 // pred_region
        %p186 = scmp.lt.s32.totalorder %s12, 1
        %s187 = scalar_select %p186, %s12, 1
        %s188 = smul.addr %s187, 50
        %s189 = smul.addr %s188, 4
        %s190 = scalar_lea.vmem %s0, %s189
      $region28: #{_residual_block.3} parent=23 // pred_fallthru
        _
    $region24: #{_residual_block.3} parent=5 // pred_fallthru
      _
    %p191 = scmp.le.s32.totalorder 1, %s12
    %p192 = scmp.lt.s32.totalorder %s12, 3
    %p193 = pnand %p191, %p192
    %p194 = pneg %p193
    // Predicated region
    $region29: #{_residual_block.3} parent=5 // pred_check
      _
    $region30: #{_residual_block.3} parent=5 // pred_check_branch
      %196 = sbr.rel (%p193) target = $region32
    $region31: #{_residual_block.3} parent=5 // pred_region
      %s197 = ssub.s32 %s12, 1
      %p198 = scmp.lt.s32.totalorder %s17, 1
      %s199 = scalar_select %p198, %s17, 1
      %s200 = smul.addr %s199, 50
      %s201 = smul.addr %s200, 4
      %s202 = scalar_lea.vmem %s0, %s201
      %p203 = pneg %p38
      %p204 = pneg %p35
      %p205 = pneg %p59
      %p206 = pneg %p56
      %p207 = pneg %p80
      %p208 = pneg %p77
      %p209 = pneg %p106
      %p210 = pneg %p103
      %s211 = smul.u32 10, %s17
      %p212 = scmp.lt.s32.totalorder %s211, 19
      %s213 = scalar_select %p212, %s211, 19
      %s214 = smul.addr %s213, 8
      %s215 = scalar_lea.vmem %s3, %s214
      %p216 = pneg %p132
      %p217 = pneg %p129
      %s218 = smul.u32 10, %s17
      %p219 = scmp.lt.s32.totalorder %s218, 19
      %s220 = scalar_select %p219, %s218, 19
      %s221 = smul.addr %s220, 8
      %s222 = scalar_lea.vmem %s4, %s221
      %p223 = pneg %p158
      %p224 = pneg %p155
      %p225 = scmp.lt.s32.totalorder %s17, 1
      %s226 = scalar_select %p225, %s17, 1
      %s227 = smul.addr %s226, 4
      %s228 = scalar_lea.vmem %s5, %s227
      %p229 = scmp.lt.s32.totalorder %s17, 1
      %s230 = scalar_select %p229, %s17, 1
      %s231 = smul.addr %s230, 50
      %s232 = smul.addr %s231, 4
      %s233 = scalar_lea.vmem %s0, %s232
      %s234 = smul.u32 10, %s17
      %p235 = scmp.lt.s32.totalorder %s234, 19
      %s236 = scalar_select %p235, %s234, 19
      %s237 = smul.addr %s236, 8
      %s238 = scalar_lea.vmem %s3, %s237
      %s239 = smul.u32 10, %s17
      %s240 = smul.u32 10, %s17
      %p241 = scmp.lt.s32.totalorder %s240, 19
      %s242 = scalar_select %p241, %s240, 19
      %s243 = smul.addr %s242, 8
      %s244 = scalar_lea.vmem %s4, %s243
      %s245 = smul.u32 10, %s17
      %p246 = scmp.lt.s32.totalorder %s17, 1
      %s247 = scalar_select %p246, %s17, 1
      %s248 = smul.addr %s247, 4
      %s249 = scalar_lea.vmem %s5, %s248
      %v251 = vld [vmem:[%s233] sm:$0xf]
      %v252 = vld [vmem:[%s233 + $0x4] sm:$0xf]
      %v253 = vld [vmem:[%s233 + $0x8] sm:$0xf]
      %v254 = vld [vmem:[%s233 + $0xc] sm:$0xf]
      %v255 = vld [vmem:[%s233 + $0x10] sm:$0xf]
      %v256 = vld [vmem:[%s233 + $0x14] sm:$0xf]
      %v257 = vld [vmem:[%s233 + $0x18] sm:$0xf]
      %v258 = vld [vmem:[%s233 + $0x1c] sm:$0xf]
      %v259 = vld [vmem:[%s233 + $0x20] sm:$0xf]
      %v260 = vld [vmem:[%s233 + $0x24] sm:$0xf]
      %v261 = vld [vmem:[%s1] sm:$0x3]
      %v262 = vld [vmem:[%s233 + $0x30] sm:$0xc]
      %v263 = vld [vmem:[%s233 + $0x34] sm:$0xf]
      %v264 = vld [vmem:[%s233 + $0x38] sm:$0xf]
      %v265 = vld [vmem:[%s233 + $0x3c] sm:$0xf]
      %v266 = vld [vmem:[%s233 + $0x40] sm:$0xf]
      %v267 = vld [vmem:[%s233 + $0x44] sm:$0xf]
      %v268 = vld [vmem:[%s233 + $0x48] sm:$0xf]
      %v269 = vld [vmem:[%s233 + $0x4c] sm:$0xf]
      %v270 = vld [vmem:[%s233 + $0x50] sm:$0xf]
      %v271 = vld [vmem:[%s233 + $0x54] sm:$0xf]
      %v272 = vld [vmem:[%s233 + $0x58] sm:$0x3]
      %s273 = scalar_lea.vmem %s1, 2
      %v274 = vld [vmem:[%s273] sm:$0x3]
      %v286 = vunpack.c.l.b16 %v262
      %v287 = vunpack.c.l.b16 %v263
      %v288 = vunpack.c.l.b16 %v264
      %v289 = vunpack.c.l.b16 %v265
      %v290 = vunpack.c.l.b16 %v266
      %v291 = vunpack.c.l.b16 %v267
      %v292 = vunpack.c.l.b16 %v268
      %v293 = vunpack.c.l.b16 %v269
      %v294 = vunpack.c.l.b16 %v270
      %v295 = vunpack.c.l.b16 %v271
      %v296 = vunpack.c.l.b16 %v272
      %v297 = vpack.c.b16 %v287, %v286
      %v298 = vpack.c.b16 %v289, %v288
      %v299 = vpack.c.b16 %v291, %v290
      %v300 = vpack.c.b16 %v293, %v292
      %v301 = vpack.c.b16 %v295, %v294
      %v302 = vpack.c.b16 %v296, %v296
      %vm303 = vcmask 1045504
      %v304 = vrot.slane %v297, 2
      %v305 = vrot.slane %v298, 2
      %v306 = vsel %vm303, %v304, %v305
      %v307 = vrot.slane %v299, 2
      %v308 = vsel %vm303, %v305, %v307
      %v309 = vrot.slane %v300, 2
      %v310 = vsel %vm303, %v307, %v309
      %v311 = vrot.slane %v301, 2
      %v312 = vsel %vm303, %v309, %v311
      %v313 = vrot.slane %v302, 2
      %v314 = vsel %vm303, %v311, %v313
      %vm315 = vcmask 31744
      %v317 = vsel %vm315, %v306, 0
      %v320 = vsel %vm315, %v308, 0
      %v323 = vsel %vm315, %v310, 0
      %v326 = vsel %vm315, %v312, 0
      %v329 = vsel %vm315, %v314, 0
      %vm331 = vcmask 1041408
      %v333 = vsel %vm331, %v274, 0
      %335 = vmatprep.subr.bf16.mxu0 0
      %336 = vmatpush1.bf16.msra.mxu0 0
      %337 = vmatprep.subr.bf16.mxu0 0
      %338 = vmatpush1.bf16.msra.mxu0 0
      %339 = vmatprep.subr.bf16.mxu0 0
      %340 = vmatpush1.bf16.msra.mxu0 0
      %341 = vmatprep.subr.bf16.mxu0 0
      %342 = vmatpush1.bf16.msra.mxu0 0
      %343 = vmatprep.subr.bf16.mxu0 0
      %344 = vmatpush1.bf16.msra.mxu0 0
      %345 = vmatprep.subr.bf16.mxu0 0
      %346 = vmatpush1.bf16.msra.mxu0 0
      %347 = vmatprep.subr.bf16.mxu0 0
      %348 = vmatpush1.bf16.msra.mxu0 0
      %349 = vmatprep.subr.bf16.mxu0 0
      %350 = vmatpush1.bf16.msra.mxu0 %v333
      %351 = vmatprep.subr.bf16.mxu0 0
      %352 = vmatpush2.bf16.msra.mxu0 0
      %353 = vmatprep.subr.bf16.mxu0 0
      %354 = vmatpush2.bf16.msra.mxu0 0
      %355 = vmatprep.subr.bf16.mxu0 0
      %356 = vmatpush2.bf16.msra.mxu0 0
      %357 = vmatprep.subr.bf16.mxu0 0
      %358 = vmatpush2.bf16.msra.mxu0 0
      %359 = vmatprep.subr.bf16.mxu0 0
      %360 = vmatpush2.bf16.msra.mxu0 0
      %361 = vmatprep.subr.bf16.mxu0 0
      %362 = vmatpush2.bf16.msra.mxu0 0
      %363 = vmatprep.subr.bf16.mxu0 0
      %364 = vmatpush2.bf16.msra.mxu0 0
      %365 = vmatprep.subr.bf16.mxu0 0
      %366 = vmatpush2.bf16.msra.mxu0 0
      %367 = vmatprep.mubr.bf16.mxu0 0
      %368 = vmatmul.mubr.bf16.gmra.mxu0 %v317
      %v369 = vpop.f32.mrf.mxu0
      %v370 = vadd.f32 0.0, %v369
      %v371 = vpop.f32.mrf.mxu0
      %v372 = vpop.f32.mrf.mxu0
      %v373 = vadd.f32 0.0, %v372
      %v374 = vpop.f32.mrf.mxu0
      %375 = vmatprep.mubr.bf16.mxu0 0
      %376 = vmatmul.mubr.bf16.gmra.mxu0 %v320
      %v377 = vpop.f32.mrf.mxu0
      %v378 = vadd.f32 0.0, %v377
      %v379 = vpop.f32.mrf.mxu0
      %v380 = vpop.f32.mrf.mxu0
      %v381 = vadd.f32 0.0, %v380
      %v382 = vpop.f32.mrf.mxu0
      %383 = vmatprep.mubr.bf16.mxu0 0
      %384 = vmatmul.mubr.bf16.gmra.mxu0 %v323
      %v385 = vpop.f32.mrf.mxu0
      %v386 = vadd.f32 0.0, %v385
      %v387 = vpop.f32.mrf.mxu0
      %v388 = vpop.f32.mrf.mxu0
      %v389 = vadd.f32 0.0, %v388
      %v390 = vpop.f32.mrf.mxu0
      %391 = vmatprep.mubr.bf16.mxu0 0
      %392 = vmatmul.mubr.bf16.gmra.mxu0 %v326
      %v393 = vpop.f32.mrf.mxu0
      %v394 = vadd.f32 0.0, %v393
      %v395 = vpop.f32.mrf.mxu0
      %v396 = vpop.f32.mrf.mxu0
      %v397 = vadd.f32 0.0, %v396
      %v398 = vpop.f32.mrf.mxu0
      %399 = vmatprep.mubr.bf16.mxu0 0
      %400 = vmatmul.mubr.bf16.gmra.mxu0 %v329
      %v401 = vpop.f32.mrf.mxu0
      %v402 = vadd.f32 0.0, %v401
      %v403 = vpop.f32.mrf.mxu0
      %v404 = vpop.f32.mrf.mxu0
      %v405 = vadd.f32 0.0, %v404
      %v406 = vpop.f32.mrf.mxu0
      %407 = vdwg.mxu0
      %v418 = vunpack.c.l.b16 %v251
      %v419 = vunpack.c.l.b16 %v252
      %v420 = vunpack.c.l.b16 %v253
      %v421 = vunpack.c.l.b16 %v254
      %v422 = vunpack.c.l.b16 %v255
      %v423 = vunpack.c.l.b16 %v256
      %v424 = vunpack.c.l.b16 %v257
      %v425 = vunpack.c.l.b16 %v258
      %v426 = vunpack.c.l.b16 %v259
      %v427 = vunpack.c.l.b16 %v260
      %v428 = vpack.c.b16 %v419, %v418
      %v429 = vpack.c.b16 %v421, %v420
      %v430 = vpack.c.b16 %v423, %v422
      %v431 = vpack.c.b16 %v425, %v424
      %v432 = vpack.c.b16 %v427, %v426
      %v434 = vsel %vm315, %v428, 0
      %v437 = vsel %vm315, %v429, 0
      %v440 = vsel %vm315, %v430, 0
      %v443 = vsel %vm315, %v431, 0
      %v446 = vsel %vm315, %v432, 0
      %v449 = vsel %vm331, %v261, 0
      %451 = vmatprep.subr.bf16.mxu0 0
      %452 = vmatpush1.bf16.msra.mxu0 0
      %453 = vmatprep.subr.bf16.mxu0 0
      %454 = vmatpush1.bf16.msra.mxu0 0
      %455 = vmatprep.subr.bf16.mxu0 0
      %456 = vmatpush1.bf16.msra.mxu0 0
      %457 = vmatprep.subr.bf16.mxu0 0
      %458 = vmatpush1.bf16.msra.mxu0 0
      %459 = vmatprep.subr.bf16.mxu0 0
      %460 = vmatpush1.bf16.msra.mxu0 0
      %461 = vmatprep.subr.bf16.mxu0 0
      %462 = vmatpush1.bf16.msra.mxu0 0
      %463 = vmatprep.subr.bf16.mxu0 0
      %464 = vmatpush1.bf16.msra.mxu0 0
      %465 = vmatprep.subr.bf16.mxu0 0
      %466 = vmatpush1.bf16.msra.mxu0 %v449
      %467 = vmatprep.subr.bf16.mxu0 0
      %468 = vmatpush2.bf16.msra.mxu0 0
      %469 = vmatprep.subr.bf16.mxu0 0
      %470 = vmatpush2.bf16.msra.mxu0 0
      %471 = vmatprep.subr.bf16.mxu0 0
      %472 = vmatpush2.bf16.msra.mxu0 0
      %473 = vmatprep.subr.bf16.mxu0 0
      %474 = vmatpush2.bf16.msra.mxu0 0
      %475 = vmatprep.subr.bf16.mxu0 0
      %476 = vmatpush2.bf16.msra.mxu0 0
      %477 = vmatprep.subr.bf16.mxu0 0
      %478 = vmatpush2.bf16.msra.mxu0 0
      %479 = vmatprep.subr.bf16.mxu0 0
      %480 = vmatpush2.bf16.msra.mxu0 0
      %481 = vmatprep.subr.bf16.mxu0 0
      %482 = vmatpush2.bf16.msra.mxu0 0
      %483 = vmatprep.mubr.bf16.mxu0 0
      %484 = vmatmul.mubr.bf16.gmra.mxu0 %v434
      %v485 = vpop.f32.mrf.mxu0
      %v486 = vadd.f32 %v370, %v485
      %v487 = vpop.f32.mrf.mxu0
      %v488 = vpop.f32.mrf.mxu0
      %v489 = vadd.f32 %v373, %v488
      %v490 = vpop.f32.mrf.mxu0
      %491 = vmatprep.mubr.bf16.mxu0 0
      %492 = vmatmul.mubr.bf16.gmra.mxu0 %v437
      %v493 = vpop.f32.mrf.mxu0
      %v494 = vadd.f32 %v378, %v493
      %v495 = vpop.f32.mrf.mxu0
      %v496 = vpop.f32.mrf.mxu0
      %v497 = vadd.f32 %v381, %v496
      %v498 = vpop.f32.mrf.mxu0
      %499 = vmatprep.mubr.bf16.mxu0 0
      %500 = vmatmul.mubr.bf16.gmra.mxu0 %v440
      %v501 = vpop.f32.mrf.mxu0
      %v502 = vadd.f32 %v386, %v501
      %v503 = vpop.f32.mrf.mxu0
      %v504 = vpop.f32.mrf.mxu0
      %v505 = vadd.f32 %v389, %v504
      %v506 = vpop.f32.mrf.mxu0
      %507 = vmatprep.mubr.bf16.mxu0 0
      %508 = vmatmul.mubr.bf16.gmra.mxu0 %v443
      %v509 = vpop.f32.mrf.mxu0
      %v510 = vadd.f32 %v394, %v509
      %v511 = vpop.f32.mrf.mxu0
      %v512 = vpop.f32.mrf.mxu0
      %v513 = vadd.f32 %v397, %v512
      %v514 = vpop.f32.mrf.mxu0
      %515 = vmatprep.mubr.bf16.mxu0 0
      %516 = vmatmul.mubr.bf16.gmra.mxu0 %v446
      %v517 = vpop.f32.mrf.mxu0
      %v518 = vadd.f32 %v402, %v517
      %v519 = vpop.f32.mrf.mxu0
      %v520 = vpop.f32.mrf.mxu0
      %v521 = vadd.f32 %v405, %v520
      %v522 = vpop.f32.mrf.mxu0
      %523 = vdwg.mxu0
      %v524 = vld [vmem:[%s233] sm:$0xf]
      %v525 = vld [vmem:[%s233 + $0x4] sm:$0xf]
      %v526 = vld [vmem:[%s233 + $0x8] sm:$0xf]
      %v527 = vld [vmem:[%s233 + $0xc] sm:$0xf]
      %v528 = vld [vmem:[%s233 + $0x10] sm:$0xf]
      %v529 = vld [vmem:[%s233 + $0x14] sm:$0xf]
      %v530 = vld [vmem:[%s233 + $0x18] sm:$0xf]
      %v531 = vld [vmem:[%s233 + $0x1c] sm:$0xf]
      %v532 = vld [vmem:[%s233 + $0x20] sm:$0xf]
      %v533 = vld [vmem:[%s233 + $0x24] sm:$0xf]
      %v534 = vld [vmem:[%s233 + $0x28] sm:$0x1]
      %s535 = scalar_lea.vmem %s1, 4
      %v536 = vld [vmem:[%s535] sm:$0x3]
      %v548 = vunpack.c.l.b16 %v524
      %v549 = vunpack.c.l.b16 %v525
      %v550 = vunpack.c.l.b16 %v526
      %v551 = vunpack.c.l.b16 %v527
      %v552 = vunpack.c.l.b16 %v528
      %v553 = vunpack.c.l.b16 %v529
      %v554 = vunpack.c.l.b16 %v530
      %v555 = vunpack.c.l.b16 %v531
      %v556 = vunpack.c.l.b16 %v532
      %v557 = vunpack.c.l.b16 %v533
      %v558 = vunpack.c.l.b16 %v534
      %v559 = vpack.c.b16 %v549, %v548
      %v560 = vpack.c.b16 %v551, %v550
      %v561 = vpack.c.b16 %v553, %v552
      %v562 = vpack.c.b16 %v555, %v554
      %v563 = vpack.c.b16 %v557, %v556
      %v564 = vpack.c.b16 %v558, %v558
      %vm565 = vsmask.f32 7424
      %v567 = vshrl.u32 %v559, 16
      %v569 = vshll.u32 %v559, 16
      %v571 = vrot.slane %v569, 1
      %v572 = vor.u32 %v567, %v571
      %v574 = vshll.u32 %v560, 16
      %v576 = vrot.slane %v574, 1
      %v577 = vsel %vm565, %v572, %v576
      %v578 = vshrl.u32 %v560, 16
      %v580 = vor.u32 %v578, %v576
      %v582 = vshll.u32 %v561, 16
      %v584 = vrot.slane %v582, 1
      %v585 = vsel %vm565, %v580, %v584
      %v586 = vshrl.u32 %v561, 16
      %v588 = vor.u32 %v586, %v584
      %v590 = vshll.u32 %v562, 16
      %v592 = vrot.slane %v590, 1
      %v593 = vsel %vm565, %v588, %v592
      %v594 = vshrl.u32 %v562, 16
      %v596 = vor.u32 %v594, %v592
      %v598 = vshll.u32 %v563, 16
      %v600 = vrot.slane %v598, 1
      %v601 = vsel %vm565, %v596, %v600
      %v602 = vshrl.u32 %v563, 16
      %v604 = vor.u32 %v602, %v600
      %v606 = vshll.u32 %v564, 16
      %v608 = vrot.slane %v606, 1
      %v609 = vsel %vm565, %v604, %v608
      %v611 = vsel %vm315, %v577, 0
      %v614 = vsel %vm315, %v585, 0
      %v617 = vsel %vm315, %v593, 0
      %v620 = vsel %vm315, %v601, 0
      %v623 = vsel %vm315, %v609, 0
      %v626 = vsel %vm331, %v536, 0
      %628 = vmatprep.subr.bf16.mxu0 0
      %629 = vmatpush1.bf16.msra.mxu0 0
      %630 = vmatprep.subr.bf16.mxu0 0
      %631 = vmatpush1.bf16.msra.mxu0 0
      %632 = vmatprep.subr.bf16.mxu0 0
      %633 = vmatpush1.bf16.msra.mxu0 0
      %634 = vmatprep.subr.bf16.mxu0 0
      %635 = vmatpush1.bf16.msra.mxu0 0
      %636 = vmatprep.subr.bf16.mxu0 0
      %637 = vmatpush1.bf16.msra.mxu0 0
      %638 = vmatprep.subr.bf16.mxu0 0
      %639 = vmatpush1.bf16.msra.mxu0 0
      %640 = vmatprep.subr.bf16.mxu0 0
      %641 = vmatpush1.bf16.msra.mxu0 0
      %642 = vmatprep.subr.bf16.mxu0 0
      %643 = vmatpush1.bf16.msra.mxu0 %v626
      %644 = vmatprep.subr.bf16.mxu0 0
      %645 = vmatpush2.bf16.msra.mxu0 0
      %646 = vmatprep.subr.bf16.mxu0 0
      %647 = vmatpush2.bf16.msra.mxu0 0
      %648 = vmatprep.subr.bf16.mxu0 0
      %649 = vmatpush2.bf16.msra.mxu0 0
      %650 = vmatprep.subr.bf16.mxu0 0
      %651 = vmatpush2.bf16.msra.mxu0 0
      %652 = vmatprep.subr.bf16.mxu0 0
      %653 = vmatpush2.bf16.msra.mxu0 0
      %654 = vmatprep.subr.bf16.mxu0 0
      %655 = vmatpush2.bf16.msra.mxu0 0
      %656 = vmatprep.subr.bf16.mxu0 0
      %657 = vmatpush2.bf16.msra.mxu0 0
      %658 = vmatprep.subr.bf16.mxu0 0
      %659 = vmatpush2.bf16.msra.mxu0 0
      %660 = vmatprep.mubr.bf16.mxu0 0
      %661 = vmatmul.mubr.bf16.gmra.mxu0 %v611
      %v662 = vpop.f32.mrf.mxu0
      %v663 = vadd.f32 0.0, %v662
      %v664 = vpop.f32.mrf.mxu0
      %v665 = vpop.f32.mrf.mxu0
      %v666 = vadd.f32 0.0, %v665
      %v667 = vpop.f32.mrf.mxu0
      %668 = vmatprep.mubr.bf16.mxu0 0
      %669 = vmatmul.mubr.bf16.gmra.mxu0 %v614
      %v670 = vpop.f32.mrf.mxu0
      %v671 = vadd.f32 0.0, %v670
      %v672 = vpop.f32.mrf.mxu0
      %v673 = vpop.f32.mrf.mxu0
      %v674 = vadd.f32 0.0, %v673
      %v675 = vpop.f32.mrf.mxu0
      %676 = vmatprep.mubr.bf16.mxu0 0
      %677 = vmatmul.mubr.bf16.gmra.mxu0 %v617
      %v678 = vpop.f32.mrf.mxu0
      %v679 = vadd.f32 0.0, %v678
      %v680 = vpop.f32.mrf.mxu0
      %v681 = vpop.f32.mrf.mxu0
      %v682 = vadd.f32 0.0, %v681
      %v683 = vpop.f32.mrf.mxu0
      %684 = vmatprep.mubr.bf16.mxu0 0
      %685 = vmatmul.mubr.bf16.gmra.mxu0 %v620
      %v686 = vpop.f32.mrf.mxu0
      %v687 = vadd.f32 0.0, %v686
      %v688 = vpop.f32.mrf.mxu0
      %v689 = vpop.f32.mrf.mxu0
      %v690 = vadd.f32 0.0, %v689
      %v691 = vpop.f32.mrf.mxu0
      %692 = vmatprep.mubr.bf16.mxu0 0
      %693 = vmatmul.mubr.bf16.gmra.mxu0 %v623
      %v694 = vpop.f32.mrf.mxu0
      %v695 = vadd.f32 0.0, %v694
      %v696 = vpop.f32.mrf.mxu0
      %v697 = vpop.f32.mrf.mxu0
      %v698 = vadd.f32 0.0, %v697
      %v699 = vpop.f32.mrf.mxu0
      %700 = vdwg.mxu0
      %v701 = vadd.f32 %v486, %v663
      %v702 = vadd.f32 %v489, %v666
      %v703 = vadd.f32 %v494, %v671
      %v704 = vadd.f32 %v497, %v674
      %v705 = vadd.f32 %v502, %v679
      %v706 = vadd.f32 %v505, %v682
      %v707 = vadd.f32 %v510, %v687
      %v708 = vadd.f32 %v513, %v690
      %v709 = vadd.f32 %v518, %v695
      %v710 = vadd.f32 %v521, %v698
      %v711 = vld [vmem:[%s233 + $0x64] sm:$0xf]
      %v712 = vld [vmem:[%s233 + $0x68] sm:$0xf]
      %v713 = vld [vmem:[%s233 + $0x6c] sm:$0xf]
      %v714 = vld [vmem:[%s233 + $0x70] sm:$0xf]
      %v715 = vld [vmem:[%s233 + $0x74] sm:$0xf]
      %v716 = vld [vmem:[%s233 + $0x78] sm:$0xf]
      %v717 = vld [vmem:[%s233 + $0x7c] sm:$0xf]
      %v718 = vld [vmem:[%s233 + $0x80] sm:$0xf]
      %v719 = vld [vmem:[%s233 + $0x84] sm:$0xf]
      %v720 = vld [vmem:[%s233 + $0x88] sm:$0xf]
      %s721 = scalar_lea.vmem %s1, 6
      %v722 = vld [vmem:[%s721] sm:$0x3]
      %v733 = vunpack.c.l.b16 %v711
      %v734 = vunpack.c.l.b16 %v712
      %v735 = vunpack.c.l.b16 %v713
      %v736 = vunpack.c.l.b16 %v714
      %v737 = vunpack.c.l.b16 %v715
      %v738 = vunpack.c.l.b16 %v716
      %v739 = vunpack.c.l.b16 %v717
      %v740 = vunpack.c.l.b16 %v718
      %v741 = vunpack.c.l.b16 %v719
      %v742 = vunpack.c.l.b16 %v720
      %v743 = vpack.c.b16 %v734, %v733
      %v744 = vpack.c.b16 %v736, %v735
      %v745 = vpack.c.b16 %v738, %v737
      %v746 = vpack.c.b16 %v740, %v739
      %v747 = vpack.c.b16 %v742, %v741
      %v749 = vsel %vm315, %v743, 0
      %v752 = vsel %vm315, %v744, 0
      %v755 = vsel %vm315, %v745, 0
      %v758 = vsel %vm315, %v746, 0
      %v761 = vsel %vm315, %v747, 0
      %v764 = vsel %vm331, %v722, 0
      %766 = vmatprep.subr.bf16.mxu0 0
      %767 = vmatpush1.bf16.msra.mxu0 0
      %768 = vmatprep.subr.bf16.mxu0 0
      %769 = vmatpush1.bf16.msra.mxu0 0
      %770 = vmatprep.subr.bf16.mxu0 0
      %771 = vmatpush1.bf16.msra.mxu0 0
      %772 = vmatprep.subr.bf16.mxu0 0
      %773 = vmatpush1.bf16.msra.mxu0 0
      %774 = vmatprep.subr.bf16.mxu0 0
      %775 = vmatpush1.bf16.msra.mxu0 0
      %776 = vmatprep.subr.bf16.mxu0 0
      %777 = vmatpush1.bf16.msra.mxu0 0
      %778 = vmatprep.subr.bf16.mxu0 0
      %779 = vmatpush1.bf16.msra.mxu0 0
      %780 = vmatprep.subr.bf16.mxu0 0
      %781 = vmatpush1.bf16.msra.mxu0 %v764
      %782 = vmatprep.subr.bf16.mxu0 0
      %783 = vmatpush2.bf16.msra.mxu0 0
      %784 = vmatprep.subr.bf16.mxu0 0
      %785 = vmatpush2.bf16.msra.mxu0 0
      %786 = vmatprep.subr.bf16.mxu0 0
      %787 = vmatpush2.bf16.msra.mxu0 0
      %788 = vmatprep.subr.bf16.mxu0 0
      %789 = vmatpush2.bf16.msra.mxu0 0
      %790 = vmatprep.subr.bf16.mxu0 0
      %791 = vmatpush2.bf16.msra.mxu0 0
      %792 = vmatprep.subr.bf16.mxu0 0
      %793 = vmatpush2.bf16.msra.mxu0 0
      %794 = vmatprep.subr.bf16.mxu0 0
      %795 = vmatpush2.bf16.msra.mxu0 0
      %796 = vmatprep.subr.bf16.mxu0 0
      %797 = vmatpush2.bf16.msra.mxu0 0
      %798 = vmatprep.mubr.bf16.mxu0 0
      %799 = vmatmul.mubr.bf16.gmra.mxu0 %v749
      %v800 = vpop.f32.mrf.mxu0
      %v801 = vadd.f32 0.0, %v800
      %v802 = vpop.f32.mrf.mxu0
      %v803 = vpop.f32.mrf.mxu0
      %v804 = vadd.f32 0.0, %v803
      %v805 = vpop.f32.mrf.mxu0
      %806 = vmatprep.mubr.bf16.mxu0 0
      %807 = vmatmul.mubr.bf16.gmra.mxu0 %v752
      %v808 = vpop.f32.mrf.mxu0
      %v809 = vadd.f32 0.0, %v808
      %v810 = vpop.f32.mrf.mxu0
      %v811 = vpop.f32.mrf.mxu0
      %v812 = vadd.f32 0.0, %v811
      %v813 = vpop.f32.mrf.mxu0
      %814 = vmatprep.mubr.bf16.mxu0 0
      %815 = vmatmul.mubr.bf16.gmra.mxu0 %v755
      %v816 = vpop.f32.mrf.mxu0
      %v817 = vadd.f32 0.0, %v816
      %v818 = vpop.f32.mrf.mxu0
      %v819 = vpop.f32.mrf.mxu0
      %v820 = vadd.f32 0.0, %v819
      %v821 = vpop.f32.mrf.mxu0
      %822 = vmatprep.mubr.bf16.mxu0 0
      %823 = vmatmul.mubr.bf16.gmra.mxu0 %v758
      %v824 = vpop.f32.mrf.mxu0
      %v825 = vadd.f32 0.0, %v824
      %v826 = vpop.f32.mrf.mxu0
      %v827 = vpop.f32.mrf.mxu0
      %v828 = vadd.f32 0.0, %v827
      %v829 = vpop.f32.mrf.mxu0
      %830 = vmatprep.mubr.bf16.mxu0 0
      %831 = vmatmul.mubr.bf16.gmra.mxu0 %v761
      %v832 = vpop.f32.mrf.mxu0
      %v833 = vadd.f32 0.0, %v832
      %v834 = vpop.f32.mrf.mxu0
      %v835 = vpop.f32.mrf.mxu0
      %v836 = vadd.f32 0.0, %v835
      %v837 = vpop.f32.mrf.mxu0
      %838 = vdwg.mxu0
      %v839 = vadd.f32 %v701, %v801
      %v840 = vadd.f32 %v702, %v804
      %v841 = vadd.f32 %v703, %v809
      %v842 = vadd.f32 %v704, %v812
      %v843 = vadd.f32 %v705, %v817
      %v844 = vadd.f32 %v706, %v820
      %v845 = vadd.f32 %v707, %v825
      %v846 = vadd.f32 %v708, %v828
      %v847 = vadd.f32 %v709, %v833
      %v848 = vadd.f32 %v710, %v836
      %v849 = vld [vmem:[%s233 + $0x94] sm:$0xc]
      %v850 = vld [vmem:[%s233 + $0x98] sm:$0xf]
      %v851 = vld [vmem:[%s233 + $0x9c] sm:$0xf]
      %v852 = vld [vmem:[%s233 + $0xa0] sm:$0xf]
      %v853 = vld [vmem:[%s233 + $0xa4] sm:$0xf]
      %v854 = vld [vmem:[%s233 + $0xa8] sm:$0xf]
      %v855 = vld [vmem:[%s233 + $0xac] sm:$0xf]
      %v856 = vld [vmem:[%s233 + $0xb0] sm:$0xf]
      %v857 = vld [vmem:[%s233 + $0xb4] sm:$0xf]
      %v858 = vld [vmem:[%s233 + $0xb8] sm:$0xf]
      %v859 = vld [vmem:[%s233 + $0xbc] sm:$0x3]
      %s860 = scalar_lea.vmem %s1, 8
      %v861 = vld [vmem:[%s860] sm:$0x3]
      %v873 = vunpack.c.l.b16 %v849
      %v874 = vunpack.c.l.b16 %v850
      %v875 = vunpack.c.l.b16 %v851
      %v876 = vunpack.c.l.b16 %v852
      %v877 = vunpack.c.l.b16 %v853
      %v878 = vunpack.c.l.b16 %v854
      %v879 = vunpack.c.l.b16 %v855
      %v880 = vunpack.c.l.b16 %v856
      %v881 = vunpack.c.l.b16 %v857
      %v882 = vunpack.c.l.b16 %v858
      %v883 = vunpack.c.l.b16 %v859
      %v884 = vpack.c.b16 %v874, %v873
      %v885 = vpack.c.b16 %v876, %v875
      %v886 = vpack.c.b16 %v878, %v877
      %v887 = vpack.c.b16 %v880, %v879
      %v888 = vpack.c.b16 %v882, %v881
      %v889 = vpack.c.b16 %v883, %v883
      %v890 = vrot.slane %v884, 2
      %v891 = vrot.slane %v885, 2
      %v892 = vsel %vm303, %v890, %v891
      %v893 = vrot.slane %v886, 2
      %v894 = vsel %vm303, %v891, %v893
      %v895 = vrot.slane %v887, 2
      %v896 = vsel %vm303, %v893, %v895
      %v897 = vrot.slane %v888, 2
      %v898 = vsel %vm303, %v895, %v897
      %v899 = vrot.slane %v889, 2
      %v900 = vsel %vm303, %v897, %v899
      %v902 = vsel %vm315, %v892, 0
      %v905 = vsel %vm315, %v894, 0
      %v908 = vsel %vm315, %v896, 0
      %v911 = vsel %vm315, %v898, 0
      %v914 = vsel %vm315, %v900, 0
      %v917 = vsel %vm331, %v861, 0
      %919 = vmatprep.subr.bf16.mxu0 0
      %920 = vmatpush1.bf16.msra.mxu0 0
      %921 = vmatprep.subr.bf16.mxu0 0
      %922 = vmatpush1.bf16.msra.mxu0 0
      %923 = vmatprep.subr.bf16.mxu0 0
      %924 = vmatpush1.bf16.msra.mxu0 0
      %925 = vmatprep.subr.bf16.mxu0 0
      %926 = vmatpush1.bf16.msra.mxu0 0
      %927 = vmatprep.subr.bf16.mxu0 0
      %928 = vmatpush1.bf16.msra.mxu0 0
      %929 = vmatprep.subr.bf16.mxu0 0
      %930 = vmatpush1.bf16.msra.mxu0 0
      %931 = vmatprep.subr.bf16.mxu0 0
      %932 = vmatpush1.bf16.msra.mxu0 0
      %933 = vmatprep.subr.bf16.mxu0 0
      %934 = vmatpush1.bf16.msra.mxu0 %v917
      %935 = vmatprep.subr.bf16.mxu0 0
      %936 = vmatpush2.bf16.msra.mxu0 0
      %937 = vmatprep.subr.bf16.mxu0 0
      %938 = vmatpush2.bf16.msra.mxu0 0
      %939 = vmatprep.subr.bf16.mxu0 0
      %940 = vmatpush2.bf16.msra.mxu0 0
      %941 = vmatprep.subr.bf16.mxu0 0
      %942 = vmatpush2.bf16.msra.mxu0 0
      %943 = vmatprep.subr.bf16.mxu0 0
      %944 = vmatpush2.bf16.msra.mxu0 0
      %945 = vmatprep.subr.bf16.mxu0 0
      %946 = vmatpush2.bf16.msra.mxu0 0
      %947 = vmatprep.subr.bf16.mxu0 0
      %948 = vmatpush2.bf16.msra.mxu0 0
      %949 = vmatprep.subr.bf16.mxu0 0
      %950 = vmatpush2.bf16.msra.mxu0 0
      %951 = vmatprep.mubr.bf16.mxu0 0
      %952 = vmatmul.mubr.bf16.gmra.mxu0 %v902
      %v953 = vpop.f32.mrf.mxu0
      %v954 = vadd.f32 0.0, %v953
      %v955 = vpop.f32.mrf.mxu0
      %v956 = vpop.f32.mrf.mxu0
      %v957 = vadd.f32 0.0, %v956
      %v958 = vpop.f32.mrf.mxu0
      %959 = vmatprep.mubr.bf16.mxu0 0
      %960 = vmatmul.mubr.bf16.gmra.mxu0 %v905
      %v961 = vpop.f32.mrf.mxu0
      %v962 = vadd.f32 0.0, %v961
      %v963 = vpop.f32.mrf.mxu0
      %v964 = vpop.f32.mrf.mxu0
      %v965 = vadd.f32 0.0, %v964
      %v966 = vpop.f32.mrf.mxu0
      %967 = vmatprep.mubr.bf16.mxu0 0
      %968 = vmatmul.mubr.bf16.gmra.mxu0 %v908
      %v969 = vpop.f32.mrf.mxu0
      %v970 = vadd.f32 0.0, %v969
      %v971 = vpop.f32.mrf.mxu0
      %v972 = vpop.f32.mrf.mxu0
      %v973 = vadd.f32 0.0, %v972
      %v974 = vpop.f32.mrf.mxu0
      %975 = vmatprep.mubr.bf16.mxu0 0
      %976 = vmatmul.mubr.bf16.gmra.mxu0 %v911
      %v977 = vpop.f32.mrf.mxu0
      %v978 = vadd.f32 0.0, %v977
      %v979 = vpop.f32.mrf.mxu0
      %v980 = vpop.f32.mrf.mxu0
      %v981 = vadd.f32 0.0, %v980
      %v982 = vpop.f32.mrf.mxu0
      %983 = vmatprep.mubr.bf16.mxu0 0
      %984 = vmatmul.mubr.bf16.gmra.mxu0 %v914
      %v985 = vpop.f32.mrf.mxu0
      %v986 = vadd.f32 0.0, %v985
      %v987 = vpop.f32.mrf.mxu0
      %v988 = vpop.f32.mrf.mxu0
      %v989 = vadd.f32 0.0, %v988
      %v990 = vpop.f32.mrf.mxu0
      %991 = vdwg.mxu0
      %v992 = vadd.f32 %v839, %v954
      %v993 = vadd.f32 %v840, %v957
      %v994 = vadd.f32 %v841, %v962
      %v995 = vadd.f32 %v842, %v965
      %v996 = vadd.f32 %v843, %v970
      %v997 = vadd.f32 %v844, %v973
      %v998 = vadd.f32 %v845, %v978
      %v999 = vadd.f32 %v846, %v981
      %v1000 = vadd.f32 %v847, %v986
      %v1001 = vadd.f32 %v848, %v989
      %v1002 = vld [vmem:[%s233 + $0x64] sm:$0xf]
      %v1003 = vld [vmem:[%s233 + $0x68] sm:$0xf]
      %v1004 = vld [vmem:[%s233 + $0x6c] sm:$0xf]
      %v1005 = vld [vmem:[%s233 + $0x70] sm:$0xf]
      %v1006 = vld [vmem:[%s233 + $0x74] sm:$0xf]
      %v1007 = vld [vmem:[%s233 + $0x78] sm:$0xf]
      %v1008 = vld [vmem:[%s233 + $0x7c] sm:$0xf]
      %v1009 = vld [vmem:[%s233 + $0x80] sm:$0xf]
      %v1010 = vld [vmem:[%s233 + $0x84] sm:$0xf]
      %v1011 = vld [vmem:[%s233 + $0x88] sm:$0xf]
      %v1012 = vld [vmem:[%s233 + $0x8c] sm:$0x1]
      %s1013 = scalar_lea.vmem %s1, 10
      %v1014 = vld [vmem:[%s1013] sm:$0x3]
      %v1026 = vunpack.c.l.b16 %v1002
      %v1027 = vunpack.c.l.b16 %v1003
      %v1028 = vunpack.c.l.b16 %v1004
      %v1029 = vunpack.c.l.b16 %v1005
      %v1030 = vunpack.c.l.b16 %v1006
      %v1031 = vunpack.c.l.b16 %v1007
      %v1032 = vunpack.c.l.b16 %v1008
      %v1033 = vunpack.c.l.b16 %v1009
      %v1034 = vunpack.c.l.b16 %v1010
      %v1035 = vunpack.c.l.b16 %v1011
      %v1036 = vunpack.c.l.b16 %v1012
      %v1037 = vpack.c.b16 %v1027, %v1026
      %v1038 = vpack.c.b16 %v1029, %v1028
      %v1039 = vpack.c.b16 %v1031, %v1030
      %v1040 = vpack.c.b16 %v1033, %v1032
      %v1041 = vpack.c.b16 %v1035, %v1034
      %v1042 = vpack.c.b16 %v1036, %v1036
      %v1044 = vshrl.u32 %v1037, 16
      %v1046 = vshll.u32 %v1037, 16
      %v1048 = vrot.slane %v1046, 1
      %v1049 = vor.u32 %v1044, %v1048
      %v1051 = vshll.u32 %v1038, 16
      %v1053 = vrot.slane %v1051, 1
      %v1054 = vsel %vm565, %v1049, %v1053
      %v1055 = vshrl.u32 %v1038, 16
      %v1057 = vor.u32 %v1055, %v1053
      %v1059 = vshll.u32 %v1039, 16
      %v1061 = vrot.slane %v1059, 1
      %v1062 = vsel %vm565, %v1057, %v1061
      %v1063 = vshrl.u32 %v1039, 16
      %v1065 = vor.u32 %v1063, %v1061
      %v1067 = vshll.u32 %v1040, 16
      %v1069 = vrot.slane %v1067, 1
      %v1070 = vsel %vm565, %v1065, %v1069
      %v1071 = vshrl.u32 %v1040, 16
      %v1073 = vor.u32 %v1071, %v1069
      %v1075 = vshll.u32 %v1041, 16
      %v1077 = vrot.slane %v1075, 1
      %v1078 = vsel %vm565, %v1073, %v1077
      %v1079 = vshrl.u32 %v1041, 16
      %v1081 = vor.u32 %v1079, %v1077
      %v1083 = vshll.u32 %v1042, 16
      %v1085 = vrot.slane %v1083, 1
      %v1086 = vsel %vm565, %v1081, %v1085
      %v1088 = vsel %vm315, %v1054, 0
      %v1091 = vsel %vm315, %v1062, 0
      %v1094 = vsel %vm315, %v1070, 0
      %v1097 = vsel %vm315, %v1078, 0
      %v1100 = vsel %vm315, %v1086, 0
      %v1103 = vsel %vm331, %v1014, 0
      %1105 = vmatprep.subr.bf16.mxu0 0
      %1106 = vmatpush1.bf16.msra.mxu0 0
      %1107 = vmatprep.subr.bf16.mxu0 0
      %1108 = vmatpush1.bf16.msra.mxu0 0
      %1109 = vmatprep.subr.bf16.mxu0 0
      %1110 = vmatpush1.bf16.msra.mxu0 0
      %1111 = vmatprep.subr.bf16.mxu0 0
      %1112 = vmatpush1.bf16.msra.mxu0 0
      %1113 = vmatprep.subr.bf16.mxu0 0
      %1114 = vmatpush1.bf16.msra.mxu0 0
      %1115 = vmatprep.subr.bf16.mxu0 0
      %1116 = vmatpush1.bf16.msra.mxu0 0
      %1117 = vmatprep.subr.bf16.mxu0 0
      %1118 = vmatpush1.bf16.msra.mxu0 0
      %1119 = vmatprep.subr.bf16.mxu0 0
      %1120 = vmatpush1.bf16.msra.mxu0 %v1103
      %1121 = vmatprep.subr.bf16.mxu0 0
      %1122 = vmatpush2.bf16.msra.mxu0 0
      %1123 = vmatprep.subr.bf16.mxu0 0
      %1124 = vmatpush2.bf16.msra.mxu0 0
      %1125 = vmatprep.subr.bf16.mxu0 0
      %1126 = vmatpush2.bf16.msra.mxu0 0
      %1127 = vmatprep.subr.bf16.mxu0 0
      %1128 = vmatpush2.bf16.msra.mxu0 0
      %1129 = vmatprep.subr.bf16.mxu0 0
      %1130 = vmatpush2.bf16.msra.mxu0 0
      %1131 = vmatprep.subr.bf16.mxu0 0
      %1132 = vmatpush2.bf16.msra.mxu0 0
      %1133 = vmatprep.subr.bf16.mxu0 0
      %1134 = vmatpush2.bf16.msra.mxu0 0
      %1135 = vmatprep.subr.bf16.mxu0 0
      %1136 = vmatpush2.bf16.msra.mxu0 0
      %1137 = vmatprep.mubr.bf16.mxu0 0
      %1138 = vmatmul.mubr.bf16.gmra.mxu0 %v1088
      %v1139 = vpop.f32.mrf.mxu0
      %v1140 = vadd.f32 0.0, %v1139
      %v1141 = vpop.f32.mrf.mxu0
      %v1142 = vpop.f32.mrf.mxu0
      %v1143 = vadd.f32 0.0, %v1142
      %v1144 = vpop.f32.mrf.mxu0
      %1145 = vmatprep.mubr.bf16.mxu0 0
      %1146 = vmatmul.mubr.bf16.gmra.mxu0 %v1091
      %v1147 = vpop.f32.mrf.mxu0
      %v1148 = vadd.f32 0.0, %v1147
      %v1149 = vpop.f32.mrf.mxu0
      %v1150 = vpop.f32.mrf.mxu0
      %v1151 = vadd.f32 0.0, %v1150
      %v1152 = vpop.f32.mrf.mxu0
      %1153 = vmatprep.mubr.bf16.mxu0 0
      %1154 = vmatmul.mubr.bf16.gmra.mxu0 %v1094
      %v1155 = vpop.f32.mrf.mxu0
      %v1156 = vadd.f32 0.0, %v1155
      %v1157 = vpop.f32.mrf.mxu0
      %v1158 = vpop.f32.mrf.mxu0
      %v1159 = vadd.f32 0.0, %v1158
      %v1160 = vpop.f32.mrf.mxu0
      %1161 = vmatprep.mubr.bf16.mxu0 0
      %1162 = vmatmul.mubr.bf16.gmra.mxu0 %v1097
      %v1163 = vpop.f32.mrf.mxu0
      %v1164 = vadd.f32 0.0, %v1163
      %v1165 = vpop.f32.mrf.mxu0
      %v1166 = vpop.f32.mrf.mxu0
      %v1167 = vadd.f32 0.0, %v1166
      %v1168 = vpop.f32.mrf.mxu0
      %1169 = vmatprep.mubr.bf16.mxu0 0
      %1170 = vmatmul.mubr.bf16.gmra.mxu0 %v1100
      %v1171 = vpop.f32.mrf.mxu0
      %v1172 = vadd.f32 0.0, %v1171
      %v1173 = vpop.f32.mrf.mxu0
      %v1174 = vpop.f32.mrf.mxu0
      %v1175 = vadd.f32 0.0, %v1174
      %v1176 = vpop.f32.mrf.mxu0
      %1177 = vdwg.mxu0
      %v1178 = vadd.f32 %v992, %v1140
      %v1179 = vadd.f32 %v993, %v1143
      %v1180 = vadd.f32 %v994, %v1148
      %v1181 = vadd.f32 %v995, %v1151
      %v1182 = vadd.f32 %v996, %v1156
      %v1183 = vadd.f32 %v997, %v1159
      %v1184 = vadd.f32 %v998, %v1164
      %v1185 = vadd.f32 %v999, %v1167
      %v1186 = vadd.f32 %v1000, %v1172
      %v1187 = vadd.f32 %v1001, %v1175
      %v1188 = vld [vmem:[%s233 + $0x4] sm:$0xe]
      %v1189 = vld [vmem:[%s233 + $0x8] sm:$0xf]
      %v1190 = vld [vmem:[%s233 + $0xc] sm:$0xf]
      %v1191 = vld [vmem:[%s233 + $0x10] sm:$0xf]
      %v1192 = vld [vmem:[%s233 + $0x14] sm:$0xf]
      %v1193 = vld [vmem:[%s233 + $0x18] sm:$0xf]
      %v1194 = vld [vmem:[%s233 + $0x1c] sm:$0xf]
      %v1195 = vld [vmem:[%s233 + $0x20] sm:$0xf]
      %v1196 = vld [vmem:[%s233 + $0x24] sm:$0xf]
      %v1197 = vld [vmem:[%s233 + $0x28] sm:$0xf]
      %v1198 = vld [vmem:[%s233 + $0x2c] sm:$0x1]
      %s1199 = scalar_lea.vmem %s1, 12
      %v1200 = vld [vmem:[%s1199] sm:$0x3]
      %v1212 = vunpack.c.l.b16 %v1188
      %v1213 = vunpack.c.l.b16 %v1189
      %v1214 = vunpack.c.l.b16 %v1190
      %v1215 = vunpack.c.l.b16 %v1191
      %v1216 = vunpack.c.l.b16 %v1192
      %v1217 = vunpack.c.l.b16 %v1193
      %v1218 = vunpack.c.l.b16 %v1194
      %v1219 = vunpack.c.l.b16 %v1195
      %v1220 = vunpack.c.l.b16 %v1196
      %v1221 = vunpack.c.l.b16 %v1197
      %v1222 = vunpack.c.l.b16 %v1198
      %v1223 = vpack.c.b16 %v1213, %v1212
      %v1224 = vpack.c.b16 %v1215, %v1214
      %v1225 = vpack.c.b16 %v1217, %v1216
      %v1226 = vpack.c.b16 %v1219, %v1218
      %v1227 = vpack.c.b16 %v1221, %v1220
      %v1228 = vpack.c.b16 %v1222, %v1222
      %vm1229 = vcmask 1046528
      %v1230 = vrot.slane %v1223, 1
      %v1231 = vrot.slane %v1224, 1
      %v1232 = vsel %vm1229, %v1230, %v1231
      %v1233 = vrot.slane %v1225, 1
      %v1234 = vsel %vm1229, %v1231, %v1233
      %v1235 = vrot.slane %v1226, 1
      %v1236 = vsel %vm1229, %v1233, %v1235
      %v1237 = vrot.slane %v1227, 1
      %v1238 = vsel %vm1229, %v1235, %v1237
      %v1239 = vrot.slane %v1228, 1
      %v1240 = vsel %vm1229, %v1237, %v1239
      %v1242 = vsel %vm315, %v1232, 0
      %v1245 = vsel %vm315, %v1234, 0
      %v1248 = vsel %vm315, %v1236, 0
      %v1251 = vsel %vm315, %v1238, 0
      %v1254 = vsel %vm315, %v1240, 0
      %v1257 = vsel %vm331, %v1200, 0
      %1259 = vmatprep.subr.bf16.mxu0 0
      %1260 = vmatpush1.bf16.msra.mxu0 0
      %1261 = vmatprep.subr.bf16.mxu0 0
      %1262 = vmatpush1.bf16.msra.mxu0 0
      %1263 = vmatprep.subr.bf16.mxu0 0
      %1264 = vmatpush1.bf16.msra.mxu0 0
      %1265 = vmatprep.subr.bf16.mxu0 0
      %1266 = vmatpush1.bf16.msra.mxu0 0
      %1267 = vmatprep.subr.bf16.mxu0 0
      %1268 = vmatpush1.bf16.msra.mxu0 0
      %1269 = vmatprep.subr.bf16.mxu0 0
      %1270 = vmatpush1.bf16.msra.mxu0 0
      %1271 = vmatprep.subr.bf16.mxu0 0
      %1272 = vmatpush1.bf16.msra.mxu0 0
      %1273 = vmatprep.subr.bf16.mxu0 0
      %1274 = vmatpush1.bf16.msra.mxu0 %v1257
      %1275 = vmatprep.subr.bf16.mxu0 0
      %1276 = vmatpush2.bf16.msra.mxu0 0
      %1277 = vmatprep.subr.bf16.mxu0 0
      %1278 = vmatpush2.bf16.msra.mxu0 0
      %1279 = vmatprep.subr.bf16.mxu0 0
      %1280 = vmatpush2.bf16.msra.mxu0 0
      %1281 = vmatprep.subr.bf16.mxu0 0
      %1282 = vmatpush2.bf16.msra.mxu0 0
      %1283 = vmatprep.subr.bf16.mxu0 0
      %1284 = vmatpush2.bf16.msra.mxu0 0
      %1285 = vmatprep.subr.bf16.mxu0 0
      %1286 = vmatpush2.bf16.msra.mxu0 0
      %1287 = vmatprep.subr.bf16.mxu0 0
      %1288 = vmatpush2.bf16.msra.mxu0 0
      %1289 = vmatprep.subr.bf16.mxu0 0
      %1290 = vmatpush2.bf16.msra.mxu0 0
      %1291 = vmatprep.mubr.bf16.mxu0 0
      %1292 = vmatmul.mubr.bf16.gmra.mxu0 %v1242
      %v1293 = vpop.f32.mrf.mxu0
      %v1294 = vadd.f32 0.0, %v1293
      %v1295 = vpop.f32.mrf.mxu0
      %v1296 = vpop.f32.mrf.mxu0
      %v1297 = vadd.f32 0.0, %v1296
      %v1298 = vpop.f32.mrf.mxu0
      %1299 = vmatprep.mubr.bf16.mxu0 0
      %1300 = vmatmul.mubr.bf16.gmra.mxu0 %v1245
      %v1301 = vpop.f32.mrf.mxu0
      %v1302 = vadd.f32 0.0, %v1301
      %v1303 = vpop.f32.mrf.mxu0
      %v1304 = vpop.f32.mrf.mxu0
      %v1305 = vadd.f32 0.0, %v1304
      %v1306 = vpop.f32.mrf.mxu0
      %1307 = vmatprep.mubr.bf16.mxu0 0
      %1308 = vmatmul.mubr.bf16.gmra.mxu0 %v1248
      %v1309 = vpop.f32.mrf.mxu0
      %v1310 = vadd.f32 0.0, %v1309
      %v1311 = vpop.f32.mrf.mxu0
      %v1312 = vpop.f32.mrf.mxu0
      %v1313 = vadd.f32 0.0, %v1312
      %v1314 = vpop.f32.mrf.mxu0
      %1315 = vmatprep.mubr.bf16.mxu0 0
      %1316 = vmatmul.mubr.bf16.gmra.mxu0 %v1251
      %v1317 = vpop.f32.mrf.mxu0
      %v1318 = vadd.f32 0.0, %v1317
      %v1319 = vpop.f32.mrf.mxu0
      %v1320 = vpop.f32.mrf.mxu0
      %v1321 = vadd.f32 0.0, %v1320
      %v1322 = vpop.f32.mrf.mxu0
      %1323 = vmatprep.mubr.bf16.mxu0 0
      %1324 = vmatmul.mubr.bf16.gmra.mxu0 %v1254
      %v1325 = vpop.f32.mrf.mxu0
      %v1326 = vadd.f32 0.0, %v1325
      %v1327 = vpop.f32.mrf.mxu0
      %v1328 = vpop.f32.mrf.mxu0
      %v1329 = vadd.f32 0.0, %v1328
      %v1330 = vpop.f32.mrf.mxu0
      %1331 = vdwg.mxu0
      %v1332 = vadd.f32 %v1178, %v1294
      %v1333 = vadd.f32 %v1179, %v1297
      %v1334 = vadd.f32 %v1180, %v1302
      %v1335 = vadd.f32 %v1181, %v1305
      %v1336 = vadd.f32 %v1182, %v1310
      %v1337 = vadd.f32 %v1183, %v1313
      %v1338 = vadd.f32 %v1184, %v1318
      %v1339 = vadd.f32 %v1185, %v1321
      %v1340 = vadd.f32 %v1186, %v1326
      %v1341 = vadd.f32 %v1187, %v1329
      %v1342 = vld [vmem:[%s233 + $0x34] sm:$0x8]
      %v1343 = vld [vmem:[%s233 + $0x38] sm:$0xf]
      %v1344 = vld [vmem:[%s233 + $0x3c] sm:$0xf]
      %v1345 = vld [vmem:[%s233 + $0x40] sm:$0xf]
      %v1346 = vld [vmem:[%s233 + $0x44] sm:$0xf]
      %v1347 = vld [vmem:[%s233 + $0x48] sm:$0xf]
      %v1348 = vld [vmem:[%s233 + $0x4c] sm:$0xf]
      %v1349 = vld [vmem:[%s233 + $0x50] sm:$0xf]
      %v1350 = vld [vmem:[%s233 + $0x54] sm:$0xf]
      %v1351 = vld [vmem:[%s233 + $0x58] sm:$0xf]
      %v1352 = vld [vmem:[%s233 + $0x5c] sm:$0x7]
      %s1353 = scalar_lea.vmem %s1, 14
      %v1354 = vld [vmem:[%s1353] sm:$0x3]
      %v1366 = vunpack.c.l.b16 %v1342
      %v1367 = vunpack.c.l.b16 %v1343
      %v1368 = vunpack.c.l.b16 %v1344
      %v1369 = vunpack.c.l.b16 %v1345
      %v1370 = vunpack.c.l.b16 %v1346
      %v1371 = vunpack.c.l.b16 %v1347
      %v1372 = vunpack.c.l.b16 %v1348
      %v1373 = vunpack.c.l.b16 %v1349
      %v1374 = vunpack.c.l.b16 %v1350
      %v1375 = vunpack.c.l.b16 %v1351
      %v1376 = vunpack.c.l.b16 %v1352
      %v1377 = vpack.c.b16 %v1367, %v1366
      %v1378 = vpack.c.b16 %v1369, %v1368
      %v1379 = vpack.c.b16 %v1371, %v1370
      %v1380 = vpack.c.b16 %v1373, %v1372
      %v1381 = vpack.c.b16 %v1375, %v1374
      %v1382 = vpack.c.b16 %v1376, %v1376
      %vm1383 = vcmask 1044480
      %v1384 = vrot.slane %v1377, 3
      %v1385 = vrot.slane %v1378, 3
      %v1386 = vsel %vm1383, %v1384, %v1385
      %v1387 = vrot.slane %v1379, 3
      %v1388 = vsel %vm1383, %v1385, %v1387
      %v1389 = vrot.slane %v1380, 3
      %v1390 = vsel %vm1383, %v1387, %v1389
      %v1391 = vrot.slane %v1381, 3
      %v1392 = vsel %vm1383, %v1389, %v1391
      %v1393 = vrot.slane %v1382, 3
      %v1394 = vsel %vm1383, %v1391, %v1393
      %v1396 = vsel %vm315, %v1386, 0
      %v1399 = vsel %vm315, %v1388, 0
      %v1402 = vsel %vm315, %v1390, 0
      %v1405 = vsel %vm315, %v1392, 0
      %v1408 = vsel %vm315, %v1394, 0
      %v1411 = vsel %vm331, %v1354, 0
      %1413 = vmatprep.subr.bf16.mxu0 0
      %1414 = vmatpush1.bf16.msra.mxu0 0
      %1415 = vmatprep.subr.bf16.mxu0 0
      %1416 = vmatpush1.bf16.msra.mxu0 0
      %1417 = vmatprep.subr.bf16.mxu0 0
      %1418 = vmatpush1.bf16.msra.mxu0 0
      %1419 = vmatprep.subr.bf16.mxu0 0
      %1420 = vmatpush1.bf16.msra.mxu0 0
      %1421 = vmatprep.subr.bf16.mxu0 0
      %1422 = vmatpush1.bf16.msra.mxu0 0
      %1423 = vmatprep.subr.bf16.mxu0 0
      %1424 = vmatpush1.bf16.msra.mxu0 0
      %1425 = vmatprep.subr.bf16.mxu0 0
      %1426 = vmatpush1.bf16.msra.mxu0 0
      %1427 = vmatprep.subr.bf16.mxu0 0
      %1428 = vmatpush1.bf16.msra.mxu0 %v1411
      %1429 = vmatprep.subr.bf16.mxu0 0
      %1430 = vmatpush2.bf16.msra.mxu0 0
      %1431 = vmatprep.subr.bf16.mxu0 0
      %1432 = vmatpush2.bf16.msra.mxu0 0
      %1433 = vmatprep.subr.bf16.mxu0 0
      %1434 = vmatpush2.bf16.msra.mxu0 0
      %1435 = vmatprep.subr.bf16.mxu0 0
      %1436 = vmatpush2.bf16.msra.mxu0 0
      %1437 = vmatprep.subr.bf16.mxu0 0
      %1438 = vmatpush2.bf16.msra.mxu0 0
      %1439 = vmatprep.subr.bf16.mxu0 0
      %1440 = vmatpush2.bf16.msra.mxu0 0
      %1441 = vmatprep.subr.bf16.mxu0 0
      %1442 = vmatpush2.bf16.msra.mxu0 0
      %1443 = vmatprep.subr.bf16.mxu0 0
      %1444 = vmatpush2.bf16.msra.mxu0 0
      %1445 = vmatprep.mubr.bf16.mxu0 0
      %1446 = vmatmul.mubr.bf16.gmra.mxu0 %v1396
      %v1447 = vpop.f32.mrf.mxu0
      %v1448 = vadd.f32 0.0, %v1447
      %v1449 = vpop.f32.mrf.mxu0
      %v1450 = vpop.f32.mrf.mxu0
      %v1451 = vadd.f32 0.0, %v1450
      %v1452 = vpop.f32.mrf.mxu0
      %1453 = vmatprep.mubr.bf16.mxu0 0
      %1454 = vmatmul.mubr.bf16.gmra.mxu0 %v1399
      %v1455 = vpop.f32.mrf.mxu0
      %v1456 = vadd.f32 0.0, %v1455
      %v1457 = vpop.f32.mrf.mxu0
      %v1458 = vpop.f32.mrf.mxu0
      %v1459 = vadd.f32 0.0, %v1458
      %v1460 = vpop.f32.mrf.mxu0
      %1461 = vmatprep.mubr.bf16.mxu0 0
      %1462 = vmatmul.mubr.bf16.gmra.mxu0 %v1402
      %v1463 = vpop.f32.mrf.mxu0
      %v1464 = vadd.f32 0.0, %v1463
      %v1465 = vpop.f32.mrf.mxu0
      %v1466 = vpop.f32.mrf.mxu0
      %v1467 = vadd.f32 0.0, %v1466
      %v1468 = vpop.f32.mrf.mxu0
      %1469 = vmatprep.mubr.bf16.mxu0 0
      %1470 = vmatmul.mubr.bf16.gmra.mxu0 %v1405
      %v1471 = vpop.f32.mrf.mxu0
      %v1472 = vadd.f32 0.0, %v1471
      %v1473 = vpop.f32.mrf.mxu0
      %v1474 = vpop.f32.mrf.mxu0
      %v1475 = vadd.f32 0.0, %v1474
      %v1476 = vpop.f32.mrf.mxu0
      %1477 = vmatprep.mubr.bf16.mxu0 0
      %1478 = vmatmul.mubr.bf16.gmra.mxu0 %v1408
      %v1479 = vpop.f32.mrf.mxu0
      %v1480 = vadd.f32 0.0, %v1479
      %v1481 = vpop.f32.mrf.mxu0
      %v1482 = vpop.f32.mrf.mxu0
      %v1483 = vadd.f32 0.0, %v1482
      %v1484 = vpop.f32.mrf.mxu0
      %1485 = vdwg.mxu0
      %v1486 = vadd.f32 %v1332, %v1448
      %v1487 = vadd.f32 %v1333, %v1451
      %v1488 = vadd.f32 %v1334, %v1456
      %v1489 = vadd.f32 %v1335, %v1459
      %v1490 = vadd.f32 %v1336, %v1464
      %v1491 = vadd.f32 %v1337, %v1467
      %v1492 = vadd.f32 %v1338, %v1472
      %v1493 = vadd.f32 %v1339, %v1475
      %v1494 = vadd.f32 %v1340, %v1480
      %v1495 = vadd.f32 %v1341, %v1483
      %v1496 = vld [vmem:[%s233 + $0x2c] sm:$0x3]
      %s1497 = scalar_lea.vmem %s1, 16
      %v1498 = vld [vmem:[%s1497] sm:$0x3]
      %v1500 = vunpack.c.l.b16 %v1496
      %v1501 = vpack.c.b16 %v1500, %v1500
      %vm1502 = vsmask.f32 6400
      %v1504 = vshrl.u32 %v1223, 16
      %v1506 = vrot.slane %v1504, 1
      %v1507 = vshll.u32 %v1223, 16
      %v1509 = vrot.slane %v1507, 2
      %v1510 = vor.u32 %v1506, %v1509
      %v1512 = vshrl.u32 %v1224, 16
      %v1514 = vrot.slane %v1512, 1
      %v1515 = vshll.u32 %v1224, 16
      %v1517 = vrot.slane %v1515, 2
      %v1518 = vor.u32 %v1514, %v1517
      %v1519 = vsel %vm1502, %v1510, %v1518
      %v1521 = vshrl.u32 %v1225, 16
      %v1523 = vrot.slane %v1521, 1
      %v1524 = vshll.u32 %v1225, 16
      %v1526 = vrot.slane %v1524, 2
      %v1527 = vor.u32 %v1523, %v1526
      %v1528 = vsel %vm1502, %v1518, %v1527
      %v1530 = vshrl.u32 %v1226, 16
      %v1532 = vrot.slane %v1530, 1
      %v1533 = vshll.u32 %v1226, 16
      %v1535 = vrot.slane %v1533, 2
      %v1536 = vor.u32 %v1532, %v1535
      %v1537 = vsel %vm1502, %v1527, %v1536
      %v1539 = vshrl.u32 %v1227, 16
      %v1541 = vrot.slane %v1539, 1
      %v1542 = vshll.u32 %v1227, 16
      %v1544 = vrot.slane %v1542, 2
      %v1545 = vor.u32 %v1541, %v1544
      %v1546 = vsel %vm1502, %v1536, %v1545
      %v1548 = vshrl.u32 %v1501, 16
      %v1550 = vrot.slane %v1548, 1
      %v1551 = vshll.u32 %v1501, 16
      %v1553 = vrot.slane %v1551, 2
      %v1554 = vor.u32 %v1550, %v1553
      %v1555 = vsel %vm1502, %v1545, %v1554
      %v1557 = vsel %vm315, %v1519, 0
      %v1560 = vsel %vm315, %v1528, 0
      %v1563 = vsel %vm315, %v1537, 0
      %v1566 = vsel %vm315, %v1546, 0
      %v1569 = vsel %vm315, %v1555, 0
      %v1572 = vsel %vm331, %v1498, 0
      %1574 = vmatprep.subr.bf16.mxu0 0
      %1575 = vmatpush1.bf16.msra.mxu0 0
      %1576 = vmatprep.subr.bf16.mxu0 0
      %1577 = vmatpush1.bf16.msra.mxu0 0
      %1578 = vmatprep.subr.bf16.mxu0 0
      %1579 = vmatpush1.bf16.msra.mxu0 0
      %1580 = vmatprep.subr.bf16.mxu0 0
      %1581 = vmatpush1.bf16.msra.mxu0 0
      %1582 = vmatprep.subr.bf16.mxu0 0
      %1583 = vmatpush1.bf16.msra.mxu0 0
      %1584 = vmatprep.subr.bf16.mxu0 0
      %1585 = vmatpush1.bf16.msra.mxu0 0
      %1586 = vmatprep.subr.bf16.mxu0 0
      %1587 = vmatpush1.bf16.msra.mxu0 0
      %1588 = vmatprep.subr.bf16.mxu0 0
      %1589 = vmatpush1.bf16.msra.mxu0 %v1572
      %1590 = vmatprep.subr.bf16.mxu0 0
      %1591 = vmatpush2.bf16.msra.mxu0 0
      %1592 = vmatprep.subr.bf16.mxu0 0
      %1593 = vmatpush2.bf16.msra.mxu0 0
      %1594 = vmatprep.subr.bf16.mxu0 0
      %1595 = vmatpush2.bf16.msra.mxu0 0
      %1596 = vmatprep.subr.bf16.mxu0 0
      %1597 = vmatpush2.bf16.msra.mxu0 0
      %1598 = vmatprep.subr.bf16.mxu0 0
      %1599 = vmatpush2.bf16.msra.mxu0 0
      %1600 = vmatprep.subr.bf16.mxu0 0
      %1601 = vmatpush2.bf16.msra.mxu0 0
      %1602 = vmatprep.subr.bf16.mxu0 0
      %1603 = vmatpush2.bf16.msra.mxu0 0
      %1604 = vmatprep.subr.bf16.mxu0 0
      %1605 = vmatpush2.bf16.msra.mxu0 0
      %1606 = vmatprep.mubr.bf16.mxu0 0
      %1607 = vmatmul.mubr.bf16.gmra.mxu0 %v1557
      %v1608 = vpop.f32.mrf.mxu0
      %v1609 = vadd.f32 0.0, %v1608
      %v1610 = vpop.f32.mrf.mxu0
      %v1611 = vpop.f32.mrf.mxu0
      %v1612 = vadd.f32 0.0, %v1611
      %v1613 = vpop.f32.mrf.mxu0
      %1614 = vmatprep.mubr.bf16.mxu0 0
      %1615 = vmatmul.mubr.bf16.gmra.mxu0 %v1560
      %v1616 = vpop.f32.mrf.mxu0
      %v1617 = vadd.f32 0.0, %v1616
      %v1618 = vpop.f32.mrf.mxu0
      %v1619 = vpop.f32.mrf.mxu0
      %v1620 = vadd.f32 0.0, %v1619
      %v1621 = vpop.f32.mrf.mxu0
      %1622 = vmatprep.mubr.bf16.mxu0 0
      %1623 = vmatmul.mubr.bf16.gmra.mxu0 %v1563
      %v1624 = vpop.f32.mrf.mxu0
      %v1625 = vadd.f32 0.0, %v1624
      %v1626 = vpop.f32.mrf.mxu0
      %v1627 = vpop.f32.mrf.mxu0
      %v1628 = vadd.f32 0.0, %v1627
      %v1629 = vpop.f32.mrf.mxu0
      %1630 = vmatprep.mubr.bf16.mxu0 0
      %1631 = vmatmul.mubr.bf16.gmra.mxu0 %v1566
      %v1632 = vpop.f32.mrf.mxu0
      %v1633 = vadd.f32 0.0, %v1632
      %v1634 = vpop.f32.mrf.mxu0
      %v1635 = vpop.f32.mrf.mxu0
      %v1636 = vadd.f32 0.0, %v1635
      %v1637 = vpop.f32.mrf.mxu0
      %1638 = vmatprep.mubr.bf16.mxu0 0
      %1639 = vmatmul.mubr.bf16.gmra.mxu0 %v1569
      %v1640 = vpop.f32.mrf.mxu0
      %v1641 = vadd.f32 0.0, %v1640
      %v1642 = vpop.f32.mrf.mxu0
      %v1643 = vpop.f32.mrf.mxu0
      %v1644 = vadd.f32 0.0, %v1643
      %v1645 = vpop.f32.mrf.mxu0
      %1646 = vdwg.mxu0
      %v1647 = vadd.f32 %v1486, %v1609
      %v1648 = vadd.f32 %v1487, %v1612
      %v1649 = vadd.f32 %v1488, %v1617
      %v1650 = vadd.f32 %v1489, %v1620
      %v1651 = vadd.f32 %v1490, %v1625
      %v1652 = vadd.f32 %v1491, %v1628
      %v1653 = vadd.f32 %v1492, %v1633
      %v1654 = vadd.f32 %v1493, %v1636
      %v1655 = vadd.f32 %v1494, %v1641
      %v1656 = vadd.f32 %v1495, %v1644
      %1657 = vst [vmem:[%s238] sm:$0xff] %v1647
      %1658 = vst [vmem:[%s238 + $0x8] sm:$0xff] %v1648
      %1659 = vst [vmem:[%s238 + $0x10] sm:$0xff] %v1649
      %1660 = vst [vmem:[%s238 + $0x18] sm:$0xff] %v1650
      %1661 = vst [vmem:[%s238 + $0x20] sm:$0xff] %v1651
      %1662 = vst [vmem:[%s238 + $0x28] sm:$0xff] %v1652
      %1663 = vst [vmem:[%s238 + $0x30] sm:$0xff] %v1653
      %1664 = vst [vmem:[%s238 + $0x38] sm:$0xff] %v1654
      %1665 = vst [vmem:[%s238 + $0x40] sm:$0xff] %v1655
      %1666 = vst [vmem:[%s238 + $0x48] sm:$0xff] %v1656
      %v1667 = vlaneseq
      %v1668 = vshrl.u32 %v1667, 7
      %v1669 = vadd.s32 %v1668, 8
      %v1670 = vadd.s32 %v1668, 16
      %v1671 = vadd.s32 %v1668, 24
      %v1672 = vadd.s32 %v1668, 32
      %v1673 = vadd.s32 %v1668, 40
      %v1674 = vadd.s32 %v1668, 48
      %v1675 = vadd.s32 %v1668, 56
      %v1676 = vadd.s32 %v1668, 64
      %v1677 = vadd.s32 %v1668, 72
      %vm1678 = vcmp.lt.s32.totalorder %v1668, 0
      %v1679 = vsub.s32 0, %v1668
      %v1680 = vsel %vm1678, %v1679, %v1668
      %v1681 = vmul.u32.u64.compose %v1680, 3435973837
      %v1682 = vextract.low.u32 %v1681
      %v1683 = vextract.high.u32 %v1681
      %v1684 = vshrl.u32 %v1683, 3
      %v1685 = vmul.u32 %v1684, 10
      %v1686 = vsub.s32 %v1680, %v1685
      %v1687 = vsub.s32 0, %v1686
      %v1688 = vsel %vm1678, %v1687, %v1686
      %vm1689 = vcmp.lt.s32.totalorder %v1669, 0
      %v1690 = vsub.s32 0, %v1669
      %v1691 = vsel %vm1689, %v1690, %v1669
      %v1692 = vmul.u32.u64.compose %v1691, 3435973837
      %v1693 = vextract.low.u32 %v1692
      %v1694 = vextract.high.u32 %v1692
      %v1695 = vshrl.u32 %v1694, 3
      %v1696 = vmul.u32 %v1695, 10
      %v1697 = vsub.s32 %v1691, %v1696
      %v1698 = vsub.s32 0, %v1697
      %v1699 = vsel %vm1689, %v1698, %v1697
      %vm1700 = vcmp.lt.s32.totalorder %v1670, 0
      %v1701 = vsub.s32 0, %v1670
      %v1702 = vsel %vm1700, %v1701, %v1670
      %v1703 = vmul.u32.u64.compose %v1702, 3435973837
      %v1704 = vextract.low.u32 %v1703
      %v1705 = vextract.high.u32 %v1703
      %v1706 = vshrl.u32 %v1705, 3
      %v1707 = vmul.u32 %v1706, 10
      %v1708 = vsub.s32 %v1702, %v1707
      %v1709 = vsub.s32 0, %v1708
      %v1710 = vsel %vm1700, %v1709, %v1708
      %vm1711 = vcmp.lt.s32.totalorder %v1671, 0
      %v1712 = vsub.s32 0, %v1671
      %v1713 = vsel %vm1711, %v1712, %v1671
      %v1714 = vmul.u32.u64.compose %v1713, 3435973837
      %v1715 = vextract.low.u32 %v1714
      %v1716 = vextract.high.u32 %v1714
      %v1717 = vshrl.u32 %v1716, 3
      %v1718 = vmul.u32 %v1717, 10
      %v1719 = vsub.s32 %v1713, %v1718
      %v1720 = vsub.s32 0, %v1719
      %v1721 = vsel %vm1711, %v1720, %v1719
      %vm1722 = vcmp.lt.s32.totalorder %v1672, 0
      %v1723 = vsub.s32 0, %v1672
      %v1724 = vsel %vm1722, %v1723, %v1672
      %v1725 = vmul.u32.u64.compose %v1724, 3435973837
      %v1726 = vextract.low.u32 %v1725
      %v1727 = vextract.high.u32 %v1725
      %v1728 = vshrl.u32 %v1727, 3
      %v1729 = vmul.u32 %v1728, 10
      %v1730 = vsub.s32 %v1724, %v1729
      %v1731 = vsub.s32 0, %v1730
      %v1732 = vsel %vm1722, %v1731, %v1730
      %vm1733 = vcmp.lt.s32.totalorder %v1673, 0
      %v1734 = vsub.s32 0, %v1673
      %v1735 = vsel %vm1733, %v1734, %v1673
      %v1736 = vmul.u32.u64.compose %v1735, 3435973837
      %v1737 = vextract.low.u32 %v1736
      %v1738 = vextract.high.u32 %v1736
      %v1739 = vshrl.u32 %v1738, 3
      %v1740 = vmul.u32 %v1739, 10
      %v1741 = vsub.s32 %v1735, %v1740
      %v1742 = vsub.s32 0, %v1741
      %v1743 = vsel %vm1733, %v1742, %v1741
      %vm1744 = vcmp.lt.s32.totalorder %v1674, 0
      %v1745 = vsub.s32 0, %v1674
      %v1746 = vsel %vm1744, %v1745, %v1674
      %v1747 = vmul.u32.u64.compose %v1746, 3435973837
      %v1748 = vextract.low.u32 %v1747
      %v1749 = vextract.high.u32 %v1747
      %v1750 = vshrl.u32 %v1749, 3
      %v1751 = vmul.u32 %v1750, 10
      %v1752 = vsub.s32 %v1746, %v1751
      %v1753 = vsub.s32 0, %v1752
      %v1754 = vsel %vm1744, %v1753, %v1752
      %vm1755 = vcmp.lt.s32.totalorder %v1675, 0
      %v1756 = vsub.s32 0, %v1675
      %v1757 = vsel %vm1755, %v1756, %v1675
      %v1758 = vmul.u32.u64.compose %v1757, 3435973837
      %v1759 = vextract.low.u32 %v1758
      %v1760 = vextract.high.u32 %v1758
      %v1761 = vshrl.u32 %v1760, 3
      %v1762 = vmul.u32 %v1761, 10
      %v1763 = vsub.s32 %v1757, %v1762
      %v1764 = vsub.s32 0, %v1763
      %v1765 = vsel %vm1755, %v1764, %v1763
      %vm1766 = vcmp.lt.s32.totalorder %v1676, 0
      %v1767 = vsub.s32 0, %v1676
      %v1768 = vsel %vm1766, %v1767, %v1676
      %v1769 = vmul.u32.u64.compose %v1768, 3435973837
      %v1770 = vextract.low.u32 %v1769
      %v1771 = vextract.high.u32 %v1769
      %v1772 = vshrl.u32 %v1771, 3
      %v1773 = vmul.u32 %v1772, 10
      %v1774 = vsub.s32 %v1768, %v1773
      %v1775 = vsub.s32 0, %v1774
      %v1776 = vsel %vm1766, %v1775, %v1774
      %vm1777 = vcmp.lt.s32.totalorder %v1677, 0
      %v1778 = vsub.s32 0, %v1677
      %v1779 = vsel %vm1777, %v1778, %v1677
      %v1780 = vmul.u32.u64.compose %v1779, 3435973837
      %v1781 = vextract.low.u32 %v1780
      %v1782 = vextract.high.u32 %v1780
      %v1783 = vshrl.u32 %v1782, 3
      %v1784 = vmul.u32 %v1783, 10
      %v1785 = vsub.s32 %v1779, %v1784
      %v1786 = vsub.s32 0, %v1785
      %v1787 = vsel %vm1777, %v1786, %v1785
      %vm1788 = vcmp.ne.s32.totalorder %v1688, 0
      %vm1789 = vcmp.ne.s32.totalorder %v1699, 0
      %vm1790 = vcmp.ne.s32.totalorder %v1710, 0
      %vm1791 = vcmp.ne.s32.totalorder %v1721, 0
      %vm1792 = vcmp.ne.s32.totalorder %v1732, 0
      %vm1793 = vcmp.ne.s32.totalorder %v1743, 0
      %vm1794 = vcmp.ne.s32.totalorder %v1754, 0
      %vm1795 = vcmp.ne.s32.totalorder %v1765, 0
      %vm1796 = vcmp.ne.s32.totalorder %v1776, 0
      %vm1797 = vcmp.ne.s32.totalorder %v1787, 0
      %vm1798 = vcmp.lt.s32.totalorder %v1688, 0
      %vm1799 = vcmp.lt.s32.totalorder %v1699, 0
      %vm1800 = vcmp.lt.s32.totalorder %v1710, 0
      %vm1801 = vcmp.lt.s32.totalorder %v1721, 0
      %vm1802 = vcmp.lt.s32.totalorder %v1732, 0
      %vm1803 = vcmp.lt.s32.totalorder %v1743, 0
      %vm1804 = vcmp.lt.s32.totalorder %v1754, 0
      %vm1805 = vcmp.lt.s32.totalorder %v1765, 0
      %vm1806 = vcmp.lt.s32.totalorder %v1776, 0
      %vm1807 = vcmp.lt.s32.totalorder %v1787, 0
      %vm1808 = vmand %vm1798, %vm1788
      %vm1809 = vmand %vm1799, %vm1789
      %vm1810 = vmand %vm1800, %vm1790
      %vm1811 = vmand %vm1801, %vm1791
      %vm1812 = vmand %vm1802, %vm1792
      %vm1813 = vmand %vm1803, %vm1793
      %vm1814 = vmand %vm1804, %vm1794
      %vm1815 = vmand %vm1805, %vm1795
      %vm1816 = vmand %vm1806, %vm1796
      %vm1817 = vmand %vm1807, %vm1797
      %v1818 = vadd.s32 %v1688, 10
      %v1819 = vadd.s32 %v1699, 10
      %v1820 = vadd.s32 %v1710, 10
      %v1821 = vadd.s32 %v1721, 10
      %v1822 = vadd.s32 %v1732, 10
      %v1823 = vadd.s32 %v1743, 10
      %v1824 = vadd.s32 %v1754, 10
      %v1825 = vadd.s32 %v1765, 10
      %v1826 = vadd.s32 %v1776, 10
      %v1827 = vadd.s32 %v1787, 10
      %v1828 = vsel %vm1808, %v1818, %v1688
      %v1829 = vsel %vm1809, %v1819, %v1699
      %v1830 = vsel %vm1810, %v1820, %v1710
      %v1831 = vsel %vm1811, %v1821, %v1721
      %v1832 = vsel %vm1812, %v1822, %v1732
      %v1833 = vsel %vm1813, %v1823, %v1743
      %v1834 = vsel %vm1814, %v1824, %v1754
      %v1835 = vsel %vm1815, %v1825, %v1765
      %v1836 = vsel %vm1816, %v1826, %v1776
      %v1837 = vsel %vm1817, %v1827, %v1787
      %vm1838 = vcmp.lt.s32.totalorder %v1828, 8
      %vm1839 = vcmp.lt.s32.totalorder %v1829, 8
      %vm1840 = vcmp.lt.s32.totalorder %v1830, 8
      %vm1841 = vcmp.lt.s32.totalorder %v1831, 8
      %vm1842 = vcmp.lt.s32.totalorder %v1832, 8
      %vm1843 = vcmp.lt.s32.totalorder %v1833, 8
      %vm1844 = vcmp.lt.s32.totalorder %v1834, 8
      %vm1845 = vcmp.lt.s32.totalorder %v1835, 8
      %vm1846 = vcmp.lt.s32.totalorder %v1836, 8
      %vm1847 = vcmp.lt.s32.totalorder %v1837, 8
      %vm1848 = vcmp.lt.s32.totalorder %v1668, 80
      %vm1849 = vcmp.lt.s32.totalorder %v1669, 80
      %vm1850 = vcmp.lt.s32.totalorder %v1670, 80
      %vm1851 = vcmp.lt.s32.totalorder %v1671, 80
      %vm1852 = vcmp.lt.s32.totalorder %v1672, 80
      %vm1853 = vcmp.lt.s32.totalorder %v1673, 80
      %vm1854 = vcmp.lt.s32.totalorder %v1674, 80
      %vm1855 = vcmp.lt.s32.totalorder %v1675, 80
      %vm1856 = vcmp.lt.s32.totalorder %v1676, 80
      %vm1857 = vcmp.lt.s32.totalorder %v1677, 80
      %vm1858 = vmand %vm1838, %vm1848
      %vm1859 = vmand %vm1839, %vm1849
      %vm1860 = vmand %vm1840, %vm1850
      %vm1861 = vmand %vm1841, %vm1851
      %vm1862 = vmand %vm1842, %vm1852
      %vm1863 = vmand %vm1843, %vm1853
      %vm1864 = vmand %vm1844, %vm1854
      %vm1865 = vmand %vm1845, %vm1855
      %vm1866 = vmand %vm1846, %vm1856
      %vm1867 = vmand %vm1847, %vm1857
      %v1868 = vsel %vm1858, %v1647, 0.0
      %v1869 = vsel %vm1859, %v1648, 0.0
      %v1870 = vsel %vm1860, %v1649, 0.0
      %v1871 = vsel %vm1861, %v1650, 0.0
      %v1872 = vsel %vm1862, %v1651, 0.0
      %v1873 = vsel %vm1863, %v1652, 0.0
      %v1874 = vsel %vm1864, %v1653, 0.0
      %v1875 = vsel %vm1865, %v1654, 0.0
      %v1876 = vsel %vm1866, %v1655, 0.0
      %v1877 = vsel %vm1867, %v1656, 0.0
      %v1878 = vadd.f32 %v1868, %v1869
      %v1879 = vadd.f32 %v1878, %v1870
      %v1880 = vadd.f32 %v1879, %v1871
      %v1881 = vadd.f32 %v1880, %v1872
      %v1882 = vadd.f32 %v1881, %v1873
      %v1883 = vadd.f32 %v1882, %v1874
      %v1884 = vadd.f32 %v1883, %v1875
      %v1885 = vadd.f32 %v1884, %v1876
      %v1886 = vadd.f32 %v1885, %v1877
      %v1887 = vrot.slane %v1886, 4
      %v1888 = vadd.f32 %v1886, %v1887
      %v1889 = vrot.slane %v1888, 2
      %v1890 = vadd.f32 %v1888, %v1889
      %v1891 = vrot.slane %v1890, 1
      %v1892 = vadd.f32 %v1890, %v1891
      %v1893 = vmul.f32 %v1868, %v1868
      %v1894 = vmul.f32 %v1869, %v1869
      %v1895 = vmul.f32 %v1870, %v1870
      %v1896 = vmul.f32 %v1871, %v1871
      %v1897 = vmul.f32 %v1872, %v1872
      %v1898 = vmul.f32 %v1873, %v1873
      %v1899 = vmul.f32 %v1874, %v1874
      %v1900 = vmul.f32 %v1875, %v1875
      %v1901 = vmul.f32 %v1876, %v1876
      %v1902 = vmul.f32 %v1877, %v1877
      %v1903 = vadd.f32 %v1893, %v1894
      %v1904 = vadd.f32 %v1903, %v1895
      %v1905 = vadd.f32 %v1904, %v1896
      %v1906 = vadd.f32 %v1905, %v1897
      %v1907 = vadd.f32 %v1906, %v1898
      %v1908 = vadd.f32 %v1907, %v1899
      %v1909 = vadd.f32 %v1908, %v1900
      %v1910 = vadd.f32 %v1909, %v1901
      %v1911 = vadd.f32 %v1910, %v1902
      %v1912 = vrot.slane %v1911, 4
      %v1913 = vadd.f32 %v1911, %v1912
      %v1914 = vrot.slane %v1913, 2
      %v1915 = vadd.f32 %v1913, %v1914
      %v1916 = vrot.slane %v1915, 1
      %v1917 = vadd.f32 %v1915, %v1916
      %v1918 = vld [vmem:[%s233 + $0x94] sm:$0xc]
      %v1919 = vld [vmem:[%s233 + $0x98] sm:$0xf]
      %v1920 = vld [vmem:[%s233 + $0x9c] sm:$0xf]
      %v1921 = vld [vmem:[%s233 + $0xa0] sm:$0xf]
      %v1922 = vld [vmem:[%s233 + $0xa4] sm:$0xf]
      %v1923 = vld [vmem:[%s233 + $0xa8] sm:$0xf]
      %v1924 = vld [vmem:[%s233 + $0xac] sm:$0xf]
      %v1925 = vld [vmem:[%s233 + $0xb0] sm:$0xf]
      %v1926 = vld [vmem:[%s233 + $0xb4] sm:$0xf]
      %v1927 = vld [vmem:[%s233 + $0xb8] sm:$0xf]
      %v1928 = vld [vmem:[%s233 + $0xbc] sm:$0x3]
      %v1929 = vld [vmem:[%s2] sm:$0x3]
      %v1941 = vunpack.c.l.b16 %v1918
      %v1942 = vunpack.c.l.b16 %v1919
      %v1943 = vunpack.c.l.b16 %v1920
      %v1944 = vunpack.c.l.b16 %v1921
      %v1945 = vunpack.c.l.b16 %v1922
      %v1946 = vunpack.c.l.b16 %v1923
      %v1947 = vunpack.c.l.b16 %v1924
      %v1948 = vunpack.c.l.b16 %v1925
      %v1949 = vunpack.c.l.b16 %v1926
      %v1950 = vunpack.c.l.b16 %v1927
      %v1951 = vunpack.c.l.b16 %v1928
      %v1952 = vpack.c.b16 %v1942, %v1941
      %v1953 = vpack.c.b16 %v1944, %v1943
      %v1954 = vpack.c.b16 %v1946, %v1945
      %v1955 = vpack.c.b16 %v1948, %v1947
      %v1956 = vpack.c.b16 %v1950, %v1949
      %v1957 = vpack.c.b16 %v1951, %v1951
      %v1958 = vrot.slane %v1952, 2
      %v1959 = vrot.slane %v1953, 2
      %v1960 = vsel %vm303, %v1958, %v1959
      %v1961 = vrot.slane %v1954, 2
      %v1962 = vsel %vm303, %v1959, %v1961
      %v1963 = vrot.slane %v1955, 2
      %v1964 = vsel %vm303, %v1961, %v1963
      %v1965 = vrot.slane %v1956, 2
      %v1966 = vsel %vm303, %v1963, %v1965
      %v1967 = vrot.slane %v1957, 2
      %v1968 = vsel %vm303, %v1965, %v1967
      %v1970 = vsel %vm315, %v1960, 0
      %v1973 = vsel %vm315, %v1962, 0
      %v1976 = vsel %vm315, %v1964, 0
      %v1979 = vsel %vm315, %v1966, 0
      %v1982 = vsel %vm315, %v1968, 0
      %v1985 = vsel %vm331, %v1929, 0
      %1987 = vmatprep.subr.bf16.mxu0 0
      %1988 = vmatpush1.bf16.msra.mxu0 0
      %1989 = vmatprep.subr.bf16.mxu0 0
      %1990 = vmatpush1.bf16.msra.mxu0 0
      %1991 = vmatprep.subr.bf16.mxu0 0
      %1992 = vmatpush1.bf16.msra.mxu0 0
      %1993 = vmatprep.subr.bf16.mxu0 0
      %1994 = vmatpush1.bf16.msra.mxu0 0
      %1995 = vmatprep.subr.bf16.mxu0 0
      %1996 = vmatpush1.bf16.msra.mxu0 0
      %1997 = vmatprep.subr.bf16.mxu0 0
      %1998 = vmatpush1.bf16.msra.mxu0 0
      %1999 = vmatprep.subr.bf16.mxu0 0
      %2000 = vmatpush1.bf16.msra.mxu0 0
      %2001 = vmatprep.subr.bf16.mxu0 0
      %2002 = vmatpush1.bf16.msra.mxu0 %v1985
      %2003 = vmatprep.subr.bf16.mxu0 0
      %2004 = vmatpush2.bf16.msra.mxu0 0
      %2005 = vmatprep.subr.bf16.mxu0 0
      %2006 = vmatpush2.bf16.msra.mxu0 0
      %2007 = vmatprep.subr.bf16.mxu0 0
      %2008 = vmatpush2.bf16.msra.mxu0 0
      %2009 = vmatprep.subr.bf16.mxu0 0
      %2010 = vmatpush2.bf16.msra.mxu0 0
      %2011 = vmatprep.subr.bf16.mxu0 0
      %2012 = vmatpush2.bf16.msra.mxu0 0
      %2013 = vmatprep.subr.bf16.mxu0 0
      %2014 = vmatpush2.bf16.msra.mxu0 0
      %2015 = vmatprep.subr.bf16.mxu0 0
      %2016 = vmatpush2.bf16.msra.mxu0 0
      %2017 = vmatprep.subr.bf16.mxu0 0
      %2018 = vmatpush2.bf16.msra.mxu0 0
      %2019 = vmatprep.mubr.bf16.mxu0 0
      %2020 = vmatmul.mubr.bf16.gmra.mxu0 %v1970
      %v2021 = vpop.f32.mrf.mxu0
      %v2022 = vadd.f32 0.0, %v2021
      %v2023 = vpop.f32.mrf.mxu0
      %v2024 = vpop.f32.mrf.mxu0
      %v2025 = vadd.f32 0.0, %v2024
      %v2026 = vpop.f32.mrf.mxu0
      %2027 = vmatprep.mubr.bf16.mxu0 0
      %2028 = vmatmul.mubr.bf16.gmra.mxu0 %v1973
      %v2029 = vpop.f32.mrf.mxu0
      %v2030 = vadd.f32 0.0, %v2029
      %v2031 = vpop.f32.mrf.mxu0
      %v2032 = vpop.f32.mrf.mxu0
      %v2033 = vadd.f32 0.0, %v2032
      %v2034 = vpop.f32.mrf.mxu0
      %2035 = vmatprep.mubr.bf16.mxu0 0
      %2036 = vmatmul.mubr.bf16.gmra.mxu0 %v1976
      %v2037 = vpop.f32.mrf.mxu0
      %v2038 = vadd.f32 0.0, %v2037
      %v2039 = vpop.f32.mrf.mxu0
      %v2040 = vpop.f32.mrf.mxu0
      %v2041 = vadd.f32 0.0, %v2040
      %v2042 = vpop.f32.mrf.mxu0
      %2043 = vmatprep.mubr.bf16.mxu0 0
      %2044 = vmatmul.mubr.bf16.gmra.mxu0 %v1979
      %v2045 = vpop.f32.mrf.mxu0
      %v2046 = vadd.f32 0.0, %v2045
      %v2047 = vpop.f32.mrf.mxu0
      %v2048 = vpop.f32.mrf.mxu0
      %v2049 = vadd.f32 0.0, %v2048
      %v2050 = vpop.f32.mrf.mxu0
      %2051 = vmatprep.mubr.bf16.mxu0 0
      %2052 = vmatmul.mubr.bf16.gmra.mxu0 %v1982
      %v2053 = vpop.f32.mrf.mxu0
      %v2054 = vadd.f32 0.0, %v2053
      %v2055 = vpop.f32.mrf.mxu0
      %v2056 = vpop.f32.mrf.mxu0
      %v2057 = vadd.f32 0.0, %v2056
      %v2058 = vpop.f32.mrf.mxu0
      %2059 = vdwg.mxu0
      %2060 = vst [vmem:[%s244] sm:$0xff] %v2022
      %2061 = vst [vmem:[%s244 + $0x8] sm:$0xff] %v2025
      %2062 = vst [vmem:[%s244 + $0x10] sm:$0xff] %v2030
      %2063 = vst [vmem:[%s244 + $0x18] sm:$0xff] %v2033
      %2064 = vst [vmem:[%s244 + $0x20] sm:$0xff] %v2038
      %2065 = vst [vmem:[%s244 + $0x28] sm:$0xff] %v2041
      %2066 = vst [vmem:[%s244 + $0x30] sm:$0xff] %v2046
      %2067 = vst [vmem:[%s244 + $0x38] sm:$0xff] %v2049
      %2068 = vst [vmem:[%s244 + $0x40] sm:$0xff] %v2054
      %2069 = vst [vmem:[%s244 + $0x48] sm:$0xff] %v2057
      %v2070 = vsel %vm1858, %v2022, 0.0
      %v2071 = vsel %vm1859, %v2025, 0.0
      %v2072 = vsel %vm1860, %v2030, 0.0
      %v2073 = vsel %vm1861, %v2033, 0.0
      %v2074 = vsel %vm1862, %v2038, 0.0
      %v2075 = vsel %vm1863, %v2041, 0.0
      %v2076 = vsel %vm1864, %v2046, 0.0
      %v2077 = vsel %vm1865, %v2049, 0.0
      %v2078 = vsel %vm1866, %v2054, 0.0
      %v2079 = vsel %vm1867, %v2057, 0.0
      %v2080 = vadd.f32 %v2070, %v2071
      %v2081 = vadd.f32 %v2080, %v2072
      %v2082 = vadd.f32 %v2081, %v2073
      %v2083 = vadd.f32 %v2082, %v2074
      %v2084 = vadd.f32 %v2083, %v2075
      %v2085 = vadd.f32 %v2084, %v2076
      %v2086 = vadd.f32 %v2085, %v2077
      %v2087 = vadd.f32 %v2086, %v2078
      %v2088 = vadd.f32 %v2087, %v2079
      %v2089 = vrot.slane %v2088, 4
      %v2090 = vadd.f32 %v2088, %v2089
      %v2091 = vrot.slane %v2090, 2
      %v2092 = vadd.f32 %v2090, %v2091
      %v2093 = vrot.slane %v2092, 1
      %v2094 = vadd.f32 %v2092, %v2093
      %v2095 = vmul.f32 %v2070, %v2070
      %v2096 = vmul.f32 %v2071, %v2071
      %v2097 = vmul.f32 %v2072, %v2072
      %v2098 = vmul.f32 %v2073, %v2073
      %v2099 = vmul.f32 %v2074, %v2074
      %v2100 = vmul.f32 %v2075, %v2075
      %v2101 = vmul.f32 %v2076, %v2076
      %v2102 = vmul.f32 %v2077, %v2077
      %v2103 = vmul.f32 %v2078, %v2078
      %v2104 = vmul.f32 %v2079, %v2079
      %v2105 = vadd.f32 %v2095, %v2096
      %v2106 = vadd.f32 %v2105, %v2097
      %v2107 = vadd.f32 %v2106, %v2098
      %v2108 = vadd.f32 %v2107, %v2099
      %v2109 = vadd.f32 %v2108, %v2100
      %v2110 = vadd.f32 %v2109, %v2101
      %v2111 = vadd.f32 %v2110, %v2102
      %v2112 = vadd.f32 %v2111, %v2103
      %v2113 = vadd.f32 %v2112, %v2104
      %v2114 = vrot.slane %v2113, 4
      %v2115 = vadd.f32 %v2113, %v2114
      %v2116 = vrot.slane %v2115, 2
      %v2117 = vadd.f32 %v2115, %v2116
      %v2118 = vrot.slane %v2117, 1
      %v2119 = vadd.f32 %v2117, %v2118
      %vm2120 = vcmask 1040384
      %v2121 = vsel %vm2120, %v1892, %v1917
      %v2122 = vsel %vm331, %v2121, %v2094
      %vm2123 = vcmask 1042432
      %v2124 = vsel %vm2123, %v2122, %v2119
      %2125 = vst [vmem:[%s249] sm:$0xf] %v2124
      %s2126 = smul.u32 10, %s17
      %p2127 = scmp.lt.s32.totalorder %s2126, 19
      %s2128 = scalar_select %p2127, %s2126, 19
      %s2129 = smul.addr %s2128, 8
      %s2130 = scalar_lea.vmem %s3, %s2129
      %s2131 = smul.u32 10, %s17
      %p2132 = scmp.lt.s32.totalorder %s2131, 19
      %s2133 = scalar_select %p2132, %s2131, 19
      %s2134 = smul.addr %s2133, 8
      %s2135 = scalar_lea.vmem %s4, %s2134
      %p2136 = scmp.lt.s32.totalorder %s17, 1
      %s2137 = scalar_select %p2136, %s17, 1
      %s2138 = smul.addr %s2137, 4
      %s2139 = scalar_lea.vmem %s5, %s2138
      // Predicated region
      $region33: #{_residual_block.3} parent=31 // pred_check
        %p2140 = pneg %p103
      $region34: #{_residual_block.3} parent=31 // pred_check_branch
        %2142 = sbr.rel (%p2140) target = $region36
      $region35: #{_residual_block.3} parent=31 // pred_region
        %s2143 = smul.u32 10, %s17
      $region36: #{_residual_block.3} parent=31 // pred_fallthru
        _
      // Predicated region
      $region37: #{_residual_block.3} parent=31 // pred_check
        %p2144 = pneg %p129
      $region38: #{_residual_block.3} parent=31 // pred_check_branch
        %2146 = sbr.rel (%p2144) target = $region40
      $region39: #{_residual_block.3} parent=31 // pred_region
        %s2147 = smul.u32 10, %s17
      $region40: #{_residual_block.3} parent=31 // pred_fallthru
        _
      // Predicated region
      $region41: #{_residual_block.3} parent=31 // pred_check
        %p2148 = pneg %p155
      $region42: #{_residual_block.3} parent=31 // pred_check_branch
        %2150 = sbr.rel (%p2148) target = $region44
      $region43: #{_residual_block.3} parent=31 // pred_region
        _
      $region44: #{_residual_block.3} parent=31 // pred_fallthru
        _
    $region32: #{_residual_block.3} parent=5 // pred_fallthru
      _
    %p2151 = scmp.le.s32.totalorder 2, %s12
    // Predicated region
    $region45: #{_residual_block.3} parent=5 // pred_check
      %p2152 = pneg %p2151
    $region46: #{_residual_block.3} parent=5 // pred_check_branch
      %2154 = sbr.rel (%p2152) target = $region48
    $region47: #{_residual_block.3} parent=5 // pred_region
      %s2155 = ssub.s32 %s12, 2
      // Predicated region
      $region49: #{_residual_block.3} parent=47 // pred_check
        %p2156 = pneg %p109
      $region50: #{_residual_block.3} parent=47 // pred_check_branch
        %2158 = sbr.rel (%p2156) target = $region52
      $region51: #{_residual_block.3} parent=47 // pred_region
        %s2159 = smul.u32 10, %s18
        %p2160 = scmp.lt.s32.totalorder %s2159, 19
        %s2161 = scalar_select %p2160, %s2159, 19
        %s2162 = smul.addr %s2161, 8
        %s2163 = scalar_lea.vmem %s3, %s2162
      $region52: #{_residual_block.3} parent=47 // pred_fallthru
        _
      // Predicated region
      $region53: #{_residual_block.3} parent=47 // pred_check
        %p2164 = pneg %p135
      $region54: #{_residual_block.3} parent=47 // pred_check_branch
        %2166 = sbr.rel (%p2164) target = $region56
      $region55: #{_residual_block.3} parent=47 // pred_region
        %s2167 = smul.u32 10, %s18
        %p2168 = scmp.lt.s32.totalorder %s2167, 19
        %s2169 = scalar_select %p2168, %s2167, 19
        %s2170 = smul.addr %s2169, 8
        %s2171 = scalar_lea.vmem %s4, %s2170
      $region56: #{_residual_block.3} parent=47 // pred_fallthru
        _
      // Predicated region
      $region57: #{_residual_block.3} parent=47 // pred_check
        %p2172 = pneg %p161
      $region58: #{_residual_block.3} parent=47 // pred_check_branch
        %2174 = sbr.rel (%p2172) target = $region60
      $region59: #{_residual_block.3} parent=47 // pred_region
        %p2175 = scmp.lt.s32.totalorder %s18, 1
        %s2176 = scalar_select %p2175, %s18, 1
        %s2177 = smul.addr %s2176, 4
        %s2178 = scalar_lea.vmem %s5, %s2177
      $region60: #{_residual_block.3} parent=47 // pred_fallthru
        _
    $region48: #{_residual_block.3} parent=5 // pred_fallthru
      _
  $region6: #{_residual_block.3} parent=0 // loop_footer
    %s16 = sadd.s32 1, %s12
  $region7: #{_residual_block.3} parent=0 // loop_footer_branch
    %11 = sbr.rel target = $region3
  $region8: #{_residual_block.3} parent=0 // loop_exit
    _

// kernel: _residual_block.4
$region0: #{_residual_block.4}
  #allocation0 [shape = 'u32[]', space=smem, size = 0x4, offset = 0x4, fixed_abs, tag = 'smem constant byte address 0x4 - core index']
  #allocation1 [shape = 'u32[144,128]{1,0:T(1,128)}', space=vmem, size = 0x12000, scoped, tag = 'internal scratch']
  %s0 = inlined_call_operand.vmem [shape: bf16[2,110,128], index: 0, kind: input, shape index: {}]
  %s1 = inlined_call_operand.vmem [shape: bf16[9,128,128], index: 1, kind: input, shape index: {}]
  %s2 = inlined_call_operand.vmem [shape: f32[160,128], index: 2, kind: output, shape index: {0}]
  %s3 = inlined_call_operand.vmem [shape: f32[2,2,128], index: 3, kind: output, shape index: {1}]
  %4 = xla_tuple %s2, %s3
  %s5 = sld [smem:[#allocation0]]
  $region49: #{_residual_block.4} parent=0
    _
  %s7 = ssub.s32 1, %s5
  %s8 = scalar_select 0, %s7, %s5
  loop: start=0, step=1, limit=4
  $region2: #{_residual_block.4} parent=0 // loop_pre_header
    _
  $region3: #{_residual_block.4} parent=0 // loop_header
    %s10 = sphi 0, %s14
    %p11 = scmp.ge.s32.totalorder %s10, 4
    %s20 = sphi 0, %s22
    %s23 = sphi 0, %s20
    %s24 = sphi 0, %s23
    %s40 = sphi 0, %s24
    %s44 = sphi 0, %s44
    %s46 = sphi 0, %s44
    %s47 = sphi 0, %s46
    %s61 = sphi 0, %s47
    %s67 = sphi 0, %s69
    %s70 = sphi 0, %s67
    %s71 = sphi 0, %s70
    %s87 = sphi 0, %s71
    %s93 = sphi 0, %s95
    %s96 = sphi 0, %s93
    %s97 = sphi 0, %s96
    %s113 = sphi 0, %s97
  $region4: #{_residual_block.4} parent=0 // loop_header_branch
    %13 = sbr.rel (%p11) target = $region8
  $region5: #{_residual_block.4} parent=0 // loop_body
    %s15 = ssub.s32 %s10, 1
    %s16 = ssub.s32 %s10, 2
    %s17 = sadd.s32 %s10, 1
    %s18 = ssub.s32 %s10, %s17
    %p19 = scmp.eq.s32.totalorder %s18, 0
    %s21 = sadd.s32 %s20, 1
    %s22 = scalar_select %p19, %s20, %s21
    %p25 = pneg %p19
    %p26 = scmp.eq.s32.totalorder %s10, 1
    %p27 = por %p25, %p26
    %p28 = scmp.ne.s32.totalorder %s20, %s23
    %p29 = scmp.eq.s32.totalorder %s10, 0
    %p30 = por %p28, %p29
    %p31 = scmp.ne.s32.totalorder %s20, %s23
    %p32 = scmp.eq.s32.totalorder %s15, 1
    %p33 = por %p31, %p32
    %p34 = scmp.ne.s32.totalorder %s23, %s24
    %p35 = scmp.eq.s32.totalorder %s15, 0
    %p36 = por %p34, %p35
    %p37 = scmp.ne.s32.totalorder %s23, %s24
    %p38 = scmp.eq.s32.totalorder %s16, 1
    %p39 = por %p37, %p38
    %p41 = scmp.ne.s32.totalorder %s24, %s40
    %p42 = scmp.eq.s32.totalorder %s16, 0
    %p43 = por %p41, %p42
    %s45 = sadd.s32 %s44, 1
    %p48 = scmp.eq.s32.totalorder %s10, 1
    %p49 = scmp.ne.s32.totalorder %s44, %s46
    %p50 = scmp.eq.s32.totalorder %s10, 0
    %p51 = por %p49, %p50
    %p52 = scmp.ne.s32.totalorder %s44, %s46
    %p53 = scmp.eq.s32.totalorder %s15, 1
    %p54 = por %p52, %p53
    %p55 = scmp.ne.s32.totalorder %s46, %s47
    %p56 = scmp.eq.s32.totalorder %s15, 0
    %p57 = por %p55, %p56
    %p58 = scmp.ne.s32.totalorder %s46, %s47
    %p59 = scmp.eq.s32.totalorder %s16, 1
    %p60 = por %p58, %p59
    %p62 = scmp.ne.s32.totalorder %s47, %s61
    %p63 = scmp.eq.s32.totalorder %s16, 0
    %p64 = por %p62, %p63
    %s65 = ssub.s32 %s10, %s17
    %p66 = scmp.eq.s32.totalorder %s65, 0
    %s68 = sadd.s32 %s67, 1
    %s69 = scalar_select %p66, %s67, %s68
    %p72 = pneg %p66
    %p73 = scmp.eq.s32.totalorder %s10, 1
    %p74 = por %p72, %p73
    %p75 = scmp.ne.s32.totalorder %s67, %s70
    %p76 = scmp.eq.s32.totalorder %s10, 0
    %p77 = por %p75, %p76
    %p78 = scmp.ne.s32.totalorder %s67, %s70
    %p79 = scmp.eq.s32.totalorder %s15, 1
    %p80 = por %p78, %p79
    %p81 = scmp.ne.s32.totalorder %s70, %s71
    %p82 = scmp.eq.s32.totalorder %s15, 0
    %p83 = por %p81, %p82
    %p84 = scmp.ne.s32.totalorder %s70, %s71
    %p85 = scmp.eq.s32.totalorder %s16, 1
    %p86 = por %p84, %p85
    %p88 = scmp.ne.s32.totalorder %s71, %s87
    %p89 = scmp.eq.s32.totalorder %s16, 0
    %p90 = por %p88, %p89
    %s91 = ssub.s32 %s10, %s17
    %p92 = scmp.eq.s32.totalorder %s91, 0
    %s94 = sadd.s32 %s93, 1
    %s95 = scalar_select %p92, %s93, %s94
    %p98 = pneg %p92
    %p99 = scmp.eq.s32.totalorder %s10, 1
    %p100 = por %p98, %p99
    %p101 = scmp.ne.s32.totalorder %s93, %s96
    %p102 = scmp.eq.s32.totalorder %s10, 0
    %p103 = por %p101, %p102
    %p104 = scmp.ne.s32.totalorder %s93, %s96
    %p105 = scmp.eq.s32.totalorder %s15, 1
    %p106 = por %p104, %p105
    %p107 = scmp.ne.s32.totalorder %s96, %s97
    %p108 = scmp.eq.s32.totalorder %s15, 0
    %p109 = por %p107, %p108
    %p110 = scmp.ne.s32.totalorder %s96, %s97
    %p111 = scmp.eq.s32.totalorder %s16, 1
    %p112 = por %p110, %p111
    %p114 = scmp.ne.s32.totalorder %s97, %s113
    %p115 = scmp.eq.s32.totalorder %s16, 0
    %p116 = por %p114, %p115
    %p117 = scmp.le.s32.totalorder 1, %s10
    %p118 = scmp.lt.s32.totalorder %s10, 3
    %p119 = pnand %p117, %p118
    %p120 = pneg %p119
    // Predicated region
    $region9: #{_residual_block.4} parent=5 // pred_check
      _
    $region10: #{_residual_block.4} parent=5 // pred_check_branch
      %122 = sbr.rel (%p119) target = $region12
    $region11: #{_residual_block.4} parent=5 // pred_region
      %s123 = ssub.s32 %s10, 1
      // Predicated region
      $region13: #{_residual_block.4} parent=11 // pred_check
        %p124 = pneg %p57
      $region14: #{_residual_block.4} parent=11 // pred_check_branch
        %126 = sbr.rel (%p124) target = $region16
      $region15: #{_residual_block.4} parent=11 // pred_region
        _
      $region16: #{_residual_block.4} parent=11 // pred_fallthru
        _
    $region12: #{_residual_block.4} parent=5 // pred_fallthru
      _
    %p127 = scmp.lt.s32.totalorder %s10, 2
    // Predicated region
    $region17: #{_residual_block.4} parent=5 // pred_check
      %p128 = pneg %p127
    $region18: #{_residual_block.4} parent=5 // pred_check_branch
      %130 = sbr.rel (%p128) target = $region20
    $region19: #{_residual_block.4} parent=5 // pred_region
      // Predicated region
      $region21: #{_residual_block.4} parent=19 // pred_check
        %p131 = pneg %p30
      $region22: #{_residual_block.4} parent=19 // pred_check_branch
        %133 = sbr.rel (%p131) target = $region24
      $region23: #{_residual_block.4} parent=19 // pred_region
        %p134 = scmp.lt.s32.totalorder %s10, 1
        %s135 = scalar_select %p134, %s10, 1
        %s136 = smul.addr %s135, 14
        %s137 = smul.addr %s136, 4
        %s138 = scalar_lea.vmem %s0, %s137
      $region24: #{_residual_block.4} parent=19 // pred_fallthru
        _
    $region20: #{_residual_block.4} parent=5 // pred_fallthru
      _
    %p139 = scmp.le.s32.totalorder 1, %s10
    %p140 = scmp.lt.s32.totalorder %s10, 3
    %p141 = pnand %p139, %p140
    %p142 = pneg %p141
    // Predicated region
    $region25: #{_residual_block.4} parent=5 // pred_check
      _
    $region26: #{_residual_block.4} parent=5 // pred_check_branch
      %144 = sbr.rel (%p141) target = $region28
    $region27: #{_residual_block.4} parent=5 // pred_region
      %s145 = ssub.s32 %s10, 1
      %p146 = scmp.lt.s32.totalorder %s15, 1
      %s147 = scalar_select %p146, %s15, 1
      %s148 = smul.addr %s147, 14
      %s149 = smul.addr %s148, 4
      %s150 = scalar_lea.vmem %s0, %s149
      %p151 = pneg %p36
      %p152 = pneg %p33
      %p153 = pneg %p57
      %p154 = pneg %p54
      %p155 = pneg %p83
      %p156 = pneg %p80
      %s157 = smul.u32 10, %s15
      %p158 = scmp.lt.s32.totalorder %s157, 19
      %s159 = scalar_select %p158, %s157, 19
      %s160 = smul.addr %s159, 8
      %s161 = scalar_lea.vmem %s2, %s160
      %p162 = pneg %p109
      %p163 = pneg %p106
      %p164 = scmp.lt.s32.totalorder %s15, 1
      %s165 = scalar_select %p164, %s15, 1
      %s166 = smul.addr %s165, 2
      %s167 = scalar_lea.vmem %s3, %s166
      %p168 = scmp.lt.s32.totalorder %s15, 1
      %s169 = scalar_select %p168, %s15, 1
      %s170 = smul.addr %s169, 14
      %s171 = smul.addr %s170, 4
      %s172 = scalar_lea.vmem %s0, %s171
      %s173 = smul.u32 10, %s15
      %p174 = scmp.lt.s32.totalorder %s173, 19
      %s175 = scalar_select %p174, %s173, 19
      %s176 = smul.addr %s175, 8
      %s177 = scalar_lea.vmem %s2, %s176
      %s178 = smul.u32 10, %s15
      %p179 = scmp.lt.s32.totalorder %s15, 1
      %s180 = scalar_select %p179, %s15, 1
      %s181 = smul.addr %s180, 2
      %s182 = scalar_lea.vmem %s3, %s181
      %v184 = vld [vmem:[%s172] sm:$0xf]
      %v185 = vld [vmem:[%s172 + $0x4] sm:$0xf]
      %v186 = vld [vmem:[%s172 + $0x8] sm:$0xf]
      %v187 = vld [vmem:[%s172 + $0xc] sm:$0xf]
      %v188 = vld [vmem:[%s172 + $0x10] sm:$0xf]
      %v189 = vld [vmem:[%s172 + $0x14] sm:$0xf]
      %v190 = vld [vmem:[%s172 + $0x18] sm:$0xf]
      %v191 = vld [vmem:[%s172 + $0x1c] sm:$0xf]
      %v192 = vld [vmem:[%s172 + $0x20] sm:$0xf]
      %v193 = vld [vmem:[%s172 + $0x24] sm:$0xf]
      %v194 = vld [vmem:[%s1] sm:$0xf]
      %v195 = vld [vmem:[%s1 + $0x4] sm:$0xf]
      %v196 = vld [vmem:[%s1 + $0x8] sm:$0xf]
      %v197 = vld [vmem:[%s1 + $0xc] sm:$0xf]
      %v198 = vld [vmem:[%s1 + $0x10] sm:$0xf]
      %v199 = vld [vmem:[%s1 + $0x14] sm:$0xf]
      %v200 = vld [vmem:[%s1 + $0x18] sm:$0xf]
      %v201 = vld [vmem:[%s1 + $0x1c] sm:$0xf]
      %v202 = vld [vmem:[%s1 + $0x20] sm:$0xf]
      %v203 = vld [vmem:[%s1 + $0x24] sm:$0xf]
      %v204 = vld [vmem:[%s1 + $0x28] sm:$0xf]
      %v205 = vld [vmem:[%s1 + $0x2c] sm:$0xf]
      %v206 = vld [vmem:[%s1 + $0x30] sm:$0xf]
      %v207 = vld [vmem:[%s1 + $0x34] sm:$0xf]
      %v208 = vld [vmem:[%s1 + $0x38] sm:$0xf]
      %v209 = vld [vmem:[%s1 + $0x3c] sm:$0xf]
      %v210 = vld [vmem:[%s172 + $0x28] sm:$0x1]
      %s211 = scalar_lea.vmem %s1, 64
      %v212 = vld [vmem:[%s211] sm:$0xf]
      %v213 = vld [vmem:[%s211 + $0x4] sm:$0xf]
      %v214 = vld [vmem:[%s211 + $0x8] sm:$0xf]
      %v215 = vld [vmem:[%s211 + $0xc] sm:$0xf]
      %v216 = vld [vmem:[%s211 + $0x10] sm:$0xf]
      %v217 = vld [vmem:[%s211 + $0x14] sm:$0xf]
      %v218 = vld [vmem:[%s211 + $0x18] sm:$0xf]
      %v219 = vld [vmem:[%s211 + $0x1c] sm:$0xf]
      %v220 = vld [vmem:[%s211 + $0x20] sm:$0xf]
      %v221 = vld [vmem:[%s211 + $0x24] sm:$0xf]
      %v222 = vld [vmem:[%s211 + $0x28] sm:$0xf]
      %v223 = vld [vmem:[%s211 + $0x2c] sm:$0xf]
      %v224 = vld [vmem:[%s211 + $0x30] sm:$0xf]
      %v225 = vld [vmem:[%s211 + $0x34] sm:$0xf]
      %v226 = vld [vmem:[%s211 + $0x38] sm:$0xf]
      %v227 = vld [vmem:[%s211 + $0x3c] sm:$0xf]
      %v239 = vunpack.c.l.b16 %v184
      %v240 = vunpack.c.l.b16 %v185
      %v241 = vunpack.c.l.b16 %v186
      %v242 = vunpack.c.l.b16 %v187
      %v243 = vunpack.c.l.b16 %v188
      %v244 = vunpack.c.l.b16 %v189
      %v245 = vunpack.c.l.b16 %v190
      %v246 = vunpack.c.l.b16 %v191
      %v247 = vunpack.c.l.b16 %v192
      %v248 = vunpack.c.l.b16 %v193
      %v249 = vunpack.c.l.b16 %v210
      %v250 = vpack.c.b16 %v240, %v239
      %v251 = vpack.c.b16 %v242, %v241
      %v252 = vpack.c.b16 %v244, %v243
      %v253 = vpack.c.b16 %v246, %v245
      %v254 = vpack.c.b16 %v248, %v247
      %v255 = vpack.c.b16 %v249, %v249
      %vm256 = vsmask.f32 7424
      %v258 = vshrl.u32 %v250, 16
      %v260 = vshll.u32 %v250, 16
      %v262 = vrot.slane %v260, 1
      %v263 = vor.u32 %v258, %v262
      %v265 = vshll.u32 %v251, 16
      %v267 = vrot.slane %v265, 1
      %v268 = vsel %vm256, %v263, %v267
      %v269 = vshrl.u32 %v251, 16
      %v271 = vor.u32 %v269, %v267
      %v273 = vshll.u32 %v252, 16
      %v275 = vrot.slane %v273, 1
      %v276 = vsel %vm256, %v271, %v275
      %v277 = vshrl.u32 %v252, 16
      %v279 = vor.u32 %v277, %v275
      %v281 = vshll.u32 %v253, 16
      %v283 = vrot.slane %v281, 1
      %v284 = vsel %vm256, %v279, %v283
      %v285 = vshrl.u32 %v253, 16
      %v287 = vor.u32 %v285, %v283
      %v289 = vshll.u32 %v254, 16
      %v291 = vrot.slane %v289, 1
      %v292 = vsel %vm256, %v287, %v291
      %v293 = vshrl.u32 %v254, 16
      %v295 = vor.u32 %v293, %v291
      %v297 = vshll.u32 %v255, 16
      %v299 = vrot.slane %v297, 1
      %v300 = vsel %vm256, %v295, %v299
      %v322 = vunpack.c.l.b16 %v212
      %v323 = vunpack.c.l.b16 %v213
      %v324 = vunpack.c.l.b16 %v214
      %v325 = vunpack.c.l.b16 %v215
      %v326 = vunpack.c.l.b16 %v216
      %v327 = vunpack.c.l.b16 %v217
      %v328 = vunpack.c.l.b16 %v218
      %v329 = vunpack.c.l.b16 %v219
      %v330 = vunpack.c.l.b16 %v220
      %v331 = vunpack.c.l.b16 %v221
      %v332 = vunpack.c.l.b16 %v222
      %v333 = vunpack.c.l.b16 %v223
      %v334 = vunpack.c.l.b16 %v224
      %v335 = vunpack.c.l.b16 %v225
      %v336 = vunpack.c.l.b16 %v226
      %v337 = vunpack.c.l.b16 %v227
      %v338 = vpack.c.b16 %v323, %v322
      %v339 = vpack.c.b16 %v325, %v324
      %v340 = vpack.c.b16 %v327, %v326
      %v341 = vpack.c.b16 %v329, %v328
      %v342 = vpack.c.b16 %v331, %v330
      %v343 = vpack.c.b16 %v333, %v332
      %v344 = vpack.c.b16 %v335, %v334
      %v345 = vpack.c.b16 %v337, %v336
      %354 = vmatprep.subr.bf16.mxu0 0
      %355 = vmatpush1.bf16.msra.mxu0 %v345
      %356 = vmatprep.subr.bf16.mxu0 0
      %357 = vmatpush1.bf16.msra.mxu0 %v344
      %358 = vmatprep.subr.bf16.mxu0 0
      %359 = vmatpush1.bf16.msra.mxu0 %v343
      %360 = vmatprep.subr.bf16.mxu0 0
      %361 = vmatpush1.bf16.msra.mxu0 %v342
      %362 = vmatprep.subr.bf16.mxu0 0
      %363 = vmatpush1.bf16.msra.mxu0 %v341
      %364 = vmatprep.subr.bf16.mxu0 0
      %365 = vmatpush1.bf16.msra.mxu0 %v340
      %366 = vmatprep.subr.bf16.mxu0 0
      %367 = vmatpush1.bf16.msra.mxu0 %v339
      %368 = vmatprep.subr.bf16.mxu0 0
      %369 = vmatpush1.bf16.msra.mxu0 %v338
      %370 = vmatprep.subr.bf16.mxu0 0
      %371 = vmatpush2.bf16.msra.mxu0 0
      %372 = vmatprep.subr.bf16.mxu0 0
      %373 = vmatpush2.bf16.msra.mxu0 0
      %374 = vmatprep.subr.bf16.mxu0 0
      %375 = vmatpush2.bf16.msra.mxu0 0
      %376 = vmatprep.subr.bf16.mxu0 0
      %377 = vmatpush2.bf16.msra.mxu0 0
      %378 = vmatprep.subr.bf16.mxu0 0
      %379 = vmatpush2.bf16.msra.mxu0 0
      %380 = vmatprep.subr.bf16.mxu0 0
      %381 = vmatpush2.bf16.msra.mxu0 0
      %382 = vmatprep.subr.bf16.mxu0 0
      %383 = vmatpush2.bf16.msra.mxu0 0
      %384 = vmatprep.subr.bf16.mxu0 0
      %385 = vmatpush2.bf16.msra.mxu0 0
      %386 = vmatprep.mubr.bf16.mxu0 0
      %387 = vmatmul.mubr.bf16.gmra.mxu0 %v268
      %v388 = vpop.f32.mrf.mxu0
      %v389 = vadd.f32 0.0, %v388
      %v390 = vpop.f32.mrf.mxu0
      %v391 = vpop.f32.mrf.mxu0
      %v392 = vadd.f32 0.0, %v391
      %v393 = vpop.f32.mrf.mxu0
      %394 = vmatprep.mubr.bf16.mxu0 0
      %395 = vmatmul.mubr.bf16.gmra.mxu0 %v276
      %v396 = vpop.f32.mrf.mxu0
      %v397 = vadd.f32 0.0, %v396
      %v398 = vpop.f32.mrf.mxu0
      %v399 = vpop.f32.mrf.mxu0
      %v400 = vadd.f32 0.0, %v399
      %v401 = vpop.f32.mrf.mxu0
      %402 = vmatprep.mubr.bf16.mxu0 0
      %403 = vmatmul.mubr.bf16.gmra.mxu0 %v284
      %v404 = vpop.f32.mrf.mxu0
      %v405 = vadd.f32 0.0, %v404
      %v406 = vpop.f32.mrf.mxu0
      %v407 = vpop.f32.mrf.mxu0
      %v408 = vadd.f32 0.0, %v407
      %v409 = vpop.f32.mrf.mxu0
      %410 = vmatprep.mubr.bf16.mxu0 0
      %411 = vmatmul.mubr.bf16.gmra.mxu0 %v292
      %v412 = vpop.f32.mrf.mxu0
      %v413 = vadd.f32 0.0, %v412
      %v414 = vpop.f32.mrf.mxu0
      %v415 = vpop.f32.mrf.mxu0
      %v416 = vadd.f32 0.0, %v415
      %v417 = vpop.f32.mrf.mxu0
      %418 = vmatprep.mubr.bf16.mxu0 0
      %419 = vmatmul.mubr.bf16.gmra.mxu0 %v300
      %v420 = vpop.f32.mrf.mxu0
      %v421 = vadd.f32 0.0, %v420
      %v422 = vpop.f32.mrf.mxu0
      %v423 = vpop.f32.mrf.mxu0
      %v424 = vadd.f32 0.0, %v423
      %v425 = vpop.f32.mrf.mxu0
      %426 = vdwg.mxu0
      %v448 = vunpack.c.l.b16 %v194
      %v449 = vunpack.c.l.b16 %v195
      %v450 = vunpack.c.l.b16 %v196
      %v451 = vunpack.c.l.b16 %v197
      %v452 = vunpack.c.l.b16 %v198
      %v453 = vunpack.c.l.b16 %v199
      %v454 = vunpack.c.l.b16 %v200
      %v455 = vunpack.c.l.b16 %v201
      %v456 = vunpack.c.l.b16 %v202
      %v457 = vunpack.c.l.b16 %v203
      %v458 = vunpack.c.l.b16 %v204
      %v459 = vunpack.c.l.b16 %v205
      %v460 = vunpack.c.l.b16 %v206
      %v461 = vunpack.c.l.b16 %v207
      %v462 = vunpack.c.l.b16 %v208
      %v463 = vunpack.c.l.b16 %v209
      %v464 = vpack.c.b16 %v449, %v448
      %v465 = vpack.c.b16 %v451, %v450
      %v466 = vpack.c.b16 %v453, %v452
      %v467 = vpack.c.b16 %v455, %v454
      %v468 = vpack.c.b16 %v457, %v456
      %v469 = vpack.c.b16 %v459, %v458
      %v470 = vpack.c.b16 %v461, %v460
      %v471 = vpack.c.b16 %v463, %v462
      %480 = vmatprep.subr.bf16.mxu0 0
      %481 = vmatpush1.bf16.msra.mxu0 %v471
      %482 = vmatprep.subr.bf16.mxu0 0
      %483 = vmatpush1.bf16.msra.mxu0 %v470
      %484 = vmatprep.subr.bf16.mxu0 0
      %485 = vmatpush1.bf16.msra.mxu0 %v469
      %486 = vmatprep.subr.bf16.mxu0 0
      %487 = vmatpush1.bf16.msra.mxu0 %v468
      %488 = vmatprep.subr.bf16.mxu0 0
      %489 = vmatpush1.bf16.msra.mxu0 %v467
      %490 = vmatprep.subr.bf16.mxu0 0
      %491 = vmatpush1.bf16.msra.mxu0 %v466
      %492 = vmatprep.subr.bf16.mxu0 0
      %493 = vmatpush1.bf16.msra.mxu0 %v465
      %494 = vmatprep.subr.bf16.mxu0 0
      %495 = vmatpush1.bf16.msra.mxu0 %v464
      %496 = vmatprep.subr.bf16.mxu0 0
      %497 = vmatpush2.bf16.msra.mxu0 0
      %498 = vmatprep.subr.bf16.mxu0 0
      %499 = vmatpush2.bf16.msra.mxu0 0
      %500 = vmatprep.subr.bf16.mxu0 0
      %501 = vmatpush2.bf16.msra.mxu0 0
      %502 = vmatprep.subr.bf16.mxu0 0
      %503 = vmatpush2.bf16.msra.mxu0 0
      %504 = vmatprep.subr.bf16.mxu0 0
      %505 = vmatpush2.bf16.msra.mxu0 0
      %506 = vmatprep.subr.bf16.mxu0 0
      %507 = vmatpush2.bf16.msra.mxu0 0
      %508 = vmatprep.subr.bf16.mxu0 0
      %509 = vmatpush2.bf16.msra.mxu0 0
      %510 = vmatprep.subr.bf16.mxu0 0
      %511 = vmatpush2.bf16.msra.mxu0 0
      %512 = vmatprep.mubr.bf16.mxu0 0
      %513 = vmatmul.mubr.bf16.gmra.mxu0 %v250
      %v514 = vpop.f32.mrf.mxu0
      %v515 = vadd.f32 %v389, %v514
      %v516 = vpop.f32.mrf.mxu0
      %v517 = vpop.f32.mrf.mxu0
      %v518 = vadd.f32 %v392, %v517
      %v519 = vpop.f32.mrf.mxu0
      %520 = vmatprep.mubr.bf16.mxu0 0
      %521 = vmatmul.mubr.bf16.gmra.mxu0 %v251
      %v522 = vpop.f32.mrf.mxu0
      %v523 = vadd.f32 %v397, %v522
      %v524 = vpop.f32.mrf.mxu0
      %v525 = vpop.f32.mrf.mxu0
      %v526 = vadd.f32 %v400, %v525
      %v527 = vpop.f32.mrf.mxu0
      %528 = vmatprep.mubr.bf16.mxu0 0
      %529 = vmatmul.mubr.bf16.gmra.mxu0 %v252
      %v530 = vpop.f32.mrf.mxu0
      %v531 = vadd.f32 %v405, %v530
      %v532 = vpop.f32.mrf.mxu0
      %v533 = vpop.f32.mrf.mxu0
      %v534 = vadd.f32 %v408, %v533
      %v535 = vpop.f32.mrf.mxu0
      %536 = vmatprep.mubr.bf16.mxu0 0
      %537 = vmatmul.mubr.bf16.gmra.mxu0 %v253
      %v538 = vpop.f32.mrf.mxu0
      %v539 = vadd.f32 %v413, %v538
      %v540 = vpop.f32.mrf.mxu0
      %v541 = vpop.f32.mrf.mxu0
      %v542 = vadd.f32 %v416, %v541
      %v543 = vpop.f32.mrf.mxu0
      %544 = vmatprep.mubr.bf16.mxu0 0
      %545 = vmatmul.mubr.bf16.gmra.mxu0 %v254
      %v546 = vpop.f32.mrf.mxu0
      %v547 = vadd.f32 %v421, %v546
      %v548 = vpop.f32.mrf.mxu0
      %v549 = vpop.f32.mrf.mxu0
      %v550 = vadd.f32 %v424, %v549
      %v551 = vpop.f32.mrf.mxu0
      %552 = vdwg.mxu0
      %v553 = vld [vmem:[%s172] sm:$0xe]
      %s554 = scalar_lea.vmem %s1, 128
      %v555 = vld [vmem:[%s554] sm:$0xf]
      %v556 = vld [vmem:[%s554 + $0x4] sm:$0xf]
      %v557 = vld [vmem:[%s554 + $0x8] sm:$0xf]
      %v558 = vld [vmem:[%s554 + $0xc] sm:$0xf]
      %v559 = vld [vmem:[%s554 + $0x10] sm:$0xf]
      %v560 = vld [vmem:[%s554 + $0x14] sm:$0xf]
      %v561 = vld [vmem:[%s554 + $0x18] sm:$0xf]
      %v562 = vld [vmem:[%s554 + $0x1c] sm:$0xf]
      %v563 = vld [vmem:[%s554 + $0x20] sm:$0xf]
      %v564 = vld [vmem:[%s554 + $0x24] sm:$0xf]
      %v565 = vld [vmem:[%s554 + $0x28] sm:$0xf]
      %v566 = vld [vmem:[%s554 + $0x2c] sm:$0xf]
      %v567 = vld [vmem:[%s554 + $0x30] sm:$0xf]
      %v568 = vld [vmem:[%s554 + $0x34] sm:$0xf]
      %v569 = vld [vmem:[%s554 + $0x38] sm:$0xf]
      %v570 = vld [vmem:[%s554 + $0x3c] sm:$0xf]
      %v572 = vunpack.c.l.b16 %v553
      %v573 = vpack.c.b16 %v240, %v572
      %vm574 = vcmask 1046528
      %v575 = vrot.slane %v573, 1
      %v576 = vrot.slane %v251, 1
      %v577 = vsel %vm574, %v575, %v576
      %v578 = vrot.slane %v252, 1
      %v579 = vsel %vm574, %v576, %v578
      %v580 = vrot.slane %v253, 1
      %v581 = vsel %vm574, %v578, %v580
      %v582 = vrot.slane %v254, 1
      %v583 = vsel %vm574, %v580, %v582
      %v584 = vrot.slane %v255, 1
      %v585 = vsel %vm574, %v582, %v584
      %v607 = vunpack.c.l.b16 %v555
      %v608 = vunpack.c.l.b16 %v556
      %v609 = vunpack.c.l.b16 %v557
      %v610 = vunpack.c.l.b16 %v558
      %v611 = vunpack.c.l.b16 %v559
      %v612 = vunpack.c.l.b16 %v560
      %v613 = vunpack.c.l.b16 %v561
      %v614 = vunpack.c.l.b16 %v562
      %v615 = vunpack.c.l.b16 %v563
      %v616 = vunpack.c.l.b16 %v564
      %v617 = vunpack.c.l.b16 %v565
      %v618 = vunpack.c.l.b16 %v566
      %v619 = vunpack.c.l.b16 %v567
      %v620 = vunpack.c.l.b16 %v568
      %v621 = vunpack.c.l.b16 %v569
      %v622 = vunpack.c.l.b16 %v570
      %v623 = vpack.c.b16 %v608, %v607
      %v624 = vpack.c.b16 %v610, %v609
      %v625 = vpack.c.b16 %v612, %v611
      %v626 = vpack.c.b16 %v614, %v613
      %v627 = vpack.c.b16 %v616, %v615
      %v628 = vpack.c.b16 %v618, %v617
      %v629 = vpack.c.b16 %v620, %v619
      %v630 = vpack.c.b16 %v622, %v621
      %639 = vmatprep.subr.bf16.mxu0 0
      %640 = vmatpush1.bf16.msra.mxu0 %v630
      %641 = vmatprep.subr.bf16.mxu0 0
      %642 = vmatpush1.bf16.msra.mxu0 %v629
      %643 = vmatprep.subr.bf16.mxu0 0
      %644 = vmatpush1.bf16.msra.mxu0 %v628
      %645 = vmatprep.subr.bf16.mxu0 0
      %646 = vmatpush1.bf16.msra.mxu0 %v627
      %647 = vmatprep.subr.bf16.mxu0 0
      %648 = vmatpush1.bf16.msra.mxu0 %v626
      %649 = vmatprep.subr.bf16.mxu0 0
      %650 = vmatpush1.bf16.msra.mxu0 %v625
      %651 = vmatprep.subr.bf16.mxu0 0
      %652 = vmatpush1.bf16.msra.mxu0 %v624
      %653 = vmatprep.subr.bf16.mxu0 0
      %654 = vmatpush1.bf16.msra.mxu0 %v623
      %655 = vmatprep.subr.bf16.mxu0 0
      %656 = vmatpush2.bf16.msra.mxu0 0
      %657 = vmatprep.subr.bf16.mxu0 0
      %658 = vmatpush2.bf16.msra.mxu0 0
      %659 = vmatprep.subr.bf16.mxu0 0
      %660 = vmatpush2.bf16.msra.mxu0 0
      %661 = vmatprep.subr.bf16.mxu0 0
      %662 = vmatpush2.bf16.msra.mxu0 0
      %663 = vmatprep.subr.bf16.mxu0 0
      %664 = vmatpush2.bf16.msra.mxu0 0
      %665 = vmatprep.subr.bf16.mxu0 0
      %666 = vmatpush2.bf16.msra.mxu0 0
      %667 = vmatprep.subr.bf16.mxu0 0
      %668 = vmatpush2.bf16.msra.mxu0 0
      %669 = vmatprep.subr.bf16.mxu0 0
      %670 = vmatpush2.bf16.msra.mxu0 0
      %671 = vmatprep.mubr.bf16.mxu0 0
      %672 = vmatmul.mubr.bf16.gmra.mxu0 %v577
      %v673 = vpop.f32.mrf.mxu0
      %v674 = vadd.f32 0.0, %v673
      %v675 = vpop.f32.mrf.mxu0
      %v676 = vpop.f32.mrf.mxu0
      %v677 = vadd.f32 0.0, %v676
      %v678 = vpop.f32.mrf.mxu0
      %679 = vmatprep.mubr.bf16.mxu0 0
      %680 = vmatmul.mubr.bf16.gmra.mxu0 %v579
      %v681 = vpop.f32.mrf.mxu0
      %v682 = vadd.f32 0.0, %v681
      %v683 = vpop.f32.mrf.mxu0
      %v684 = vpop.f32.mrf.mxu0
      %v685 = vadd.f32 0.0, %v684
      %v686 = vpop.f32.mrf.mxu0
      %687 = vmatprep.mubr.bf16.mxu0 0
      %688 = vmatmul.mubr.bf16.gmra.mxu0 %v581
      %v689 = vpop.f32.mrf.mxu0
      %v690 = vadd.f32 0.0, %v689
      %v691 = vpop.f32.mrf.mxu0
      %v692 = vpop.f32.mrf.mxu0
      %v693 = vadd.f32 0.0, %v692
      %v694 = vpop.f32.mrf.mxu0
      %695 = vmatprep.mubr.bf16.mxu0 0
      %696 = vmatmul.mubr.bf16.gmra.mxu0 %v583
      %v697 = vpop.f32.mrf.mxu0
      %v698 = vadd.f32 0.0, %v697
      %v699 = vpop.f32.mrf.mxu0
      %v700 = vpop.f32.mrf.mxu0
      %v701 = vadd.f32 0.0, %v700
      %v702 = vpop.f32.mrf.mxu0
      %703 = vmatprep.mubr.bf16.mxu0 0
      %704 = vmatmul.mubr.bf16.gmra.mxu0 %v585
      %v705 = vpop.f32.mrf.mxu0
      %v706 = vadd.f32 0.0, %v705
      %v707 = vpop.f32.mrf.mxu0
      %v708 = vpop.f32.mrf.mxu0
      %v709 = vadd.f32 0.0, %v708
      %v710 = vpop.f32.mrf.mxu0
      %711 = vdwg.mxu0
      %v712 = vadd.f32 %v515, %v674
      %v713 = vadd.f32 %v518, %v677
      %v714 = vadd.f32 %v523, %v682
      %v715 = vadd.f32 %v526, %v685
      %v716 = vadd.f32 %v531, %v690
      %v717 = vadd.f32 %v534, %v693
      %v718 = vadd.f32 %v539, %v698
      %v719 = vadd.f32 %v542, %v701
      %v720 = vadd.f32 %v547, %v706
      %v721 = vadd.f32 %v550, %v709
      %v722 = vld [vmem:[%s172 + $0x4] sm:$0xe]
      %v723 = vld [vmem:[%s172 + $0x8] sm:$0xf]
      %v724 = vld [vmem:[%s172 + $0xc] sm:$0xf]
      %v725 = vld [vmem:[%s172 + $0x10] sm:$0xf]
      %v726 = vld [vmem:[%s172 + $0x14] sm:$0xf]
      %v727 = vld [vmem:[%s172 + $0x18] sm:$0xf]
      %v728 = vld [vmem:[%s172 + $0x1c] sm:$0xf]
      %v729 = vld [vmem:[%s172 + $0x20] sm:$0xf]
      %v730 = vld [vmem:[%s172 + $0x24] sm:$0xf]
      %v731 = vld [vmem:[%s172 + $0x28] sm:$0xf]
      %v732 = vld [vmem:[%s172 + $0x2c] sm:$0x1]
      %s733 = scalar_lea.vmem %s1, 192
      %v734 = vld [vmem:[%s733] sm:$0xf]
      %v735 = vld [vmem:[%s733 + $0x4] sm:$0xf]
      %v736 = vld [vmem:[%s733 + $0x8] sm:$0xf]
      %v737 = vld [vmem:[%s733 + $0xc] sm:$0xf]
      %v738 = vld [vmem:[%s733 + $0x10] sm:$0xf]
      %v739 = vld [vmem:[%s733 + $0x14] sm:$0xf]
      %v740 = vld [vmem:[%s733 + $0x18] sm:$0xf]
      %v741 = vld [vmem:[%s733 + $0x1c] sm:$0xf]
      %v742 = vld [vmem:[%s733 + $0x20] sm:$0xf]
      %v743 = vld [vmem:[%s733 + $0x24] sm:$0xf]
      %v744 = vld [vmem:[%s733 + $0x28] sm:$0xf]
      %v745 = vld [vmem:[%s733 + $0x2c] sm:$0xf]
      %v746 = vld [vmem:[%s733 + $0x30] sm:$0xf]
      %v747 = vld [vmem:[%s733 + $0x34] sm:$0xf]
      %v748 = vld [vmem:[%s733 + $0x38] sm:$0xf]
      %v749 = vld [vmem:[%s733 + $0x3c] sm:$0xf]
      %v761 = vunpack.c.l.b16 %v722
      %v762 = vunpack.c.l.b16 %v723
      %v763 = vunpack.c.l.b16 %v724
      %v764 = vunpack.c.l.b16 %v725
      %v765 = vunpack.c.l.b16 %v726
      %v766 = vunpack.c.l.b16 %v727
      %v767 = vunpack.c.l.b16 %v728
      %v768 = vunpack.c.l.b16 %v729
      %v769 = vunpack.c.l.b16 %v730
      %v770 = vunpack.c.l.b16 %v731
      %v771 = vunpack.c.l.b16 %v732
      %v772 = vpack.c.b16 %v762, %v761
      %v773 = vpack.c.b16 %v764, %v763
      %v774 = vpack.c.b16 %v766, %v765
      %v775 = vpack.c.b16 %v768, %v767
      %v776 = vpack.c.b16 %v770, %v769
      %v777 = vpack.c.b16 %v771, %v771
      %v778 = vrot.slane %v772, 1
      %v779 = vrot.slane %v773, 1
      %v780 = vsel %vm574, %v778, %v779
      %v781 = vrot.slane %v774, 1
      %v782 = vsel %vm574, %v779, %v781
      %v783 = vrot.slane %v775, 1
      %v784 = vsel %vm574, %v781, %v783
      %v785 = vrot.slane %v776, 1
      %v786 = vsel %vm574, %v783, %v785
      %v787 = vrot.slane %v777, 1
      %v788 = vsel %vm574, %v785, %v787
      %v810 = vunpack.c.l.b16 %v734
      %v811 = vunpack.c.l.b16 %v735
      %v812 = vunpack.c.l.b16 %v736
      %v813 = vunpack.c.l.b16 %v737
      %v814 = vunpack.c.l.b16 %v738
      %v815 = vunpack.c.l.b16 %v739
      %v816 = vunpack.c.l.b16 %v740
      %v817 = vunpack.c.l.b16 %v741
      %v818 = vunpack.c.l.b16 %v742
      %v819 = vunpack.c.l.b16 %v743
      %v820 = vunpack.c.l.b16 %v744
      %v821 = vunpack.c.l.b16 %v745
      %v822 = vunpack.c.l.b16 %v746
      %v823 = vunpack.c.l.b16 %v747
      %v824 = vunpack.c.l.b16 %v748
      %v825 = vunpack.c.l.b16 %v749
      %v826 = vpack.c.b16 %v811, %v810
      %v827 = vpack.c.b16 %v813, %v812
      %v828 = vpack.c.b16 %v815, %v814
      %v829 = vpack.c.b16 %v817, %v816
      %v830 = vpack.c.b16 %v819, %v818
      %v831 = vpack.c.b16 %v821, %v820
      %v832 = vpack.c.b16 %v823, %v822
      %v833 = vpack.c.b16 %v825, %v824
      %842 = vmatprep.subr.bf16.mxu0 0
      %843 = vmatpush1.bf16.msra.mxu0 %v833
      %844 = vmatprep.subr.bf16.mxu0 0
      %845 = vmatpush1.bf16.msra.mxu0 %v832
      %846 = vmatprep.subr.bf16.mxu0 0
      %847 = vmatpush1.bf16.msra.mxu0 %v831
      %848 = vmatprep.subr.bf16.mxu0 0
      %849 = vmatpush1.bf16.msra.mxu0 %v830
      %850 = vmatprep.subr.bf16.mxu0 0
      %851 = vmatpush1.bf16.msra.mxu0 %v829
      %852 = vmatprep.subr.bf16.mxu0 0
      %853 = vmatpush1.bf16.msra.mxu0 %v828
      %854 = vmatprep.subr.bf16.mxu0 0
      %855 = vmatpush1.bf16.msra.mxu0 %v827
      %856 = vmatprep.subr.bf16.mxu0 0
      %857 = vmatpush1.bf16.msra.mxu0 %v826
      %858 = vmatprep.subr.bf16.mxu0 0
      %859 = vmatpush2.bf16.msra.mxu0 0
      %860 = vmatprep.subr.bf16.mxu0 0
      %861 = vmatpush2.bf16.msra.mxu0 0
      %862 = vmatprep.subr.bf16.mxu0 0
      %863 = vmatpush2.bf16.msra.mxu0 0
      %864 = vmatprep.subr.bf16.mxu0 0
      %865 = vmatpush2.bf16.msra.mxu0 0
      %866 = vmatprep.subr.bf16.mxu0 0
      %867 = vmatpush2.bf16.msra.mxu0 0
      %868 = vmatprep.subr.bf16.mxu0 0
      %869 = vmatpush2.bf16.msra.mxu0 0
      %870 = vmatprep.subr.bf16.mxu0 0
      %871 = vmatpush2.bf16.msra.mxu0 0
      %872 = vmatprep.subr.bf16.mxu0 0
      %873 = vmatpush2.bf16.msra.mxu0 0
      %874 = vmatprep.mubr.bf16.mxu0 0
      %875 = vmatmul.mubr.bf16.gmra.mxu0 %v780
      %v876 = vpop.f32.mrf.mxu0
      %v877 = vadd.f32 0.0, %v876
      %v878 = vpop.f32.mrf.mxu0
      %v879 = vpop.f32.mrf.mxu0
      %v880 = vadd.f32 0.0, %v879
      %v881 = vpop.f32.mrf.mxu0
      %882 = vmatprep.mubr.bf16.mxu0 0
      %883 = vmatmul.mubr.bf16.gmra.mxu0 %v782
      %v884 = vpop.f32.mrf.mxu0
      %v885 = vadd.f32 0.0, %v884
      %v886 = vpop.f32.mrf.mxu0
      %v887 = vpop.f32.mrf.mxu0
      %v888 = vadd.f32 0.0, %v887
      %v889 = vpop.f32.mrf.mxu0
      %890 = vmatprep.mubr.bf16.mxu0 0
      %891 = vmatmul.mubr.bf16.gmra.mxu0 %v784
      %v892 = vpop.f32.mrf.mxu0
      %v893 = vadd.f32 0.0, %v892
      %v894 = vpop.f32.mrf.mxu0
      %v895 = vpop.f32.mrf.mxu0
      %v896 = vadd.f32 0.0, %v895
      %v897 = vpop.f32.mrf.mxu0
      %898 = vmatprep.mubr.bf16.mxu0 0
      %899 = vmatmul.mubr.bf16.gmra.mxu0 %v786
      %v900 = vpop.f32.mrf.mxu0
      %v901 = vadd.f32 0.0, %v900
      %v902 = vpop.f32.mrf.mxu0
      %v903 = vpop.f32.mrf.mxu0
      %v904 = vadd.f32 0.0, %v903
      %v905 = vpop.f32.mrf.mxu0
      %906 = vmatprep.mubr.bf16.mxu0 0
      %907 = vmatmul.mubr.bf16.gmra.mxu0 %v788
      %v908 = vpop.f32.mrf.mxu0
      %v909 = vadd.f32 0.0, %v908
      %v910 = vpop.f32.mrf.mxu0
      %v911 = vpop.f32.mrf.mxu0
      %v912 = vadd.f32 0.0, %v911
      %v913 = vpop.f32.mrf.mxu0
      %914 = vdwg.mxu0
      %v915 = vadd.f32 %v712, %v877
      %v916 = vadd.f32 %v713, %v880
      %v917 = vadd.f32 %v714, %v885
      %v918 = vadd.f32 %v715, %v888
      %v919 = vadd.f32 %v716, %v893
      %v920 = vadd.f32 %v717, %v896
      %v921 = vadd.f32 %v718, %v901
      %v922 = vadd.f32 %v719, %v904
      %v923 = vadd.f32 %v720, %v909
      %v924 = vadd.f32 %v721, %v912
      %v925 = vld [vmem:[%s172 + $0x2c] sm:$0x3]
      %s926 = scalar_lea.vmem %s1, 256
      %v927 = vld [vmem:[%s926] sm:$0xf]
      %v928 = vld [vmem:[%s926 + $0x4] sm:$0xf]
      %v929 = vld [vmem:[%s926 + $0x8] sm:$0xf]
      %v930 = vld [vmem:[%s926 + $0xc] sm:$0xf]
      %v931 = vld [vmem:[%s926 + $0x10] sm:$0xf]
      %v932 = vld [vmem:[%s926 + $0x14] sm:$0xf]
      %v933 = vld [vmem:[%s926 + $0x18] sm:$0xf]
      %v934 = vld [vmem:[%s926 + $0x1c] sm:$0xf]
      %v935 = vld [vmem:[%s926 + $0x20] sm:$0xf]
      %v936 = vld [vmem:[%s926 + $0x24] sm:$0xf]
      %v937 = vld [vmem:[%s926 + $0x28] sm:$0xf]
      %v938 = vld [vmem:[%s926 + $0x2c] sm:$0xf]
      %v939 = vld [vmem:[%s926 + $0x30] sm:$0xf]
      %v940 = vld [vmem:[%s926 + $0x34] sm:$0xf]
      %v941 = vld [vmem:[%s926 + $0x38] sm:$0xf]
      %v942 = vld [vmem:[%s926 + $0x3c] sm:$0xf]
      %v944 = vunpack.c.l.b16 %v925
      %v945 = vpack.c.b16 %v944, %v944
      %vm946 = vsmask.f32 6400
      %v948 = vshrl.u32 %v772, 16
      %v950 = vrot.slane %v948, 1
      %v951 = vshll.u32 %v772, 16
      %v953 = vrot.slane %v951, 2
      %v954 = vor.u32 %v950, %v953
      %v956 = vshrl.u32 %v773, 16
      %v958 = vrot.slane %v956, 1
      %v959 = vshll.u32 %v773, 16
      %v961 = vrot.slane %v959, 2
      %v962 = vor.u32 %v958, %v961
      %v963 = vsel %vm946, %v954, %v962
      %v965 = vshrl.u32 %v774, 16
      %v967 = vrot.slane %v965, 1
      %v968 = vshll.u32 %v774, 16
      %v970 = vrot.slane %v968, 2
      %v971 = vor.u32 %v967, %v970
      %v972 = vsel %vm946, %v962, %v971
      %v974 = vshrl.u32 %v775, 16
      %v976 = vrot.slane %v974, 1
      %v977 = vshll.u32 %v775, 16
      %v979 = vrot.slane %v977, 2
      %v980 = vor.u32 %v976, %v979
      %v981 = vsel %vm946, %v971, %v980
      %v983 = vshrl.u32 %v776, 16
      %v985 = vrot.slane %v983, 1
      %v986 = vshll.u32 %v776, 16
      %v988 = vrot.slane %v986, 2
      %v989 = vor.u32 %v985, %v988
      %v990 = vsel %vm946, %v980, %v989
      %v992 = vshrl.u32 %v945, 16
      %v994 = vrot.slane %v992, 1
      %v995 = vshll.u32 %v945, 16
      %v997 = vrot.slane %v995, 2
      %v998 = vor.u32 %v994, %v997
      %v999 = vsel %vm946, %v989, %v998
      %v1021 = vunpack.c.l.b16 %v927
      %v1022 = vunpack.c.l.b16 %v928
      %v1023 = vunpack.c.l.b16 %v929
      %v1024 = vunpack.c.l.b16 %v930
      %v1025 = vunpack.c.l.b16 %v931
      %v1026 = vunpack.c.l.b16 %v932
      %v1027 = vunpack.c.l.b16 %v933
      %v1028 = vunpack.c.l.b16 %v934
      %v1029 = vunpack.c.l.b16 %v935
      %v1030 = vunpack.c.l.b16 %v936
      %v1031 = vunpack.c.l.b16 %v937
      %v1032 = vunpack.c.l.b16 %v938
      %v1033 = vunpack.c.l.b16 %v939
      %v1034 = vunpack.c.l.b16 %v940
      %v1035 = vunpack.c.l.b16 %v941
      %v1036 = vunpack.c.l.b16 %v942
      %v1037 = vpack.c.b16 %v1022, %v1021
      %v1038 = vpack.c.b16 %v1024, %v1023
      %v1039 = vpack.c.b16 %v1026, %v1025
      %v1040 = vpack.c.b16 %v1028, %v1027
      %v1041 = vpack.c.b16 %v1030, %v1029
      %v1042 = vpack.c.b16 %v1032, %v1031
      %v1043 = vpack.c.b16 %v1034, %v1033
      %v1044 = vpack.c.b16 %v1036, %v1035
      %1053 = vmatprep.subr.bf16.mxu0 0
      %1054 = vmatpush1.bf16.msra.mxu0 %v1044
      %1055 = vmatprep.subr.bf16.mxu0 0
      %1056 = vmatpush1.bf16.msra.mxu0 %v1043
      %1057 = vmatprep.subr.bf16.mxu0 0
      %1058 = vmatpush1.bf16.msra.mxu0 %v1042
      %1059 = vmatprep.subr.bf16.mxu0 0
      %1060 = vmatpush1.bf16.msra.mxu0 %v1041
      %1061 = vmatprep.subr.bf16.mxu0 0
      %1062 = vmatpush1.bf16.msra.mxu0 %v1040
      %1063 = vmatprep.subr.bf16.mxu0 0
      %1064 = vmatpush1.bf16.msra.mxu0 %v1039
      %1065 = vmatprep.subr.bf16.mxu0 0
      %1066 = vmatpush1.bf16.msra.mxu0 %v1038
      %1067 = vmatprep.subr.bf16.mxu0 0
      %1068 = vmatpush1.bf16.msra.mxu0 %v1037
      %1069 = vmatprep.subr.bf16.mxu0 0
      %1070 = vmatpush2.bf16.msra.mxu0 0
      %1071 = vmatprep.subr.bf16.mxu0 0
      %1072 = vmatpush2.bf16.msra.mxu0 0
      %1073 = vmatprep.subr.bf16.mxu0 0
      %1074 = vmatpush2.bf16.msra.mxu0 0
      %1075 = vmatprep.subr.bf16.mxu0 0
      %1076 = vmatpush2.bf16.msra.mxu0 0
      %1077 = vmatprep.subr.bf16.mxu0 0
      %1078 = vmatpush2.bf16.msra.mxu0 0
      %1079 = vmatprep.subr.bf16.mxu0 0
      %1080 = vmatpush2.bf16.msra.mxu0 0
      %1081 = vmatprep.subr.bf16.mxu0 0
      %1082 = vmatpush2.bf16.msra.mxu0 0
      %1083 = vmatprep.subr.bf16.mxu0 0
      %1084 = vmatpush2.bf16.msra.mxu0 0
      %1085 = vmatprep.mubr.bf16.mxu0 0
      %1086 = vmatmul.mubr.bf16.gmra.mxu0 %v963
      %v1087 = vpop.f32.mrf.mxu0
      %v1088 = vadd.f32 0.0, %v1087
      %v1089 = vpop.f32.mrf.mxu0
      %v1090 = vpop.f32.mrf.mxu0
      %v1091 = vadd.f32 0.0, %v1090
      %v1092 = vpop.f32.mrf.mxu0
      %1093 = vmatprep.mubr.bf16.mxu0 0
      %1094 = vmatmul.mubr.bf16.gmra.mxu0 %v972
      %v1095 = vpop.f32.mrf.mxu0
      %v1096 = vadd.f32 0.0, %v1095
      %v1097 = vpop.f32.mrf.mxu0
      %v1098 = vpop.f32.mrf.mxu0
      %v1099 = vadd.f32 0.0, %v1098
      %v1100 = vpop.f32.mrf.mxu0
      %1101 = vmatprep.mubr.bf16.mxu0 0
      %1102 = vmatmul.mubr.bf16.gmra.mxu0 %v981
      %v1103 = vpop.f32.mrf.mxu0
      %v1104 = vadd.f32 0.0, %v1103
      %v1105 = vpop.f32.mrf.mxu0
      %v1106 = vpop.f32.mrf.mxu0
      %v1107 = vadd.f32 0.0, %v1106
      %v1108 = vpop.f32.mrf.mxu0
      %1109 = vmatprep.mubr.bf16.mxu0 0
      %1110 = vmatmul.mubr.bf16.gmra.mxu0 %v990
      %v1111 = vpop.f32.mrf.mxu0
      %v1112 = vadd.f32 0.0, %v1111
      %v1113 = vpop.f32.mrf.mxu0
      %v1114 = vpop.f32.mrf.mxu0
      %v1115 = vadd.f32 0.0, %v1114
      %v1116 = vpop.f32.mrf.mxu0
      %1117 = vmatprep.mubr.bf16.mxu0 0
      %1118 = vmatmul.mubr.bf16.gmra.mxu0 %v999
      %v1119 = vpop.f32.mrf.mxu0
      %v1120 = vadd.f32 0.0, %v1119
      %v1121 = vpop.f32.mrf.mxu0
      %v1122 = vpop.f32.mrf.mxu0
      %v1123 = vadd.f32 0.0, %v1122
      %v1124 = vpop.f32.mrf.mxu0
      %1125 = vdwg.mxu0
      %v1126 = vadd.f32 %v915, %v1088
      %v1127 = vadd.f32 %v916, %v1091
      %v1128 = vadd.f32 %v917, %v1096
      %v1129 = vadd.f32 %v918, %v1099
      %v1130 = vadd.f32 %v919, %v1104
      %v1131 = vadd.f32 %v920, %v1107
      %v1132 = vadd.f32 %v921, %v1112
      %v1133 = vadd.f32 %v922, %v1115
      %v1134 = vadd.f32 %v923, %v1120
      %v1135 = vadd.f32 %v924, %v1123
      %v1136 = vld [vmem:[%s172 + $0x4] sm:$0xc]
      %s1137 = scalar_lea.vmem %s1, 320
      %v1138 = vld [vmem:[%s1137] sm:$0xf]
      %v1139 = vld [vmem:[%s1137 + $0x4] sm:$0xf]
      %v1140 = vld [vmem:[%s1137 + $0x8] sm:$0xf]
      %v1141 = vld [vmem:[%s1137 + $0xc] sm:$0xf]
      %v1142 = vld [vmem:[%s1137 + $0x10] sm:$0xf]
      %v1143 = vld [vmem:[%s1137 + $0x14] sm:$0xf]
      %v1144 = vld [vmem:[%s1137 + $0x18] sm:$0xf]
      %v1145 = vld [vmem:[%s1137 + $0x1c] sm:$0xf]
      %v1146 = vld [vmem:[%s1137 + $0x20] sm:$0xf]
      %v1147 = vld [vmem:[%s1137 + $0x24] sm:$0xf]
      %v1148 = vld [vmem:[%s1137 + $0x28] sm:$0xf]
      %v1149 = vld [vmem:[%s1137 + $0x2c] sm:$0xf]
      %v1150 = vld [vmem:[%s1137 + $0x30] sm:$0xf]
      %v1151 = vld [vmem:[%s1137 + $0x34] sm:$0xf]
      %v1152 = vld [vmem:[%s1137 + $0x38] sm:$0xf]
      %v1153 = vld [vmem:[%s1137 + $0x3c] sm:$0xf]
      %v1155 = vunpack.c.l.b16 %v1136
      %v1156 = vpack.c.b16 %v762, %v1155
      %vm1157 = vcmask 1045504
      %v1158 = vrot.slane %v1156, 2
      %v1159 = vrot.slane %v773, 2
      %v1160 = vsel %vm1157, %v1158, %v1159
      %v1161 = vrot.slane %v774, 2
      %v1162 = vsel %vm1157, %v1159, %v1161
      %v1163 = vrot.slane %v775, 2
      %v1164 = vsel %vm1157, %v1161, %v1163
      %v1165 = vrot.slane %v776, 2
      %v1166 = vsel %vm1157, %v1163, %v1165
      %v1167 = vrot.slane %v945, 2
      %v1168 = vsel %vm1157, %v1165, %v1167
      %v1190 = vunpack.c.l.b16 %v1138
      %v1191 = vunpack.c.l.b16 %v1139
      %v1192 = vunpack.c.l.b16 %v1140
      %v1193 = vunpack.c.l.b16 %v1141
      %v1194 = vunpack.c.l.b16 %v1142
      %v1195 = vunpack.c.l.b16 %v1143
      %v1196 = vunpack.c.l.b16 %v1144
      %v1197 = vunpack.c.l.b16 %v1145
      %v1198 = vunpack.c.l.b16 %v1146
      %v1199 = vunpack.c.l.b16 %v1147
      %v1200 = vunpack.c.l.b16 %v1148
      %v1201 = vunpack.c.l.b16 %v1149
      %v1202 = vunpack.c.l.b16 %v1150
      %v1203 = vunpack.c.l.b16 %v1151
      %v1204 = vunpack.c.l.b16 %v1152
      %v1205 = vunpack.c.l.b16 %v1153
      %v1206 = vpack.c.b16 %v1191, %v1190
      %v1207 = vpack.c.b16 %v1193, %v1192
      %v1208 = vpack.c.b16 %v1195, %v1194
      %v1209 = vpack.c.b16 %v1197, %v1196
      %v1210 = vpack.c.b16 %v1199, %v1198
      %v1211 = vpack.c.b16 %v1201, %v1200
      %v1212 = vpack.c.b16 %v1203, %v1202
      %v1213 = vpack.c.b16 %v1205, %v1204
      %1222 = vmatprep.subr.bf16.mxu0 0
      %1223 = vmatpush1.bf16.msra.mxu0 %v1213
      %1224 = vmatprep.subr.bf16.mxu0 0
      %1225 = vmatpush1.bf16.msra.mxu0 %v1212
      %1226 = vmatprep.subr.bf16.mxu0 0
      %1227 = vmatpush1.bf16.msra.mxu0 %v1211
      %1228 = vmatprep.subr.bf16.mxu0 0
      %1229 = vmatpush1.bf16.msra.mxu0 %v1210
      %1230 = vmatprep.subr.bf16.mxu0 0
      %1231 = vmatpush1.bf16.msra.mxu0 %v1209
      %1232 = vmatprep.subr.bf16.mxu0 0
      %1233 = vmatpush1.bf16.msra.mxu0 %v1208
      %1234 = vmatprep.subr.bf16.mxu0 0
      %1235 = vmatpush1.bf16.msra.mxu0 %v1207
      %1236 = vmatprep.subr.bf16.mxu0 0
      %1237 = vmatpush1.bf16.msra.mxu0 %v1206
      %1238 = vmatprep.subr.bf16.mxu0 0
      %1239 = vmatpush2.bf16.msra.mxu0 0
      %1240 = vmatprep.subr.bf16.mxu0 0
      %1241 = vmatpush2.bf16.msra.mxu0 0
      %1242 = vmatprep.subr.bf16.mxu0 0
      %1243 = vmatpush2.bf16.msra.mxu0 0
      %1244 = vmatprep.subr.bf16.mxu0 0
      %1245 = vmatpush2.bf16.msra.mxu0 0
      %1246 = vmatprep.subr.bf16.mxu0 0
      %1247 = vmatpush2.bf16.msra.mxu0 0
      %1248 = vmatprep.subr.bf16.mxu0 0
      %1249 = vmatpush2.bf16.msra.mxu0 0
      %1250 = vmatprep.subr.bf16.mxu0 0
      %1251 = vmatpush2.bf16.msra.mxu0 0
      %1252 = vmatprep.subr.bf16.mxu0 0
      %1253 = vmatpush2.bf16.msra.mxu0 0
      %1254 = vmatprep.mubr.bf16.mxu0 0
      %1255 = vmatmul.mubr.bf16.gmra.mxu0 %v1160
      %v1256 = vpop.f32.mrf.mxu0
      %v1257 = vadd.f32 0.0, %v1256
      %v1258 = vpop.f32.mrf.mxu0
      %v1259 = vpop.f32.mrf.mxu0
      %v1260 = vadd.f32 0.0, %v1259
      %v1261 = vpop.f32.mrf.mxu0
      %1262 = vmatprep.mubr.bf16.mxu0 0
      %1263 = vmatmul.mubr.bf16.gmra.mxu0 %v1162
      %v1264 = vpop.f32.mrf.mxu0
      %v1265 = vadd.f32 0.0, %v1264
      %v1266 = vpop.f32.mrf.mxu0
      %v1267 = vpop.f32.mrf.mxu0
      %v1268 = vadd.f32 0.0, %v1267
      %v1269 = vpop.f32.mrf.mxu0
      %1270 = vmatprep.mubr.bf16.mxu0 0
      %1271 = vmatmul.mubr.bf16.gmra.mxu0 %v1164
      %v1272 = vpop.f32.mrf.mxu0
      %v1273 = vadd.f32 0.0, %v1272
      %v1274 = vpop.f32.mrf.mxu0
      %v1275 = vpop.f32.mrf.mxu0
      %v1276 = vadd.f32 0.0, %v1275
      %v1277 = vpop.f32.mrf.mxu0
      %1278 = vmatprep.mubr.bf16.mxu0 0
      %1279 = vmatmul.mubr.bf16.gmra.mxu0 %v1166
      %v1280 = vpop.f32.mrf.mxu0
      %v1281 = vadd.f32 0.0, %v1280
      %v1282 = vpop.f32.mrf.mxu0
      %v1283 = vpop.f32.mrf.mxu0
      %v1284 = vadd.f32 0.0, %v1283
      %v1285 = vpop.f32.mrf.mxu0
      %1286 = vmatprep.mubr.bf16.mxu0 0
      %1287 = vmatmul.mubr.bf16.gmra.mxu0 %v1168
      %v1288 = vpop.f32.mrf.mxu0
      %v1289 = vadd.f32 0.0, %v1288
      %v1290 = vpop.f32.mrf.mxu0
      %v1291 = vpop.f32.mrf.mxu0
      %v1292 = vadd.f32 0.0, %v1291
      %v1293 = vpop.f32.mrf.mxu0
      %1294 = vdwg.mxu0
      %v1295 = vadd.f32 %v1126, %v1257
      %v1296 = vadd.f32 %v1127, %v1260
      %v1297 = vadd.f32 %v1128, %v1265
      %v1298 = vadd.f32 %v1129, %v1268
      %v1299 = vadd.f32 %v1130, %v1273
      %v1300 = vadd.f32 %v1131, %v1276
      %v1301 = vadd.f32 %v1132, %v1281
      %v1302 = vadd.f32 %v1133, %v1284
      %v1303 = vadd.f32 %v1134, %v1289
      %v1304 = vadd.f32 %v1135, %v1292
      %v1305 = vld [vmem:[%s172 + $0x8] sm:$0xc]
      %v1306 = vld [vmem:[%s172 + $0xc] sm:$0xf]
      %v1307 = vld [vmem:[%s172 + $0x10] sm:$0xf]
      %v1308 = vld [vmem:[%s172 + $0x14] sm:$0xf]
      %v1309 = vld [vmem:[%s172 + $0x18] sm:$0xf]
      %v1310 = vld [vmem:[%s172 + $0x1c] sm:$0xf]
      %v1311 = vld [vmem:[%s172 + $0x20] sm:$0xf]
      %v1312 = vld [vmem:[%s172 + $0x24] sm:$0xf]
      %v1313 = vld [vmem:[%s172 + $0x28] sm:$0xf]
      %v1314 = vld [vmem:[%s172 + $0x2c] sm:$0xf]
      %v1315 = vld [vmem:[%s172 + $0x30] sm:$0x3]
      %s1316 = scalar_lea.vmem %s1, 384
      %v1317 = vld [vmem:[%s1316] sm:$0xf]
      %v1318 = vld [vmem:[%s1316 + $0x4] sm:$0xf]
      %v1319 = vld [vmem:[%s1316 + $0x8] sm:$0xf]
      %v1320 = vld [vmem:[%s1316 + $0xc] sm:$0xf]
      %v1321 = vld [vmem:[%s1316 + $0x10] sm:$0xf]
      %v1322 = vld [vmem:[%s1316 + $0x14] sm:$0xf]
      %v1323 = vld [vmem:[%s1316 + $0x18] sm:$0xf]
      %v1324 = vld [vmem:[%s1316 + $0x1c] sm:$0xf]
      %v1325 = vld [vmem:[%s1316 + $0x20] sm:$0xf]
      %v1326 = vld [vmem:[%s1316 + $0x24] sm:$0xf]
      %v1327 = vld [vmem:[%s1316 + $0x28] sm:$0xf]
      %v1328 = vld [vmem:[%s1316 + $0x2c] sm:$0xf]
      %v1329 = vld [vmem:[%s1316 + $0x30] sm:$0xf]
      %v1330 = vld [vmem:[%s1316 + $0x34] sm:$0xf]
      %v1331 = vld [vmem:[%s1316 + $0x38] sm:$0xf]
      %v1332 = vld [vmem:[%s1316 + $0x3c] sm:$0xf]
      %v1344 = vunpack.c.l.b16 %v1305
      %v1345 = vunpack.c.l.b16 %v1306
      %v1346 = vunpack.c.l.b16 %v1307
      %v1347 = vunpack.c.l.b16 %v1308
      %v1348 = vunpack.c.l.b16 %v1309
      %v1349 = vunpack.c.l.b16 %v1310
      %v1350 = vunpack.c.l.b16 %v1311
      %v1351 = vunpack.c.l.b16 %v1312
      %v1352 = vunpack.c.l.b16 %v1313
      %v1353 = vunpack.c.l.b16 %v1314
      %v1354 = vunpack.c.l.b16 %v1315
      %v1355 = vpack.c.b16 %v1345, %v1344
      %v1356 = vpack.c.b16 %v1347, %v1346
      %v1357 = vpack.c.b16 %v1349, %v1348
      %v1358 = vpack.c.b16 %v1351, %v1350
      %v1359 = vpack.c.b16 %v1353, %v1352
      %v1360 = vpack.c.b16 %v1354, %v1354
      %v1361 = vrot.slane %v1355, 2
      %v1362 = vrot.slane %v1356, 2
      %v1363 = vsel %vm1157, %v1361, %v1362
      %v1364 = vrot.slane %v1357, 2
      %v1365 = vsel %vm1157, %v1362, %v1364
      %v1366 = vrot.slane %v1358, 2
      %v1367 = vsel %vm1157, %v1364, %v1366
      %v1368 = vrot.slane %v1359, 2
      %v1369 = vsel %vm1157, %v1366, %v1368
      %v1370 = vrot.slane %v1360, 2
      %v1371 = vsel %vm1157, %v1368, %v1370
      %v1393 = vunpack.c.l.b16 %v1317
      %v1394 = vunpack.c.l.b16 %v1318
      %v1395 = vunpack.c.l.b16 %v1319
      %v1396 = vunpack.c.l.b16 %v1320
      %v1397 = vunpack.c.l.b16 %v1321
      %v1398 = vunpack.c.l.b16 %v1322
      %v1399 = vunpack.c.l.b16 %v1323
      %v1400 = vunpack.c.l.b16 %v1324
      %v1401 = vunpack.c.l.b16 %v1325
      %v1402 = vunpack.c.l.b16 %v1326
      %v1403 = vunpack.c.l.b16 %v1327
      %v1404 = vunpack.c.l.b16 %v1328
      %v1405 = vunpack.c.l.b16 %v1329
      %v1406 = vunpack.c.l.b16 %v1330
      %v1407 = vunpack.c.l.b16 %v1331
      %v1408 = vunpack.c.l.b16 %v1332
      %v1409 = vpack.c.b16 %v1394, %v1393
      %v1410 = vpack.c.b16 %v1396, %v1395
      %v1411 = vpack.c.b16 %v1398, %v1397
      %v1412 = vpack.c.b16 %v1400, %v1399
      %v1413 = vpack.c.b16 %v1402, %v1401
      %v1414 = vpack.c.b16 %v1404, %v1403
      %v1415 = vpack.c.b16 %v1406, %v1405
      %v1416 = vpack.c.b16 %v1408, %v1407
      %1425 = vmatprep.subr.bf16.mxu0 0
      %1426 = vmatpush1.bf16.msra.mxu0 %v1416
      %1427 = vmatprep.subr.bf16.mxu0 0
      %1428 = vmatpush1.bf16.msra.mxu0 %v1415
      %1429 = vmatprep.subr.bf16.mxu0 0
      %1430 = vmatpush1.bf16.msra.mxu0 %v1414
      %1431 = vmatprep.subr.bf16.mxu0 0
      %1432 = vmatpush1.bf16.msra.mxu0 %v1413
      %1433 = vmatprep.subr.bf16.mxu0 0
      %1434 = vmatpush1.bf16.msra.mxu0 %v1412
      %1435 = vmatprep.subr.bf16.mxu0 0
      %1436 = vmatpush1.bf16.msra.mxu0 %v1411
      %1437 = vmatprep.subr.bf16.mxu0 0
      %1438 = vmatpush1.bf16.msra.mxu0 %v1410
      %1439 = vmatprep.subr.bf16.mxu0 0
      %1440 = vmatpush1.bf16.msra.mxu0 %v1409
      %1441 = vmatprep.subr.bf16.mxu0 0
      %1442 = vmatpush2.bf16.msra.mxu0 0
      %1443 = vmatprep.subr.bf16.mxu0 0
      %1444 = vmatpush2.bf16.msra.mxu0 0
      %1445 = vmatprep.subr.bf16.mxu0 0
      %1446 = vmatpush2.bf16.msra.mxu0 0
      %1447 = vmatprep.subr.bf16.mxu0 0
      %1448 = vmatpush2.bf16.msra.mxu0 0
      %1449 = vmatprep.subr.bf16.mxu0 0
      %1450 = vmatpush2.bf16.msra.mxu0 0
      %1451 = vmatprep.subr.bf16.mxu0 0
      %1452 = vmatpush2.bf16.msra.mxu0 0
      %1453 = vmatprep.subr.bf16.mxu0 0
      %1454 = vmatpush2.bf16.msra.mxu0 0
      %1455 = vmatprep.subr.bf16.mxu0 0
      %1456 = vmatpush2.bf16.msra.mxu0 0
      %1457 = vmatprep.mubr.bf16.mxu0 0
      %1458 = vmatmul.mubr.bf16.gmra.mxu0 %v1363
      %v1459 = vpop.f32.mrf.mxu0
      %v1460 = vadd.f32 0.0, %v1459
      %v1461 = vpop.f32.mrf.mxu0
      %v1462 = vpop.f32.mrf.mxu0
      %v1463 = vadd.f32 0.0, %v1462
      %v1464 = vpop.f32.mrf.mxu0
      %1465 = vmatprep.mubr.bf16.mxu0 0
      %1466 = vmatmul.mubr.bf16.gmra.mxu0 %v1365
      %v1467 = vpop.f32.mrf.mxu0
      %v1468 = vadd.f32 0.0, %v1467
      %v1469 = vpop.f32.mrf.mxu0
      %v1470 = vpop.f32.mrf.mxu0
      %v1471 = vadd.f32 0.0, %v1470
      %v1472 = vpop.f32.mrf.mxu0
      %1473 = vmatprep.mubr.bf16.mxu0 0
      %1474 = vmatmul.mubr.bf16.gmra.mxu0 %v1367
      %v1475 = vpop.f32.mrf.mxu0
      %v1476 = vadd.f32 0.0, %v1475
      %v1477 = vpop.f32.mrf.mxu0
      %v1478 = vpop.f32.mrf.mxu0
      %v1479 = vadd.f32 0.0, %v1478
      %v1480 = vpop.f32.mrf.mxu0
      %1481 = vmatprep.mubr.bf16.mxu0 0
      %1482 = vmatmul.mubr.bf16.gmra.mxu0 %v1369
      %v1483 = vpop.f32.mrf.mxu0
      %v1484 = vadd.f32 0.0, %v1483
      %v1485 = vpop.f32.mrf.mxu0
      %v1486 = vpop.f32.mrf.mxu0
      %v1487 = vadd.f32 0.0, %v1486
      %v1488 = vpop.f32.mrf.mxu0
      %1489 = vmatprep.mubr.bf16.mxu0 0
      %1490 = vmatmul.mubr.bf16.gmra.mxu0 %v1371
      %v1491 = vpop.f32.mrf.mxu0
      %v1492 = vadd.f32 0.0, %v1491
      %v1493 = vpop.f32.mrf.mxu0
      %v1494 = vpop.f32.mrf.mxu0
      %v1495 = vadd.f32 0.0, %v1494
      %v1496 = vpop.f32.mrf.mxu0
      %1497 = vdwg.mxu0
      %v1498 = vadd.f32 %v1295, %v1460
      %v1499 = vadd.f32 %v1296, %v1463
      %v1500 = vadd.f32 %v1297, %v1468
      %v1501 = vadd.f32 %v1298, %v1471
      %v1502 = vadd.f32 %v1299, %v1476
      %v1503 = vadd.f32 %v1300, %v1479
      %v1504 = vadd.f32 %v1301, %v1484
      %v1505 = vadd.f32 %v1302, %v1487
      %v1506 = vadd.f32 %v1303, %v1492
      %v1507 = vadd.f32 %v1304, %v1495
      %v1508 = vld [vmem:[%s172 + $0x30] sm:$0x7]
      %s1509 = scalar_lea.vmem %s1, 448
      %v1510 = vld [vmem:[%s1509] sm:$0xf]
      %v1511 = vld [vmem:[%s1509 + $0x4] sm:$0xf]
      %v1512 = vld [vmem:[%s1509 + $0x8] sm:$0xf]
      %v1513 = vld [vmem:[%s1509 + $0xc] sm:$0xf]
      %v1514 = vld [vmem:[%s1509 + $0x10] sm:$0xf]
      %v1515 = vld [vmem:[%s1509 + $0x14] sm:$0xf]
      %v1516 = vld [vmem:[%s1509 + $0x18] sm:$0xf]
      %v1517 = vld [vmem:[%s1509 + $0x1c] sm:$0xf]
      %v1518 = vld [vmem:[%s1509 + $0x20] sm:$0xf]
      %v1519 = vld [vmem:[%s1509 + $0x24] sm:$0xf]
      %v1520 = vld [vmem:[%s1509 + $0x28] sm:$0xf]
      %v1521 = vld [vmem:[%s1509 + $0x2c] sm:$0xf]
      %v1522 = vld [vmem:[%s1509 + $0x30] sm:$0xf]
      %v1523 = vld [vmem:[%s1509 + $0x34] sm:$0xf]
      %v1524 = vld [vmem:[%s1509 + $0x38] sm:$0xf]
      %v1525 = vld [vmem:[%s1509 + $0x3c] sm:$0xf]
      %v1527 = vunpack.c.l.b16 %v1508
      %v1528 = vpack.c.b16 %v1527, %v1527
      %vm1529 = vsmask.f32 5376
      %v1531 = vshrl.u32 %v1355, 16
      %v1533 = vrot.slane %v1531, 2
      %v1534 = vshll.u32 %v1355, 16
      %v1536 = vrot.slane %v1534, 3
      %v1537 = vor.u32 %v1533, %v1536
      %v1539 = vshrl.u32 %v1356, 16
      %v1541 = vrot.slane %v1539, 2
      %v1542 = vshll.u32 %v1356, 16
      %v1544 = vrot.slane %v1542, 3
      %v1545 = vor.u32 %v1541, %v1544
      %v1546 = vsel %vm1529, %v1537, %v1545
      %v1548 = vshrl.u32 %v1357, 16
      %v1550 = vrot.slane %v1548, 2
      %v1551 = vshll.u32 %v1357, 16
      %v1553 = vrot.slane %v1551, 3
      %v1554 = vor.u32 %v1550, %v1553
      %v1555 = vsel %vm1529, %v1545, %v1554
      %v1557 = vshrl.u32 %v1358, 16
      %v1559 = vrot.slane %v1557, 2
      %v1560 = vshll.u32 %v1358, 16
      %v1562 = vrot.slane %v1560, 3
      %v1563 = vor.u32 %v1559, %v1562
      %v1564 = vsel %vm1529, %v1554, %v1563
      %v1566 = vshrl.u32 %v1359, 16
      %v1568 = vrot.slane %v1566, 2
      %v1569 = vshll.u32 %v1359, 16
      %v1571 = vrot.slane %v1569, 3
      %v1572 = vor.u32 %v1568, %v1571
      %v1573 = vsel %vm1529, %v1563, %v1572
      %v1575 = vshrl.u32 %v1528, 16
      %v1577 = vrot.slane %v1575, 2
      %v1578 = vshll.u32 %v1528, 16
      %v1580 = vrot.slane %v1578, 3
      %v1581 = vor.u32 %v1577, %v1580
      %v1582 = vsel %vm1529, %v1572, %v1581
      %v1604 = vunpack.c.l.b16 %v1510
      %v1605 = vunpack.c.l.b16 %v1511
      %v1606 = vunpack.c.l.b16 %v1512
      %v1607 = vunpack.c.l.b16 %v1513
      %v1608 = vunpack.c.l.b16 %v1514
      %v1609 = vunpack.c.l.b16 %v1515
      %v1610 = vunpack.c.l.b16 %v1516
      %v1611 = vunpack.c.l.b16 %v1517
      %v1612 = vunpack.c.l.b16 %v1518
      %v1613 = vunpack.c.l.b16 %v1519
      %v1614 = vunpack.c.l.b16 %v1520
      %v1615 = vunpack.c.l.b16 %v1521
      %v1616 = vunpack.c.l.b16 %v1522
      %v1617 = vunpack.c.l.b16 %v1523
      %v1618 = vunpack.c.l.b16 %v1524
      %v1619 = vunpack.c.l.b16 %v1525
      %v1620 = vpack.c.b16 %v1605, %v1604
      %v1621 = vpack.c.b16 %v1607, %v1606
      %v1622 = vpack.c.b16 %v1609, %v1608
      %v1623 = vpack.c.b16 %v1611, %v1610
      %v1624 = vpack.c.b16 %v1613, %v1612
      %v1625 = vpack.c.b16 %v1615, %v1614
      %v1626 = vpack.c.b16 %v1617, %v1616
      %v1627 = vpack.c.b16 %v1619, %v1618
      %1636 = vmatprep.subr.bf16.mxu0 0
      %1637 = vmatpush1.bf16.msra.mxu0 %v1627
      %1638 = vmatprep.subr.bf16.mxu0 0
      %1639 = vmatpush1.bf16.msra.mxu0 %v1626
      %1640 = vmatprep.subr.bf16.mxu0 0
      %1641 = vmatpush1.bf16.msra.mxu0 %v1625
      %1642 = vmatprep.subr.bf16.mxu0 0
      %1643 = vmatpush1.bf16.msra.mxu0 %v1624
      %1644 = vmatprep.subr.bf16.mxu0 0
      %1645 = vmatpush1.bf16.msra.mxu0 %v1623
      %1646 = vmatprep.subr.bf16.mxu0 0
      %1647 = vmatpush1.bf16.msra.mxu0 %v1622
      %1648 = vmatprep.subr.bf16.mxu0 0
      %1649 = vmatpush1.bf16.msra.mxu0 %v1621
      %1650 = vmatprep.subr.bf16.mxu0 0
      %1651 = vmatpush1.bf16.msra.mxu0 %v1620
      %1652 = vmatprep.subr.bf16.mxu0 0
      %1653 = vmatpush2.bf16.msra.mxu0 0
      %1654 = vmatprep.subr.bf16.mxu0 0
      %1655 = vmatpush2.bf16.msra.mxu0 0
      %1656 = vmatprep.subr.bf16.mxu0 0
      %1657 = vmatpush2.bf16.msra.mxu0 0
      %1658 = vmatprep.subr.bf16.mxu0 0
      %1659 = vmatpush2.bf16.msra.mxu0 0
      %1660 = vmatprep.subr.bf16.mxu0 0
      %1661 = vmatpush2.bf16.msra.mxu0 0
      %1662 = vmatprep.subr.bf16.mxu0 0
      %1663 = vmatpush2.bf16.msra.mxu0 0
      %1664 = vmatprep.subr.bf16.mxu0 0
      %1665 = vmatpush2.bf16.msra.mxu0 0
      %1666 = vmatprep.subr.bf16.mxu0 0
      %1667 = vmatpush2.bf16.msra.mxu0 0
      %1668 = vmatprep.mubr.bf16.mxu0 0
      %1669 = vmatmul.mubr.bf16.gmra.mxu0 %v1546
      %v1670 = vpop.f32.mrf.mxu0
      %v1671 = vadd.f32 0.0, %v1670
      %v1672 = vpop.f32.mrf.mxu0
      %v1673 = vpop.f32.mrf.mxu0
      %v1674 = vadd.f32 0.0, %v1673
      %v1675 = vpop.f32.mrf.mxu0
      %1676 = vmatprep.mubr.bf16.mxu0 0
      %1677 = vmatmul.mubr.bf16.gmra.mxu0 %v1555
      %v1678 = vpop.f32.mrf.mxu0
      %v1679 = vadd.f32 0.0, %v1678
      %v1680 = vpop.f32.mrf.mxu0
      %v1681 = vpop.f32.mrf.mxu0
      %v1682 = vadd.f32 0.0, %v1681
      %v1683 = vpop.f32.mrf.mxu0
      %1684 = vmatprep.mubr.bf16.mxu0 0
      %1685 = vmatmul.mubr.bf16.gmra.mxu0 %v1564
      %v1686 = vpop.f32.mrf.mxu0
      %v1687 = vadd.f32 0.0, %v1686
      %v1688 = vpop.f32.mrf.mxu0
      %v1689 = vpop.f32.mrf.mxu0
      %v1690 = vadd.f32 0.0, %v1689
      %v1691 = vpop.f32.mrf.mxu0
      %1692 = vmatprep.mubr.bf16.mxu0 0
      %1693 = vmatmul.mubr.bf16.gmra.mxu0 %v1573
      %v1694 = vpop.f32.mrf.mxu0
      %v1695 = vadd.f32 0.0, %v1694
      %v1696 = vpop.f32.mrf.mxu0
      %v1697 = vpop.f32.mrf.mxu0
      %v1698 = vadd.f32 0.0, %v1697
      %v1699 = vpop.f32.mrf.mxu0
      %1700 = vmatprep.mubr.bf16.mxu0 0
      %1701 = vmatmul.mubr.bf16.gmra.mxu0 %v1582
      %v1702 = vpop.f32.mrf.mxu0
      %v1703 = vadd.f32 0.0, %v1702
      %v1704 = vpop.f32.mrf.mxu0
      %v1705 = vpop.f32.mrf.mxu0
      %v1706 = vadd.f32 0.0, %v1705
      %v1707 = vpop.f32.mrf.mxu0
      %1708 = vdwg.mxu0
      %v1709 = vadd.f32 %v1498, %v1671
      %v1710 = vadd.f32 %v1499, %v1674
      %v1711 = vadd.f32 %v1500, %v1679
      %v1712 = vadd.f32 %v1501, %v1682
      %v1713 = vadd.f32 %v1502, %v1687
      %v1714 = vadd.f32 %v1503, %v1690
      %v1715 = vadd.f32 %v1504, %v1695
      %v1716 = vadd.f32 %v1505, %v1698
      %v1717 = vadd.f32 %v1506, %v1703
      %v1718 = vadd.f32 %v1507, %v1706
      %v1719 = vld [vmem:[%s172 + $0x8] sm:$0x8]
      %s1720 = scalar_lea.vmem %s1, 512
      %v1721 = vld [vmem:[%s1720] sm:$0xf]
      %v1722 = vld [vmem:[%s1720 + $0x4] sm:$0xf]
      %v1723 = vld [vmem:[%s1720 + $0x8] sm:$0xf]
      %v1724 = vld [vmem:[%s1720 + $0xc] sm:$0xf]
      %v1725 = vld [vmem:[%s1720 + $0x10] sm:$0xf]
      %v1726 = vld [vmem:[%s1720 + $0x14] sm:$0xf]
      %v1727 = vld [vmem:[%s1720 + $0x18] sm:$0xf]
      %v1728 = vld [vmem:[%s1720 + $0x1c] sm:$0xf]
      %v1729 = vld [vmem:[%s1720 + $0x20] sm:$0xf]
      %v1730 = vld [vmem:[%s1720 + $0x24] sm:$0xf]
      %v1731 = vld [vmem:[%s1720 + $0x28] sm:$0xf]
      %v1732 = vld [vmem:[%s1720 + $0x2c] sm:$0xf]
      %v1733 = vld [vmem:[%s1720 + $0x30] sm:$0xf]
      %v1734 = vld [vmem:[%s1720 + $0x34] sm:$0xf]
      %v1735 = vld [vmem:[%s1720 + $0x38] sm:$0xf]
      %v1736 = vld [vmem:[%s1720 + $0x3c] sm:$0xf]
      %v1738 = vunpack.c.l.b16 %v1719
      %v1739 = vpack.c.b16 %v1345, %v1738
      %vm1740 = vcmask 1044480
      %v1741 = vrot.slane %v1739, 3
      %v1742 = vrot.slane %v1356, 3
      %v1743 = vsel %vm1740, %v1741, %v1742
      %v1744 = vrot.slane %v1357, 3
      %v1745 = vsel %vm1740, %v1742, %v1744
      %v1746 = vrot.slane %v1358, 3
      %v1747 = vsel %vm1740, %v1744, %v1746
      %v1748 = vrot.slane %v1359, 3
      %v1749 = vsel %vm1740, %v1746, %v1748
      %v1750 = vrot.slane %v1528, 3
      %v1751 = vsel %vm1740, %v1748, %v1750
      %v1773 = vunpack.c.l.b16 %v1721
      %v1774 = vunpack.c.l.b16 %v1722
      %v1775 = vunpack.c.l.b16 %v1723
      %v1776 = vunpack.c.l.b16 %v1724
      %v1777 = vunpack.c.l.b16 %v1725
      %v1778 = vunpack.c.l.b16 %v1726
      %v1779 = vunpack.c.l.b16 %v1727
      %v1780 = vunpack.c.l.b16 %v1728
      %v1781 = vunpack.c.l.b16 %v1729
      %v1782 = vunpack.c.l.b16 %v1730
      %v1783 = vunpack.c.l.b16 %v1731
      %v1784 = vunpack.c.l.b16 %v1732
      %v1785 = vunpack.c.l.b16 %v1733
      %v1786 = vunpack.c.l.b16 %v1734
      %v1787 = vunpack.c.l.b16 %v1735
      %v1788 = vunpack.c.l.b16 %v1736
      %v1789 = vpack.c.b16 %v1774, %v1773
      %v1790 = vpack.c.b16 %v1776, %v1775
      %v1791 = vpack.c.b16 %v1778, %v1777
      %v1792 = vpack.c.b16 %v1780, %v1779
      %v1793 = vpack.c.b16 %v1782, %v1781
      %v1794 = vpack.c.b16 %v1784, %v1783
      %v1795 = vpack.c.b16 %v1786, %v1785
      %v1796 = vpack.c.b16 %v1788, %v1787
      %1805 = vmatprep.subr.bf16.mxu0 0
      %1806 = vmatpush1.bf16.msra.mxu0 %v1796
      %1807 = vmatprep.subr.bf16.mxu0 0
      %1808 = vmatpush1.bf16.msra.mxu0 %v1795
      %1809 = vmatprep.subr.bf16.mxu0 0
      %1810 = vmatpush1.bf16.msra.mxu0 %v1794
      %1811 = vmatprep.subr.bf16.mxu0 0
      %1812 = vmatpush1.bf16.msra.mxu0 %v1793
      %1813 = vmatprep.subr.bf16.mxu0 0
      %1814 = vmatpush1.bf16.msra.mxu0 %v1792
      %1815 = vmatprep.subr.bf16.mxu0 0
      %1816 = vmatpush1.bf16.msra.mxu0 %v1791
      %1817 = vmatprep.subr.bf16.mxu0 0
      %1818 = vmatpush1.bf16.msra.mxu0 %v1790
      %1819 = vmatprep.subr.bf16.mxu0 0
      %1820 = vmatpush1.bf16.msra.mxu0 %v1789
      %1821 = vmatprep.subr.bf16.mxu0 0
      %1822 = vmatpush2.bf16.msra.mxu0 0
      %1823 = vmatprep.subr.bf16.mxu0 0
      %1824 = vmatpush2.bf16.msra.mxu0 0
      %1825 = vmatprep.subr.bf16.mxu0 0
      %1826 = vmatpush2.bf16.msra.mxu0 0
      %1827 = vmatprep.subr.bf16.mxu0 0
      %1828 = vmatpush2.bf16.msra.mxu0 0
      %1829 = vmatprep.subr.bf16.mxu0 0
      %1830 = vmatpush2.bf16.msra.mxu0 0
      %1831 = vmatprep.subr.bf16.mxu0 0
      %1832 = vmatpush2.bf16.msra.mxu0 0
      %1833 = vmatprep.subr.bf16.mxu0 0
      %1834 = vmatpush2.bf16.msra.mxu0 0
      %1835 = vmatprep.subr.bf16.mxu0 0
      %1836 = vmatpush2.bf16.msra.mxu0 0
      %1837 = vmatprep.mubr.bf16.mxu0 0
      %1838 = vmatmul.mubr.bf16.gmra.mxu0 %v1743
      %v1839 = vpop.f32.mrf.mxu0
      %v1840 = vadd.f32 0.0, %v1839
      %v1841 = vpop.f32.mrf.mxu0
      %v1842 = vpop.f32.mrf.mxu0
      %v1843 = vadd.f32 0.0, %v1842
      %v1844 = vpop.f32.mrf.mxu0
      %1845 = vmatprep.mubr.bf16.mxu0 0
      %1846 = vmatmul.mubr.bf16.gmra.mxu0 %v1745
      %v1847 = vpop.f32.mrf.mxu0
      %v1848 = vadd.f32 0.0, %v1847
      %v1849 = vpop.f32.mrf.mxu0
      %v1850 = vpop.f32.mrf.mxu0
      %v1851 = vadd.f32 0.0, %v1850
      %v1852 = vpop.f32.mrf.mxu0
      %1853 = vmatprep.mubr.bf16.mxu0 0
      %1854 = vmatmul.mubr.bf16.gmra.mxu0 %v1747
      %v1855 = vpop.f32.mrf.mxu0
      %v1856 = vadd.f32 0.0, %v1855
      %v1857 = vpop.f32.mrf.mxu0
      %v1858 = vpop.f32.mrf.mxu0
      %v1859 = vadd.f32 0.0, %v1858
      %v1860 = vpop.f32.mrf.mxu0
      %1861 = vmatprep.mubr.bf16.mxu0 0
      %1862 = vmatmul.mubr.bf16.gmra.mxu0 %v1749
      %v1863 = vpop.f32.mrf.mxu0
      %v1864 = vadd.f32 0.0, %v1863
      %v1865 = vpop.f32.mrf.mxu0
      %v1866 = vpop.f32.mrf.mxu0
      %v1867 = vadd.f32 0.0, %v1866
      %v1868 = vpop.f32.mrf.mxu0
      %1869 = vmatprep.mubr.bf16.mxu0 0
      %1870 = vmatmul.mubr.bf16.gmra.mxu0 %v1751
      %v1871 = vpop.f32.mrf.mxu0
      %v1872 = vadd.f32 0.0, %v1871
      %v1873 = vpop.f32.mrf.mxu0
      %v1874 = vpop.f32.mrf.mxu0
      %v1875 = vadd.f32 0.0, %v1874
      %v1876 = vpop.f32.mrf.mxu0
      %1877 = vdwg.mxu0
      %v1878 = vadd.f32 %v1709, %v1840
      %v1879 = vadd.f32 %v1710, %v1843
      %v1880 = vadd.f32 %v1711, %v1848
      %v1881 = vadd.f32 %v1712, %v1851
      %v1882 = vadd.f32 %v1713, %v1856
      %v1883 = vadd.f32 %v1714, %v1859
      %v1884 = vadd.f32 %v1715, %v1864
      %v1885 = vadd.f32 %v1716, %v1867
      %v1886 = vadd.f32 %v1717, %v1872
      %v1887 = vadd.f32 %v1718, %v1875
      %1888 = vst [vmem:[%s177] sm:$0xff] %v1878
      %1889 = vst [vmem:[%s177 + $0x8] sm:$0xff] %v1879
      %1890 = vst [vmem:[%s177 + $0x10] sm:$0xff] %v1880
      %1891 = vst [vmem:[%s177 + $0x18] sm:$0xff] %v1881
      %1892 = vst [vmem:[%s177 + $0x20] sm:$0xff] %v1882
      %1893 = vst [vmem:[%s177 + $0x28] sm:$0xff] %v1883
      %1894 = vst [vmem:[%s177 + $0x30] sm:$0xff] %v1884
      %1895 = vst [vmem:[%s177 + $0x38] sm:$0xff] %v1885
      %1896 = vst [vmem:[%s177 + $0x40] sm:$0xff] %v1886
      %1897 = vst [vmem:[%s177 + $0x48] sm:$0xff] %v1887
      %v1898 = vlaneseq
      %v1899 = vshrl.u32 %v1898, 7
      %v1900 = vadd.s32 %v1899, 8
      %v1901 = vadd.s32 %v1899, 16
      %v1902 = vadd.s32 %v1899, 24
      %v1903 = vadd.s32 %v1899, 32
      %v1904 = vadd.s32 %v1899, 40
      %v1905 = vadd.s32 %v1899, 48
      %v1906 = vadd.s32 %v1899, 56
      %v1907 = vadd.s32 %v1899, 64
      %v1908 = vadd.s32 %v1899, 72
      %vm1909 = vcmp.lt.s32.totalorder %v1899, 0
      %v1910 = vsub.s32 0, %v1899
      %v1911 = vsel %vm1909, %v1910, %v1899
      %v1912 = vmul.u32.u64.compose %v1911, 3435973837
      %v1913 = vextract.low.u32 %v1912
      %v1914 = vextract.high.u32 %v1912
      %v1915 = vshrl.u32 %v1914, 3
      %v1916 = vmul.u32 %v1915, 10
      %v1917 = vsub.s32 %v1911, %v1916
      %v1918 = vsub.s32 0, %v1917
      %v1919 = vsel %vm1909, %v1918, %v1917
      %vm1920 = vcmp.lt.s32.totalorder %v1900, 0
      %v1921 = vsub.s32 0, %v1900
      %v1922 = vsel %vm1920, %v1921, %v1900
      %v1923 = vmul.u32.u64.compose %v1922, 3435973837
      %v1924 = vextract.low.u32 %v1923
      %v1925 = vextract.high.u32 %v1923
      %v1926 = vshrl.u32 %v1925, 3
      %v1927 = vmul.u32 %v1926, 10
      %v1928 = vsub.s32 %v1922, %v1927
      %v1929 = vsub.s32 0, %v1928
      %v1930 = vsel %vm1920, %v1929, %v1928
      %vm1931 = vcmp.lt.s32.totalorder %v1901, 0
      %v1932 = vsub.s32 0, %v1901
      %v1933 = vsel %vm1931, %v1932, %v1901
      %v1934 = vmul.u32.u64.compose %v1933, 3435973837
      %v1935 = vextract.low.u32 %v1934
      %v1936 = vextract.high.u32 %v1934
      %v1937 = vshrl.u32 %v1936, 3
      %v1938 = vmul.u32 %v1937, 10
      %v1939 = vsub.s32 %v1933, %v1938
      %v1940 = vsub.s32 0, %v1939
      %v1941 = vsel %vm1931, %v1940, %v1939
      %vm1942 = vcmp.lt.s32.totalorder %v1902, 0
      %v1943 = vsub.s32 0, %v1902
      %v1944 = vsel %vm1942, %v1943, %v1902
      %v1945 = vmul.u32.u64.compose %v1944, 3435973837
      %v1946 = vextract.low.u32 %v1945
      %v1947 = vextract.high.u32 %v1945
      %v1948 = vshrl.u32 %v1947, 3
      %v1949 = vmul.u32 %v1948, 10
      %v1950 = vsub.s32 %v1944, %v1949
      %v1951 = vsub.s32 0, %v1950
      %v1952 = vsel %vm1942, %v1951, %v1950
      %vm1953 = vcmp.lt.s32.totalorder %v1903, 0
      %v1954 = vsub.s32 0, %v1903
      %v1955 = vsel %vm1953, %v1954, %v1903
      %v1956 = vmul.u32.u64.compose %v1955, 3435973837
      %v1957 = vextract.low.u32 %v1956
      %v1958 = vextract.high.u32 %v1956
      %v1959 = vshrl.u32 %v1958, 3
      %v1960 = vmul.u32 %v1959, 10
      %v1961 = vsub.s32 %v1955, %v1960
      %v1962 = vsub.s32 0, %v1961
      %v1963 = vsel %vm1953, %v1962, %v1961
      %vm1964 = vcmp.lt.s32.totalorder %v1904, 0
      %v1965 = vsub.s32 0, %v1904
      %v1966 = vsel %vm1964, %v1965, %v1904
      %v1967 = vmul.u32.u64.compose %v1966, 3435973837
      %v1968 = vextract.low.u32 %v1967
      %v1969 = vextract.high.u32 %v1967
      %v1970 = vshrl.u32 %v1969, 3
      %v1971 = vmul.u32 %v1970, 10
      %v1972 = vsub.s32 %v1966, %v1971
      %v1973 = vsub.s32 0, %v1972
      %v1974 = vsel %vm1964, %v1973, %v1972
      %vm1975 = vcmp.lt.s32.totalorder %v1905, 0
      %v1976 = vsub.s32 0, %v1905
      %v1977 = vsel %vm1975, %v1976, %v1905
      %v1978 = vmul.u32.u64.compose %v1977, 3435973837
      %v1979 = vextract.low.u32 %v1978
      %v1980 = vextract.high.u32 %v1978
      %v1981 = vshrl.u32 %v1980, 3
      %v1982 = vmul.u32 %v1981, 10
      %v1983 = vsub.s32 %v1977, %v1982
      %v1984 = vsub.s32 0, %v1983
      %v1985 = vsel %vm1975, %v1984, %v1983
      %vm1986 = vcmp.lt.s32.totalorder %v1906, 0
      %v1987 = vsub.s32 0, %v1906
      %v1988 = vsel %vm1986, %v1987, %v1906
      %v1989 = vmul.u32.u64.compose %v1988, 3435973837
      %v1990 = vextract.low.u32 %v1989
      %v1991 = vextract.high.u32 %v1989
      %v1992 = vshrl.u32 %v1991, 3
      %v1993 = vmul.u32 %v1992, 10
      %v1994 = vsub.s32 %v1988, %v1993
      %v1995 = vsub.s32 0, %v1994
      %v1996 = vsel %vm1986, %v1995, %v1994
      %vm1997 = vcmp.lt.s32.totalorder %v1907, 0
      %v1998 = vsub.s32 0, %v1907
      %v1999 = vsel %vm1997, %v1998, %v1907
      %v2000 = vmul.u32.u64.compose %v1999, 3435973837
      %v2001 = vextract.low.u32 %v2000
      %v2002 = vextract.high.u32 %v2000
      %v2003 = vshrl.u32 %v2002, 3
      %v2004 = vmul.u32 %v2003, 10
      %v2005 = vsub.s32 %v1999, %v2004
      %v2006 = vsub.s32 0, %v2005
      %v2007 = vsel %vm1997, %v2006, %v2005
      %vm2008 = vcmp.lt.s32.totalorder %v1908, 0
      %v2009 = vsub.s32 0, %v1908
      %v2010 = vsel %vm2008, %v2009, %v1908
      %v2011 = vmul.u32.u64.compose %v2010, 3435973837
      %v2012 = vextract.low.u32 %v2011
      %v2013 = vextract.high.u32 %v2011
      %v2014 = vshrl.u32 %v2013, 3
      %v2015 = vmul.u32 %v2014, 10
      %v2016 = vsub.s32 %v2010, %v2015
      %v2017 = vsub.s32 0, %v2016
      %v2018 = vsel %vm2008, %v2017, %v2016
      %vm2019 = vcmp.ne.s32.totalorder %v1919, 0
      %vm2020 = vcmp.ne.s32.totalorder %v1930, 0
      %vm2021 = vcmp.ne.s32.totalorder %v1941, 0
      %vm2022 = vcmp.ne.s32.totalorder %v1952, 0
      %vm2023 = vcmp.ne.s32.totalorder %v1963, 0
      %vm2024 = vcmp.ne.s32.totalorder %v1974, 0
      %vm2025 = vcmp.ne.s32.totalorder %v1985, 0
      %vm2026 = vcmp.ne.s32.totalorder %v1996, 0
      %vm2027 = vcmp.ne.s32.totalorder %v2007, 0
      %vm2028 = vcmp.ne.s32.totalorder %v2018, 0
      %vm2029 = vcmp.lt.s32.totalorder %v1919, 0
      %vm2030 = vcmp.lt.s32.totalorder %v1930, 0
      %vm2031 = vcmp.lt.s32.totalorder %v1941, 0
      %vm2032 = vcmp.lt.s32.totalorder %v1952, 0
      %vm2033 = vcmp.lt.s32.totalorder %v1963, 0
      %vm2034 = vcmp.lt.s32.totalorder %v1974, 0
      %vm2035 = vcmp.lt.s32.totalorder %v1985, 0
      %vm2036 = vcmp.lt.s32.totalorder %v1996, 0
      %vm2037 = vcmp.lt.s32.totalorder %v2007, 0
      %vm2038 = vcmp.lt.s32.totalorder %v2018, 0
      %vm2039 = vmand %vm2029, %vm2019
      %vm2040 = vmand %vm2030, %vm2020
      %vm2041 = vmand %vm2031, %vm2021
      %vm2042 = vmand %vm2032, %vm2022
      %vm2043 = vmand %vm2033, %vm2023
      %vm2044 = vmand %vm2034, %vm2024
      %vm2045 = vmand %vm2035, %vm2025
      %vm2046 = vmand %vm2036, %vm2026
      %vm2047 = vmand %vm2037, %vm2027
      %vm2048 = vmand %vm2038, %vm2028
      %v2049 = vadd.s32 %v1919, 10
      %v2050 = vadd.s32 %v1930, 10
      %v2051 = vadd.s32 %v1941, 10
      %v2052 = vadd.s32 %v1952, 10
      %v2053 = vadd.s32 %v1963, 10
      %v2054 = vadd.s32 %v1974, 10
      %v2055 = vadd.s32 %v1985, 10
      %v2056 = vadd.s32 %v1996, 10
      %v2057 = vadd.s32 %v2007, 10
      %v2058 = vadd.s32 %v2018, 10
      %v2059 = vsel %vm2039, %v2049, %v1919
      %v2060 = vsel %vm2040, %v2050, %v1930
      %v2061 = vsel %vm2041, %v2051, %v1941
      %v2062 = vsel %vm2042, %v2052, %v1952
      %v2063 = vsel %vm2043, %v2053, %v1963
      %v2064 = vsel %vm2044, %v2054, %v1974
      %v2065 = vsel %vm2045, %v2055, %v1985
      %v2066 = vsel %vm2046, %v2056, %v1996
      %v2067 = vsel %vm2047, %v2057, %v2007
      %v2068 = vsel %vm2048, %v2058, %v2018
      %vm2069 = vcmp.lt.s32.totalorder %v2059, 8
      %vm2070 = vcmp.lt.s32.totalorder %v2060, 8
      %vm2071 = vcmp.lt.s32.totalorder %v2061, 8
      %vm2072 = vcmp.lt.s32.totalorder %v2062, 8
      %vm2073 = vcmp.lt.s32.totalorder %v2063, 8
      %vm2074 = vcmp.lt.s32.totalorder %v2064, 8
      %vm2075 = vcmp.lt.s32.totalorder %v2065, 8
      %vm2076 = vcmp.lt.s32.totalorder %v2066, 8
      %vm2077 = vcmp.lt.s32.totalorder %v2067, 8
      %vm2078 = vcmp.lt.s32.totalorder %v2068, 8
      %vm2079 = vcmp.lt.s32.totalorder %v1899, 80
      %vm2080 = vcmp.lt.s32.totalorder %v1900, 80
      %vm2081 = vcmp.lt.s32.totalorder %v1901, 80
      %vm2082 = vcmp.lt.s32.totalorder %v1902, 80
      %vm2083 = vcmp.lt.s32.totalorder %v1903, 80
      %vm2084 = vcmp.lt.s32.totalorder %v1904, 80
      %vm2085 = vcmp.lt.s32.totalorder %v1905, 80
      %vm2086 = vcmp.lt.s32.totalorder %v1906, 80
      %vm2087 = vcmp.lt.s32.totalorder %v1907, 80
      %vm2088 = vcmp.lt.s32.totalorder %v1908, 80
      %vm2089 = vmand %vm2069, %vm2079
      %vm2090 = vmand %vm2070, %vm2080
      %vm2091 = vmand %vm2071, %vm2081
      %vm2092 = vmand %vm2072, %vm2082
      %vm2093 = vmand %vm2073, %vm2083
      %vm2094 = vmand %vm2074, %vm2084
      %vm2095 = vmand %vm2075, %vm2085
      %vm2096 = vmand %vm2076, %vm2086
      %vm2097 = vmand %vm2077, %vm2087
      %vm2098 = vmand %vm2078, %vm2088
      %v2099 = vsel %vm2089, %v1878, 0.0
      %v2100 = vsel %vm2090, %v1879, 0.0
      %v2101 = vsel %vm2091, %v1880, 0.0
      %v2102 = vsel %vm2092, %v1881, 0.0
      %v2103 = vsel %vm2093, %v1882, 0.0
      %v2104 = vsel %vm2094, %v1883, 0.0
      %v2105 = vsel %vm2095, %v1884, 0.0
      %v2106 = vsel %vm2096, %v1885, 0.0
      %v2107 = vsel %vm2097, %v1886, 0.0
      %v2108 = vsel %vm2098, %v1887, 0.0
      %v2109 = vadd.f32 %v2099, %v2100
      %v2110 = vadd.f32 %v2109, %v2101
      %v2111 = vadd.f32 %v2110, %v2102
      %v2112 = vadd.f32 %v2111, %v2103
      %v2113 = vadd.f32 %v2112, %v2104
      %v2114 = vadd.f32 %v2113, %v2105
      %v2115 = vadd.f32 %v2114, %v2106
      %v2116 = vadd.f32 %v2115, %v2107
      %v2117 = vadd.f32 %v2116, %v2108
      %v2118 = vrot.slane %v2117, 4
      %v2119 = vadd.f32 %v2117, %v2118
      %v2120 = vrot.slane %v2119, 2
      %v2121 = vadd.f32 %v2119, %v2120
      %v2122 = vrot.slane %v2121, 1
      %v2123 = vadd.f32 %v2121, %v2122
      %v2124 = vmul.f32 %v2099, %v2099
      %v2125 = vmul.f32 %v2100, %v2100
      %v2126 = vmul.f32 %v2101, %v2101
      %v2127 = vmul.f32 %v2102, %v2102
      %v2128 = vmul.f32 %v2103, %v2103
      %v2129 = vmul.f32 %v2104, %v2104
      %v2130 = vmul.f32 %v2105, %v2105
      %v2131 = vmul.f32 %v2106, %v2106
      %v2132 = vmul.f32 %v2107, %v2107
      %v2133 = vmul.f32 %v2108, %v2108
      %v2134 = vadd.f32 %v2124, %v2125
      %v2135 = vadd.f32 %v2134, %v2126
      %v2136 = vadd.f32 %v2135, %v2127
      %v2137 = vadd.f32 %v2136, %v2128
      %v2138 = vadd.f32 %v2137, %v2129
      %v2139 = vadd.f32 %v2138, %v2130
      %v2140 = vadd.f32 %v2139, %v2131
      %v2141 = vadd.f32 %v2140, %v2132
      %v2142 = vadd.f32 %v2141, %v2133
      %v2143 = vrot.slane %v2142, 4
      %v2144 = vadd.f32 %v2142, %v2143
      %v2145 = vrot.slane %v2144, 2
      %v2146 = vadd.f32 %v2144, %v2145
      %v2147 = vrot.slane %v2146, 1
      %v2148 = vadd.f32 %v2146, %v2147
      %vm2149 = vcmask 1040384
      %v2150 = vsel %vm2149, %v2123, %v2148
      %2151 = vst [vmem:[%s182] sm:$0x3] %v2150
      %s2152 = smul.u32 10, %s15
      %p2153 = scmp.lt.s32.totalorder %s2152, 19
      %s2154 = scalar_select %p2153, %s2152, 19
      %s2155 = smul.addr %s2154, 8
      %s2156 = scalar_lea.vmem %s2, %s2155
      %p2157 = scmp.lt.s32.totalorder %s15, 1
      %s2158 = scalar_select %p2157, %s15, 1
      %s2159 = smul.addr %s2158, 2
      %s2160 = scalar_lea.vmem %s3, %s2159
      // Predicated region
      $region29: #{_residual_block.4} parent=27 // pred_check
        %p2161 = pneg %p80
      $region30: #{_residual_block.4} parent=27 // pred_check_branch
        %2163 = sbr.rel (%p2161) target = $region32
      $region31: #{_residual_block.4} parent=27 // pred_region
        %s2164 = smul.u32 10, %s15
      $region32: #{_residual_block.4} parent=27 // pred_fallthru
        _
      // Predicated region
      $region33: #{_residual_block.4} parent=27 // pred_check
        %p2165 = pneg %p106
      $region34: #{_residual_block.4} parent=27 // pred_check_branch
        %2167 = sbr.rel (%p2165) target = $region36
      $region35: #{_residual_block.4} parent=27 // pred_region
        _
      $region36: #{_residual_block.4} parent=27 // pred_fallthru
        _
    $region28: #{_residual_block.4} parent=5 // pred_fallthru
      _
    %p2168 = scmp.le.s32.totalorder 2, %s10
    // Predicated region
    $region37: #{_residual_block.4} parent=5 // pred_check
      %p2169 = pneg %p2168
    $region38: #{_residual_block.4} parent=5 // pred_check_branch
      %2171 = sbr.rel (%p2169) target = $region40
    $region39: #{_residual_block.4} parent=5 // pred_region
      %s2172 = ssub.s32 %s10, 2
      // Predicated region
      $region41: #{_residual_block.4} parent=39 // pred_check
        %p2173 = pneg %p86
      $region42: #{_residual_block.4} parent=39 // pred_check_branch
        %2175 = sbr.rel (%p2173) target = $region44
      $region43: #{_residual_block.4} parent=39 // pred_region
        %s2176 = smul.u32 10, %s16
        %p2177 = scmp.lt.s32.totalorder %s2176, 19
        %s2178 = scalar_select %p2177, %s2176, 19
        %s2179 = smul.addr %s2178, 8
        %s2180 = scalar_lea.vmem %s2, %s2179
      $region44: #{_residual_block.4} parent=39 // pred_fallthru
        _
      // Predicated region
      $region45: #{_residual_block.4} parent=39 // pred_check
        %p2181 = pneg %p112
      $region46: #{_residual_block.4} parent=39 // pred_check_branch
        %2183 = sbr.rel (%p2181) target = $region48
      $region47: #{_residual_block.4} parent=39 // pred_region
        %p2184 = scmp.lt.s32.totalorder %s16, 1
        %s2185 = scalar_select %p2184, %s16, 1
        %s2186 = smul.addr %s2185, 2
        %s2187 = scalar_lea.vmem %s3, %s2186
      $region48: #{_residual_block.4} parent=39 // pred_fallthru
        _
    $region40: #{_residual_block.4} parent=5 // pred_fallthru
      _
  $region6: #{_residual_block.4} parent=0 // loop_footer
    %s14 = sadd.s32 1, %s10
  $region7: #{_residual_block.4} parent=0 // loop_footer_branch
    %9 = sbr.rel target = $region3
  $region8: #{_residual_block.4} parent=0 // loop_exit
    _

</llo_original>
